<compile_context>
chip_gen: v6e
topology: v6e:2x2x1
jax: 0.10.0
libtpu: 0.0.40
codegen_flags: <defaults>
</compile_context>

<pallas_src>
import functools

import jax
import jax.numpy as jnp
from jax.experimental import pallas as pl
from jax.experimental.pallas import tpu as pltpu

TEXT_DIM = 768
VISUAL_DIM = 47
VIS_PAD = 128           # visual dim padded up to one lane tile
LN_EPS = 1e-5           # nn.LayerNorm default eps
MAG_EPS = 1e-6


def _round_up(x, m):
    return ((x + m - 1) // m) * m


def _mag_kernel(vis_ref, txt_ref,
                wcat_ref, whv_t_ref,
                bhv_ref, bv_ref,
                gamma_ref, beta_ref,
                o_ref, *, beta_shift):
    txt = txt_ref[...]                           # (tm, D)       f32
    txt_bf = txt.astype(jnp.bfloat16)
    vis_bf = vis_ref[...]                        # (tm, VIS_PAD) bf16

    # Fused visual matmul: [pre_vis | wv] = vis @ [W_hv_vis | W_v]  (bf16 in, f32 acc)
    vcat = jnp.dot(vis_bf, wcat_ref[...], preferred_element_type=jnp.float32)  # (tm, 2D)

    # weight_v = relu(W_hv([visual; text]))
    pre = (vcat[:, :TEXT_DIM]
           + jnp.dot(txt_bf, whv_t_ref[...], preferred_element_type=jnp.float32)
           + bhv_ref[...])
    weight_v = jnp.maximum(pre, 0.0)

    # h_m = weight_v * W_v(visual)
    h_m = weight_v * (vcat[:, TEXT_DIM:] + bv_ref[...])

    # Alpha gate (all f32): squared norms + EUP reciprocal.
    em_sq = jnp.sum(txt * txt, axis=-1, keepdims=True)
    hm_sq = jnp.sum(h_m * h_m, axis=-1, keepdims=True)
    hm_norm = jnp.sqrt(hm_sq)
    hm_norm = jnp.where(hm_sq == 0.0, jnp.ones_like(hm_norm), hm_norm)
    inv_hm = pl.reciprocal(hm_norm + MAG_EPS, approx=True)
    thresh = jnp.sqrt(em_sq) * inv_hm * beta_shift
    alpha = jnp.minimum(thresh, 1.0)             # (tm, 1)

    x = alpha * h_m + txt                        # vis_embedding + text_embedding

    # LayerNorm over the last dim, one-pass statistics.
    inv_d = 1.0 / TEXT_DIM
    s1 = jnp.sum(x, axis=-1, keepdims=True)
    s2 = jnp.sum(x * x, axis=-1, keepdims=True)
    mean = s1 * inv_d
    var = s2 * inv_d - mean * mean
    x_hat = (x - mean) * jax.lax.rsqrt(var + LN_EPS)
    o_ref[...] = x_hat * gamma_ref[...] + beta_ref[...]
    # TODO(synk): nn.Dropout is identity at inference; training-mode dropout not applied.


def mag_forward(text_embedding, visual, params, *, beta_shift, tm=512):
    """text_embedding: [B, S, TEXT_DIM] f32, visual: [B, S, VISUAL_DIM] f32."""
    B, S, D = text_embedding.shape
    assert D == TEXT_DIM
    N = B * S

    # Fixed row tile (multiple of 8 for sublane tiling, multiple of 256 by
    # default for the v6e/v7x MXU); clamp for tiny inputs.  No row padding:
    # a non-dividing last tile is handled by Pallas boundary-block masking.
    tm = max(8, _round_up(min(tm, _round_up(N, 8)), 8))
    grid = (pl.cdiv(N, tm),)

    txt = text_embedding.reshape(N, D)                       # stays f32 in HBM
    vis = jnp.pad(visual.reshape(N, VISUAL_DIM),
                  ((0, 0), (0, VIS_PAD - VISUAL_DIM))).astype(jnp.bfloat16)

    # Weights stored [in, out] (transposed vs. torch Linear); visual rows
    # zero-padded to 128; the two visual-path weights are packed column-wise
    # into one (128, 1536) RHS.  Matmul weights are cast to bf16 once here.
    whv_vis = jnp.pad(params["W_hv_vis"], ((0, VIS_PAD - VISUAL_DIM), (0, 0)))
    wv_pad = jnp.pad(params["W_v"], ((0, VIS_PAD - VISUAL_DIM), (0, 0)))
    w_cat = jnp.concatenate([whv_vis, wv_pad], axis=1).astype(jnp.bfloat16)   # (128, 1536)
    whv_txt = params["W_hv_txt"].astype(jnp.bfloat16)                         # (768, 768)

    b_hv = params["b_hv"].reshape(1, D).astype(jnp.float32)
    b_v = params["b_v"].reshape(1, D).astype(jnp.float32)
    gamma = params["ln_gamma"].reshape(1, D).astype(jnp.float32)
    beta = params["ln_beta"].reshape(1, D).astype(jnp.float32)

    row_spec = lambda shape: pl.BlockSpec(shape, lambda i: (i, 0))
    full_spec = lambda shape: pl.BlockSpec(shape, lambda i: (0, 0))

    out = pl.pallas_call(
        functools.partial(_mag_kernel, beta_shift=float(beta_shift)),
        out_shape=jax.ShapeDtypeStruct((N, D), jnp.float32),
        grid_spec=pltpu.PrefetchScalarGridSpec(
            num_scalar_prefetch=0,
            grid=grid,
            in_specs=[
                row_spec((tm, VIS_PAD)),            # visual (padded, bf16)
                row_spec((tm, D)),                  # text (f32)
                full_spec((VIS_PAD, 2 * D)),        # [W_hv_vis | W_v] packed (bf16)
                full_spec((D, D)),                  # W_hv text part (bf16)
                full_spec((1, D)),                  # b_hv
                full_spec((1, D)),                  # b_v
                full_spec((1, D)),                  # LN gamma
                full_spec((1, D)),                  # LN beta
            ],
            out_specs=row_spec((tm, D)),
        ),
        compiler_params=pltpu.CompilerParams(
            dimension_semantics=("parallel",),
            # Explicit limit so the tm=512 config fits the v5e 16 MiB default
            # and stays well inside v7x's 64 MiB physical VMEM.
            vmem_limit_bytes=32 * 1024 * 1024,
        ),
    )(vis, txt, w_cat, whv_txt, b_hv, b_v, gamma, beta)

    return out.reshape(B, S, D)


def mag_reference(text_embedding, visual, params, *, beta_shift):
    """Pure-JAX reference mirroring the PyTorch forward (f32 throughout)."""
    W_hv = jnp.concatenate([params["W_hv_vis"], params["W_hv_txt"]], axis=0)  # (815, 768)
    cat = jnp.concatenate([visual, text_embedding], axis=-1)
    weight_v = jax.nn.relu(cat @ W_hv + params["b_hv"])
    h_m = weight_v * (visual @ params["W_v"] + params["b_v"])
    em_norm = jnp.linalg.norm(text_embedding, axis=-1)
    hm_norm = jnp.linalg.norm(h_m, axis=-1)
    hm_norm = jnp.where(hm_norm == 0, jnp.ones_like(hm_norm), hm_norm)
    thresh = em_norm / (hm_norm + MAG_EPS) * beta_shift
    alpha = jnp.minimum(thresh, 1.0)[..., None]
    x = alpha * h_m + text_embedding
    mean = jnp.mean(x, axis=-1, keepdims=True)
    var = jnp.mean((x - mean) ** 2, axis=-1, keepdims=True)
    return (x - mean) / jnp.sqrt(var + LN_EPS) * params["ln_gamma"] + params["ln_beta"]


def init_params(key):
    ks = jax.random.split(key, 6)
    s_hv = 1.0 / jnp.sqrt(VISUAL_DIM + TEXT_DIM)
    s_v = 1.0 / jnp.sqrt(VISUAL_DIM)
    return {
        "W_hv_vis": jax.random.uniform(ks[0], (VISUAL_DIM, TEXT_DIM), jnp.float32, -s_hv, s_hv),
        "W_hv_txt": jax.random.uniform(ks[1], (TEXT_DIM, TEXT_DIM), jnp.float32, -s_hv, s_hv),
        "b_hv": jax.random.uniform(ks[2], (TEXT_DIM,), jnp.float32, -s_hv, s_hv),
        "W_v": jax.random.uniform(ks[3], (VISUAL_DIM, TEXT_DIM), jnp.float32, -s_v, s_v),
        "b_v": jax.random.uniform(ks[4], (TEXT_DIM,), jnp.float32, -s_v, s_v),
        "ln_gamma": jnp.ones((TEXT_DIM,), jnp.float32),
        "ln_beta": jnp.zeros((TEXT_DIM,), jnp.float32),
    }


if __name__ == "__main__":
    key = jax.random.PRNGKey(0)
    k_p, k_t, k_v, k_t2, k_v2 = jax.random.split(key, 5)

    beta_shift = 0.5
    params = init_params(k_p)

    # bf16 matmul operands (f32 accumulation) -> loosen tolerance vs f32 reference.
    ATOL = RTOL = 2e-2

    # Test 1: small shape from the module spec (grid clamps to one tile).
    B, S = 2, 8
    text = jax.random.normal(k_t, (B, S, TEXT_DIM), jnp.float32)
    visual = jax.random.normal(k_v, (B, S, VISUAL_DIM), jnp.float32)
    out = jax.block_until_ready(mag_forward(text, visual, params, beta_shift=beta_shift))
    ref = mag_reference(text, visual, params, beta_shift=beta_shift)
    assert out.shape == (B, S, TEXT_DIM)
    assert jnp.allclose(out, ref, atol=ATOL, rtol=RTOL), "mismatch vs. reference (test 1)"

    # Test 2: multi-step grid with a partial last tile (N=15, tm=8 -> grid=(2,)).
    B2, S2 = 3, 5
    text2 = jax.random.normal(k_t2, (B2, S2, TEXT_DIM), jnp.float32)
    visual2 = jax.random.normal(k_v2, (B2, S2, VISUAL_DIM), jnp.float32)
    out2 = jax.block_until_ready(
        mag_forward(text2, visual2, params, beta_shift=beta_shift, tm=8))
    ref2 = mag_reference(text2, visual2, params, beta_shift=beta_shift)
    assert out2.shape == (B2, S2, TEXT_DIM)
    assert jnp.allclose(out2, ref2, atol=ATOL, rtol=RTOL), "mismatch vs. reference (test 2)"

    print("KERNEL_OK")
</pallas_src>

<mosaic_0001>
module attributes {stable_mosaic.version = 11 : i64} {
  func.func @_mag_kernel(%arg0: i32, %arg1: memref<16x128xbf16, #tpu.memory_space<vmem>>, %arg2: memref<16x768xf32, #tpu.memory_space<vmem>>, %arg3: memref<128x1536xbf16, #tpu.memory_space<vmem>>, %arg4: memref<768x768xbf16, #tpu.memory_space<vmem>>, %arg5: memref<1x768xf32, #tpu.memory_space<vmem>>, %arg6: memref<1x768xf32, #tpu.memory_space<vmem>>, %arg7: memref<1x768xf32, #tpu.memory_space<vmem>>, %arg8: memref<1x768xf32, #tpu.memory_space<vmem>>, %arg9: memref<16x768xf32, #tpu.memory_space<vmem>>) attributes {dimension_semantics = [#tpu.dimension_semantics<parallel>], iteration_bounds = array<i64: 1>, scalar_prefetch = 0 : i64, scratch_operands = 0 : i64, tpu.core_type = #tpu.core_type<tc>, window_params = [{transform_indices = @transform_0, window_bounds = array<i64: 16, 128>}, {transform_indices = @transform_1, window_bounds = array<i64: 16, 768>}, {pipeline_mode = #tpu.pipeline_mode<synchronous>, transform_indices = @transform_2, window_bounds = array<i64: 128, 1536>}, {pipeline_mode = #tpu.pipeline_mode<synchronous>, transform_indices = @transform_3, window_bounds = array<i64: 768, 768>}, {pipeline_mode = #tpu.pipeline_mode<synchronous>, transform_indices = @transform_4, window_bounds = array<i64: 1, 768>}, {pipeline_mode = #tpu.pipeline_mode<synchronous>, transform_indices = @transform_5, window_bounds = array<i64: 1, 768>}, {pipeline_mode = #tpu.pipeline_mode<synchronous>, transform_indices = @transform_6, window_bounds = array<i64: 1, 768>}, {pipeline_mode = #tpu.pipeline_mode<synchronous>, transform_indices = @transform_7, window_bounds = array<i64: 1, 768>}, {transform_indices = @transform_8, window_bounds = array<i64: 16, 768>}]} {
    %c0 = arith.constant 0 : index
    %c0_0 = arith.constant 0 : index
    %0 = vector.load %arg2[%c0, %c0_0] : memref<16x768xf32, #tpu.memory_space<vmem>>, vector<16x768xf32>
    %1 = arith.truncf %0 : vector<16x768xf32> to vector<16x768xbf16>
    %c0_1 = arith.constant 0 : index
    %c0_2 = arith.constant 0 : index
    %2 = vector.load %arg1[%c0_1, %c0_2] : memref<16x128xbf16, #tpu.memory_space<vmem>>, vector<16x128xbf16>
    %c0_3 = arith.constant 0 : index
    %c0_4 = arith.constant 0 : index
    %3 = vector.load %arg3[%c0_3, %c0_4] : memref<128x1536xbf16, #tpu.memory_space<vmem>>, vector<128x1536xbf16>
    %cst = arith.constant dense<0.000000e+00> : vector<16x1536xf32>
    %4 = tpu.matmul %2, %3, %cst {dimension_numbers = #tpu.dot_dimension_numbers<[1], [0], [0], [1], [0, 0, 1, 1], [], []>} : vector<16x128xbf16>, vector<128x1536xbf16>, vector<16x1536xf32> -> vector<16x1536xf32>
    %5 = vector.extract_strided_slice %4 {offsets = [0, 0], sizes = [16, 768], strides = [1, 1]} : vector<16x1536xf32> to vector<16x768xf32>
    %c0_5 = arith.constant 0 : index
    %c0_6 = arith.constant 0 : index
    %6 = vector.load %arg4[%c0_5, %c0_6] : memref<768x768xbf16, #tpu.memory_space<vmem>>, vector<768x768xbf16>
    %cst_7 = arith.constant dense<0.000000e+00> : vector<16x768xf32>
    %7 = tpu.matmul %1, %6, %cst_7 {dimension_numbers = #tpu.dot_dimension_numbers<[1], [0], [0], [1], [0, 0, 1, 1], [], []>} : vector<16x768xbf16>, vector<768x768xbf16>, vector<16x768xf32> -> vector<16x768xf32>
    %8 = arith.addf %5, %7 : vector<16x768xf32>
    %c0_8 = arith.constant 0 : index
    %c0_9 = arith.constant 0 : index
    %9 = vector.load %arg5[%c0_8, %c0_9] : memref<1x768xf32, #tpu.memory_space<vmem>>, vector<1x768xf32>
    %10 = vector.broadcast %9 : vector<1x768xf32> to vector<16x768xf32>
    %11 = arith.addf %8, %10 : vector<16x768xf32>
    %cst_10 = arith.constant 0.000000e+00 : f32
    %12 = vector.broadcast %cst_10 : f32 to vector<16x768xf32>
    %13 = arith.maximumf %11, %12 : vector<16x768xf32>
    %14 = vector.extract_strided_slice %4 {offsets = [0, 768], sizes = [16, 768], strides = [1, 1]} : vector<16x1536xf32> to vector<16x768xf32>
    %c0_11 = arith.constant 0 : index
    %c0_12 = arith.constant 0 : index
    %15 = vector.load %arg6[%c0_11, %c0_12] : memref<1x768xf32, #tpu.memory_space<vmem>>, vector<1x768xf32>
    %16 = vector.broadcast %15 : vector<1x768xf32> to vector<16x768xf32>
    %17 = arith.addf %14, %16 : vector<16x768xf32>
    %18 = arith.mulf %13, %17 : vector<16x768xf32>
    %19 = arith.mulf %0, %0 : vector<16x768xf32>
    %cst_13 = arith.constant dense<0.000000e+00> : vector<16xf32>
    %20 = vector.multi_reduction <add>, %19, %cst_13 [1] : vector<16x768xf32> to vector<16xf32>
    %21 = vector.shape_cast %20 : vector<16xf32> to vector<16x1xf32>
    %22 = arith.mulf %18, %18 : vector<16x768xf32>
    %cst_14 = arith.constant dense<0.000000e+00> : vector<16xf32>
    %23 = vector.multi_reduction <add>, %22, %cst_14 [1] : vector<16x768xf32> to vector<16xf32>
    %24 = vector.shape_cast %23 : vector<16xf32> to vector<16x1xf32>
    %25 = math.sqrt %24 : vector<16x1xf32>
    %cst_15 = arith.constant 0.000000e+00 : f32
    %26 = vector.broadcast %cst_15 : f32 to vector<16x1xf32>
    %27 = arith.cmpf oeq, %24, %26 : vector<16x1xf32>
    %cst_16 = arith.constant 1.000000e+00 : f32
    %28 = vector.broadcast %cst_16 : f32 to vector<16x1xf32>
    %29 = arith.select %27, %28, %25 : vector<16x1xi1>, vector<16x1xf32>
    %cst_17 = arith.constant 9.99999997E-7 : f32
    %30 = vector.broadcast %cst_17 : f32 to vector<16x1xf32>
    %31 = arith.addf %29, %30 : vector<16x1xf32>
    %32 = tpu.reciprocal %31 {approx = true} : vector<16x1xf32> -> vector<16x1xf32>
    %33 = math.sqrt %21 : vector<16x1xf32>
    %34 = arith.mulf %33, %32 : vector<16x1xf32>
    %cst_18 = arith.constant 5.000000e-01 : f32
    %35 = vector.broadcast %cst_18 : f32 to vector<16x1xf32>
    %36 = arith.mulf %34, %35 : vector<16x1xf32>
    %cst_19 = arith.constant 1.000000e+00 : f32
    %37 = vector.broadcast %cst_19 : f32 to vector<16x1xf32>
    %38 = arith.minimumf %36, %37 : vector<16x1xf32>
    %39 = vector.broadcast %38 : vector<16x1xf32> to vector<16x768xf32>
    %40 = arith.mulf %39, %18 : vector<16x768xf32>
    %41 = arith.addf %40, %0 : vector<16x768xf32>
    %cst_20 = arith.constant dense<0.000000e+00> : vector<16xf32>
    %42 = vector.multi_reduction <add>, %41, %cst_20 [1] : vector<16x768xf32> to vector<16xf32>
    %43 = vector.shape_cast %42 : vector<16xf32> to vector<16x1xf32>
    %44 = arith.mulf %41, %41 : vector<16x768xf32>
    %cst_21 = arith.constant dense<0.000000e+00> : vector<16xf32>
    %45 = vector.multi_reduction <add>, %44, %cst_21 [1] : vector<16x768xf32> to vector<16xf32>
    %46 = vector.shape_cast %45 : vector<16xf32> to vector<16x1xf32>
    %cst_22 = arith.constant 0.00130208337 : f32
    %47 = vector.broadcast %cst_22 : f32 to vector<16x1xf32>
    %48 = arith.mulf %43, %47 : vector<16x1xf32>
    %cst_23 = arith.constant 0.00130208337 : f32
    %49 = vector.broadcast %cst_23 : f32 to vector<16x1xf32>
    %50 = arith.mulf %46, %49 : vector<16x1xf32>
    %51 = arith.mulf %48, %48 : vector<16x1xf32>
    %52 = arith.subf %50, %51 : vector<16x1xf32>
    %53 = vector.broadcast %48 : vector<16x1xf32> to vector<16x768xf32>
    %54 = arith.subf %41, %53 : vector<16x768xf32>
    %cst_24 = arith.constant 9.99999974E-6 : f32
    %55 = vector.broadcast %cst_24 : f32 to vector<16x1xf32>
    %56 = arith.addf %52, %55 : vector<16x1xf32>
    %57 = math.rsqrt %56 : vector<16x1xf32>
    %58 = vector.broadcast %57 : vector<16x1xf32> to vector<16x768xf32>
    %59 = arith.mulf %54, %58 : vector<16x768xf32>
    %c0_25 = arith.constant 0 : index
    %c0_26 = arith.constant 0 : index
    %60 = vector.load %arg7[%c0_25, %c0_26] : memref<1x768xf32, #tpu.memory_space<vmem>>, vector<1x768xf32>
    %61 = vector.broadcast %60 : vector<1x768xf32> to vector<16x768xf32>
    %62 = arith.mulf %59, %61 : vector<16x768xf32>
    %c0_27 = arith.constant 0 : index
    %c0_28 = arith.constant 0 : index
    %63 = vector.load %arg8[%c0_27, %c0_28] : memref<1x768xf32, #tpu.memory_space<vmem>>, vector<1x768xf32>
    %64 = vector.broadcast %63 : vector<1x768xf32> to vector<16x768xf32>
    %65 = arith.addf %62, %64 : vector<16x768xf32>
    %c0_29 = arith.constant 0 : index
    %c0_30 = arith.constant 0 : index
    %66 = vector.load %arg9[%c0_29, %c0_30] : memref<16x768xf32, #tpu.memory_space<vmem>>, vector<16x768xf32>
    tpu.vector_store %arg9[%c0_29, %c0_30], %65 {strides = array<i32>} : memref<16x768xf32, #tpu.memory_space<vmem>>, vector<16x768xf32>,
    return
  }
  func.func @transform_0(%arg0: i32) -> (i32, i32) {
    %c0_i32 = arith.constant 0 : i32
    %c0_i32_0 = arith.constant 0 : i32
    return %arg0, %c0_i32 : i32, i32
  }
  func.func @transform_1(%arg0: i32) -> (i32, i32) {
    %c0_i32 = arith.constant 0 : i32
    %c0_i32_0 = arith.constant 0 : i32
    return %arg0, %c0_i32 : i32, i32
  }
  func.func @transform_2(%arg0: i32) -> (i32, i32) {
    %c0_i32 = arith.constant 0 : i32
    %c0_i32_0 = arith.constant 0 : i32
    %c0_i32_1 = arith.constant 0 : i32
    return %c0_i32, %c0_i32_0 : i32, i32
  }
  func.func @transform_3(%arg0: i32) -> (i32, i32) {
    %c0_i32 = arith.constant 0 : i32
    %c0_i32_0 = arith.constant 0 : i32
    %c0_i32_1 = arith.constant 0 : i32
    return %c0_i32, %c0_i32_0 : i32, i32
  }
  func.func @transform_4(%arg0: i32) -> (i32, i32) {
    %c0_i32 = arith.constant 0 : i32
    %c0_i32_0 = arith.constant 0 : i32
    %c0_i32_1 = arith.constant 0 : i32
    return %c0_i32, %c0_i32_0 : i32, i32
  }
  func.func @transform_5(%arg0: i32) -> (i32, i32) {
    %c0_i32 = arith.constant 0 : i32
    %c0_i32_0 = arith.constant 0 : i32
    %c0_i32_1 = arith.constant 0 : i32
    return %c0_i32, %c0_i32_0 : i32, i32
  }
  func.func @transform_6(%arg0: i32) -> (i32, i32) {
    %c0_i32 = arith.constant 0 : i32
    %c0_i32_0 = arith.constant 0 : i32
    %c0_i32_1 = arith.constant 0 : i32
    return %c0_i32, %c0_i32_0 : i32, i32
  }
  func.func @transform_7(%arg0: i32) -> (i32, i32) {
    %c0_i32 = arith.constant 0 : i32
    %c0_i32_0 = arith.constant 0 : i32
    %c0_i32_1 = arith.constant 0 : i32
    return %c0_i32, %c0_i32_0 : i32, i32
  }
  func.func @transform_8(%arg0: i32) -> (i32, i32) {
    %c0_i32 = arith.constant 0 : i32
    %c0_i32_0 = arith.constant 0 : i32
    return %arg0, %c0_i32 : i32, i32
  }
}

</mosaic_0001>

<llo_original>
// kernel: tpu_custom_call.1
$region0: #{tpu_custom_call.1}
  #allocation0 [shape = 'u32[]', space=smem, size = 0x4, offset = 0x4, fixed_abs, tag = 'smem constant byte address 0x4 - core index']
  #allocation1 [shape = 'u32[144,128]{1,0:T(1,128)}', space=vmem, size = 0x12000, scoped, tag = 'internal scratch']
  %s0 = inlined_call_operand.hbm [shape: bf16[16,128], index: 0, kind: input, shape index: {}]
  %s1 = inlined_call_operand.hbm [shape: f32[16,768], index: 1, kind: input, shape index: {}]
  %s2 = inlined_call_operand.hbm [shape: bf16[128,1536], index: 2, kind: input, shape index: {}]
  %s3 = inlined_call_operand.hbm [shape: bf16[768,768], index: 3, kind: input, shape index: {}]
  %s4 = inlined_call_operand.hbm [shape: f32[1,768], index: 4, kind: input, shape index: {}]
  %s5 = inlined_call_operand.hbm [shape: f32[1,768], index: 5, kind: input, shape index: {}]
  %s6 = inlined_call_operand.hbm [shape: f32[1,768], index: 6, kind: input, shape index: {}]
  %s7 = inlined_call_operand.hbm [shape: f32[1,768], index: 7, kind: input, shape index: {}]
  %s8 = inlined_call_operand.hbm [shape: f32[16,768], index: 8, kind: output, shape index: {}]
  %s9 = sld [smem:[#allocation0]]
  $region74: #{tpu_custom_call.1} parent=0
    _
  %s11 = ssub.s32 1, %s9
  %s12 = scalar_select 0, %s11, %s9
  $region1: #{tpu_custom_call.1} parent=0
    #allocation2 [shape = 'u8[4096]{0}', space=vmem, size = 0x1000, scoped, tag = 'input window, operand 0, single buffered']
    #allocation3 [shape = 's32[1]{0}', space=sflag, size = 0x4, scoped, tag = 'scoped memory for tpu_custom_call.1']
    #allocation4 [shape = 's32[1]{0}', space=sflag, size = 0x4, scoped, tag = 'scoped memory for tpu_custom_call.1']
    #allocation5 [shape = 'u8[49152]{0}', space=vmem, size = 0xc000, scoped, tag = 'input window, operand 1, single buffered']
    #allocation6 [shape = 's32[1]{0}', space=sflag, size = 0x4, scoped, tag = 'scoped memory for tpu_custom_call.1']
    #allocation7 [shape = 'u8[393216]{0}', space=vmem, size = 0x60000, scoped, tag = 'input window, operand 2, single buffered']
    #allocation8 [shape = 'u8[1179648]{0}', space=vmem, size = 0x120000, scoped, tag = 'input window, operand 3, single buffered']
    #allocation9 [shape = 's32[1]{0}', space=sflag, size = 0x4, scoped, tag = 'scoped memory for tpu_custom_call.1']
    #allocation10 [shape = 'u8[3072]{0}', space=vmem, size = 0xc00, scoped, tag = 'input window, operand 4, single buffered']
    #allocation11 [shape = 'u8[3072]{0}', space=vmem, size = 0xc00, scoped, tag = 'input window, operand 5, single buffered']
    #allocation12 [shape = 's32[1]{0}', space=sflag, size = 0x4, scoped, tag = 'scoped memory for tpu_custom_call.1']
    #allocation13 [shape = 'u8[3072]{0}', space=vmem, size = 0xc00, scoped, tag = 'input window, operand 6, single buffered']
    #allocation14 [shape = 'u8[3072]{0}', space=vmem, size = 0xc00, scoped, tag = 'input window, operand 7, single buffered']
    #allocation15 [shape = 's32[1]{0}', space=sflag, size = 0x4, scoped, tag = 'scoped memory for tpu_custom_call.1']
    #allocation16 [shape = 'u8[49152]{0}', space=vmem, size = 0xc000, scoped, tag = 'output window, operand 0, single buffered']
    %13 = vsyncpa [#allocation3], 0
    %14 = vsyncpa [#allocation6], 0
    %15 = vsyncpa [#allocation9], 0
    %16 = vsyncpa [#allocation12], 0
    %17 = vsyncpa [#allocation15], 0
    %18 = vsyncpa [#allocation4], 0
    // Predicated region
    $region2: #{tpu_custom_call.1} parent=1 // pred_check
      _
    $region3: #{tpu_custom_call.1} parent=1 // pred_check_branch
      %20 = sbr.rel (0) target = $region5
    $region4: #{tpu_custom_call.1} parent=1 // pred_region
      %s22 = ssub.s32 128, 128
      %23 = vsyncadd [#allocation3], %s22
      %s24 = sshll.u32 [#allocation2], 4
      %s25 = int_to_ptr.vmem [resolvable:$true] %s24
      %30 = dma.hbm_to_vmem [thread:$0]  %s0, 128, %s25, [#allocation3], 64, 64, 4
    $region5: #{tpu_custom_call.1} parent=1 // pred_fallthru
      _
    // Predicated region
    $region6: #{tpu_custom_call.1} parent=1 // pred_check
      _
    $region7: #{tpu_custom_call.1} parent=1 // pred_check_branch
      %32 = sbr.rel (0) target = $region9
    $region8: #{tpu_custom_call.1} parent=1 // pred_region
      %s34 = ssub.s32 1536, 1536
      %35 = vsyncadd [#allocation6], %s34
      %s36 = sshll.u32 [#allocation5], 4
      %s37 = int_to_ptr.vmem [resolvable:$true] %s36
      %42 = dma.hbm_to_vmem [thread:$0]  %s1, 1536, %s37, [#allocation6], 768, 768, 48
    $region9: #{tpu_custom_call.1} parent=1 // pred_fallthru
      _
    // Predicated region
    $region10: #{tpu_custom_call.1} parent=1 // pred_check
      _
    $region11: #{tpu_custom_call.1} parent=1 // pred_check_branch
      %44 = sbr.rel (0) target = $region13
    $region12: #{tpu_custom_call.1} parent=1 // pred_region
      %s46 = ssub.s32 12288, 12288
      %47 = vsyncadd [#allocation6], %s46
      %s48 = sshll.u32 [#allocation7], 4
      %s49 = int_to_ptr.vmem [resolvable:$true] %s48
      %54 = dma.hbm_to_vmem [thread:$0]  %s2, 12288, %s49, [#allocation6], 768, 768, 48
    $region13: #{tpu_custom_call.1} parent=1 // pred_fallthru
      _
    // Predicated region
    $region14: #{tpu_custom_call.1} parent=1 // pred_check
      _
    $region15: #{tpu_custom_call.1} parent=1 // pred_check_branch
      %56 = sbr.rel (0) target = $region17
    $region16: #{tpu_custom_call.1} parent=1 // pred_region
      %s58 = ssub.s32 36864, 36864
      %59 = vsyncadd [#allocation9], %s58
      %s60 = sshll.u32 [#allocation8], 4
      %s61 = int_to_ptr.vmem [resolvable:$true] %s60
      %66 = dma.hbm_to_vmem [thread:$0]  %s3, 36864, %s61, [#allocation9], 384, 384, 24
    $region17: #{tpu_custom_call.1} parent=1 // pred_fallthru
      _
    // Predicated region
    $region18: #{tpu_custom_call.1} parent=1 // pred_check
      _
    $region19: #{tpu_custom_call.1} parent=1 // pred_check_branch
      %68 = sbr.rel (0) target = $region21
    $region20: #{tpu_custom_call.1} parent=1 // pred_region
      %s70 = ssub.s32 96, 96
      %71 = vsyncadd [#allocation9], %s70
      %s73 = sshll.u32 [#allocation10], 4
      %s74 = int_to_ptr.vmem [resolvable:$true] %s73
      %76 = dma.hbm_to_vmem [thread:$0]  %s4, 96, %s74, [#allocation9]
    $region21: #{tpu_custom_call.1} parent=1 // pred_fallthru
      _
    // Predicated region
    $region22: #{tpu_custom_call.1} parent=1 // pred_check
      _
    $region23: #{tpu_custom_call.1} parent=1 // pred_check_branch
      %78 = sbr.rel (0) target = $region25
    $region24: #{tpu_custom_call.1} parent=1 // pred_region
      %s80 = ssub.s32 96, 96
      %81 = vsyncadd [#allocation12], %s80
      %s83 = sshll.u32 [#allocation11], 4
      %s84 = int_to_ptr.vmem [resolvable:$true] %s83
      %86 = dma.hbm_to_vmem [thread:$0]  %s5, 96, %s84, [#allocation12]
    $region25: #{tpu_custom_call.1} parent=1 // pred_fallthru
      _
    // Predicated region
    $region26: #{tpu_custom_call.1} parent=1 // pred_check
      _
    $region27: #{tpu_custom_call.1} parent=1 // pred_check_branch
      %88 = sbr.rel (0) target = $region29
    $region28: #{tpu_custom_call.1} parent=1 // pred_region
      %s90 = ssub.s32 96, 96
      %91 = vsyncadd [#allocation12], %s90
      %s93 = sshll.u32 [#allocation13], 4
      %s94 = int_to_ptr.vmem [resolvable:$true] %s93
      %96 = dma.hbm_to_vmem [thread:$0]  %s6, 96, %s94, [#allocation12]
    $region29: #{tpu_custom_call.1} parent=1 // pred_fallthru
      _
    // Predicated region
    $region30: #{tpu_custom_call.1} parent=1 // pred_check
      _
    $region31: #{tpu_custom_call.1} parent=1 // pred_check_branch
      %98 = sbr.rel (0) target = $region33
    $region32: #{tpu_custom_call.1} parent=1 // pred_region
      %s100 = ssub.s32 96, 96
      %101 = vsyncadd [#allocation15], %s100
      %s103 = sshll.u32 [#allocation14], 4
      %s104 = int_to_ptr.vmem [resolvable:$true] %s103
      %106 = dma.hbm_to_vmem [thread:$0]  %s7, 96, %s104, [#allocation15]
    $region33: #{tpu_custom_call.1} parent=1 // pred_fallthru
      _
    // Predicated region
    $region34: #{tpu_custom_call.1} parent=1 // pred_check
      _
    $region35: #{tpu_custom_call.1} parent=1 // pred_check_branch
      %108 = sbr.rel (0) target = $region37
    $region36: #{tpu_custom_call.1} parent=1 // pred_region
      %109 = dma.done [#allocation3], 128
    $region37: #{tpu_custom_call.1} parent=1 // pred_fallthru
      _
    // Predicated region
    $region38: #{tpu_custom_call.1} parent=1 // pred_check
      _
    $region39: #{tpu_custom_call.1} parent=1 // pred_check_branch
      %111 = sbr.rel (0) target = $region41
    $region40: #{tpu_custom_call.1} parent=1 // pred_region
      %112 = dma.done [#allocation6], 1536
    $region41: #{tpu_custom_call.1} parent=1 // pred_fallthru
      _
    // Predicated region
    $region42: #{tpu_custom_call.1} parent=1 // pred_check
      _
    $region43: #{tpu_custom_call.1} parent=1 // pred_check_branch
      %114 = sbr.rel (0) target = $region45
    $region44: #{tpu_custom_call.1} parent=1 // pred_region
      %115 = dma.done [#allocation6], 12288
    $region45: #{tpu_custom_call.1} parent=1 // pred_fallthru
      _
    // Predicated region
    $region46: #{tpu_custom_call.1} parent=1 // pred_check
      _
    $region47: #{tpu_custom_call.1} parent=1 // pred_check_branch
      %117 = sbr.rel (0) target = $region49
    $region48: #{tpu_custom_call.1} parent=1 // pred_region
      %118 = dma.done [#allocation9], 36864
    $region49: #{tpu_custom_call.1} parent=1 // pred_fallthru
      _
    // Predicated region
    $region50: #{tpu_custom_call.1} parent=1 // pred_check
      _
    $region51: #{tpu_custom_call.1} parent=1 // pred_check_branch
      %120 = sbr.rel (0) target = $region53
    $region52: #{tpu_custom_call.1} parent=1 // pred_region
      %121 = dma.done [#allocation9], 96
    $region53: #{tpu_custom_call.1} parent=1 // pred_fallthru
      _
    // Predicated region
    $region54: #{tpu_custom_call.1} parent=1 // pred_check
      _
    $region55: #{tpu_custom_call.1} parent=1 // pred_check_branch
      %123 = sbr.rel (0) target = $region57
    $region56: #{tpu_custom_call.1} parent=1 // pred_region
      %124 = dma.done [#allocation12], 96
    $region57: #{tpu_custom_call.1} parent=1 // pred_fallthru
      _
    // Predicated region
    $region58: #{tpu_custom_call.1} parent=1 // pred_check
      _
    $region59: #{tpu_custom_call.1} parent=1 // pred_check_branch
      %126 = sbr.rel (0) target = $region61
    $region60: #{tpu_custom_call.1} parent=1 // pred_region
      %127 = dma.done [#allocation12], 96
    $region61: #{tpu_custom_call.1} parent=1 // pred_fallthru
      _
    // Predicated region
    $region62: #{tpu_custom_call.1} parent=1 // pred_check
      _
    $region63: #{tpu_custom_call.1} parent=1 // pred_check_branch
      %129 = sbr.rel (0) target = $region65
    $region64: #{tpu_custom_call.1} parent=1 // pred_region
      %130 = dma.done [#allocation15], 96
    $region65: #{tpu_custom_call.1} parent=1 // pred_fallthru
      _
    %v132 = vld [vmem:[#allocation5] sm:$0xff]
    %v133 = vld [vmem:[#allocation5 + $0x8] sm:$0xff]
    %v134 = vld [vmem:[#allocation5 + $0x10] sm:$0xff]
    %v135 = vld [vmem:[#allocation5 + $0x18] sm:$0xff]
    %v136 = vld [vmem:[#allocation5 + $0x20] sm:$0xff]
    %v137 = vld [vmem:[#allocation5 + $0x28] sm:$0xff]
    %v138 = vld [vmem:[#allocation5 + $0x30] sm:$0xff]
    %v139 = vld [vmem:[#allocation5 + $0x38] sm:$0xff]
    %v140 = vld [vmem:[#allocation5 + $0x40] sm:$0xff]
    %v141 = vld [vmem:[#allocation5 + $0x48] sm:$0xff]
    %v142 = vld [vmem:[#allocation5 + $0x50] sm:$0xff]
    %v143 = vld [vmem:[#allocation5 + $0x58] sm:$0xff]
    %v144 = vpack.c.bf16 %v138, %v132
    %v145 = vpack.c.bf16 %v139, %v133
    %v146 = vpack.c.bf16 %v140, %v134
    %v147 = vpack.c.bf16 %v141, %v135
    %v148 = vpack.c.bf16 %v142, %v136
    %v149 = vpack.c.bf16 %v143, %v137
    %v150 = vld [vmem:[#allocation2] sm:$0xf]
    %v151 = vld [vmem:[#allocation2 + $0x4] sm:$0xf]
    %v152 = vld [vmem:[#allocation7] sm:$0xff]
    %v153 = vld [vmem:[#allocation7 + $0x8] sm:$0xff]
    %v154 = vld [vmem:[#allocation7 + $0x10] sm:$0xff]
    %v155 = vld [vmem:[#allocation7 + $0x18] sm:$0xff]
    %v156 = vld [vmem:[#allocation7 + $0x20] sm:$0xff]
    %v157 = vld [vmem:[#allocation7 + $0x28] sm:$0xff]
    %v158 = vld [vmem:[#allocation7 + $0x30] sm:$0xff]
    %v159 = vld [vmem:[#allocation7 + $0x38] sm:$0xff]
    %v160 = vld [vmem:[#allocation7 + $0x40] sm:$0xff]
    %v161 = vld [vmem:[#allocation7 + $0x48] sm:$0xff]
    %v162 = vld [vmem:[#allocation7 + $0x50] sm:$0xff]
    %v163 = vld [vmem:[#allocation7 + $0x58] sm:$0xff]
    %v164 = vld [vmem:[#allocation7 + $0x60] sm:$0xff]
    %v165 = vld [vmem:[#allocation7 + $0x68] sm:$0xff]
    %v166 = vld [vmem:[#allocation7 + $0x70] sm:$0xff]
    %v167 = vld [vmem:[#allocation7 + $0x78] sm:$0xff]
    %v168 = vld [vmem:[#allocation7 + $0x80] sm:$0xff]
    %v169 = vld [vmem:[#allocation7 + $0x88] sm:$0xff]
    %v170 = vld [vmem:[#allocation7 + $0x90] sm:$0xff]
    %v171 = vld [vmem:[#allocation7 + $0x98] sm:$0xff]
    %v172 = vld [vmem:[#allocation7 + $0xa0] sm:$0xff]
    %v173 = vld [vmem:[#allocation7 + $0xa8] sm:$0xff]
    %v174 = vld [vmem:[#allocation7 + $0xb0] sm:$0xff]
    %v175 = vld [vmem:[#allocation7 + $0xb8] sm:$0xff]
    %v176 = vld [vmem:[#allocation7 + $0xc0] sm:$0xff]
    %v177 = vld [vmem:[#allocation7 + $0xc8] sm:$0xff]
    %v178 = vld [vmem:[#allocation7 + $0xd0] sm:$0xff]
    %v179 = vld [vmem:[#allocation7 + $0xd8] sm:$0xff]
    %v180 = vld [vmem:[#allocation7 + $0xe0] sm:$0xff]
    %v181 = vld [vmem:[#allocation7 + $0xe8] sm:$0xff]
    %v182 = vld [vmem:[#allocation7 + $0xf0] sm:$0xff]
    %v183 = vld [vmem:[#allocation7 + $0xf8] sm:$0xff]
    %v184 = vld [vmem:[#allocation7 + $0x100] sm:$0xff]
    %v185 = vld [vmem:[#allocation7 + $0x108] sm:$0xff]
    %v186 = vld [vmem:[#allocation7 + $0x110] sm:$0xff]
    %v187 = vld [vmem:[#allocation7 + $0x118] sm:$0xff]
    %v188 = vld [vmem:[#allocation7 + $0x120] sm:$0xff]
    %v189 = vld [vmem:[#allocation7 + $0x128] sm:$0xff]
    %v190 = vld [vmem:[#allocation7 + $0x130] sm:$0xff]
    %v191 = vld [vmem:[#allocation7 + $0x138] sm:$0xff]
    %v192 = vld [vmem:[#allocation7 + $0x140] sm:$0xff]
    %v193 = vld [vmem:[#allocation7 + $0x148] sm:$0xff]
    %v194 = vld [vmem:[#allocation7 + $0x150] sm:$0xff]
    %v195 = vld [vmem:[#allocation7 + $0x158] sm:$0xff]
    %v196 = vld [vmem:[#allocation7 + $0x160] sm:$0xff]
    %v197 = vld [vmem:[#allocation7 + $0x168] sm:$0xff]
    %v198 = vld [vmem:[#allocation7 + $0x170] sm:$0xff]
    %v199 = vld [vmem:[#allocation7 + $0x178] sm:$0xff]
    %v200 = vld [vmem:[#allocation7 + $0x180] sm:$0xff]
    %v201 = vld [vmem:[#allocation7 + $0x188] sm:$0xff]
    %v202 = vld [vmem:[#allocation7 + $0x190] sm:$0xff]
    %v203 = vld [vmem:[#allocation7 + $0x198] sm:$0xff]
    %v204 = vld [vmem:[#allocation7 + $0x1a0] sm:$0xff]
    %v205 = vld [vmem:[#allocation7 + $0x1a8] sm:$0xff]
    %v206 = vld [vmem:[#allocation7 + $0x1b0] sm:$0xff]
    %v207 = vld [vmem:[#allocation7 + $0x1b8] sm:$0xff]
    %v208 = vld [vmem:[#allocation7 + $0x1c0] sm:$0xff]
    %v209 = vld [vmem:[#allocation7 + $0x1c8] sm:$0xff]
    %v210 = vld [vmem:[#allocation7 + $0x1d0] sm:$0xff]
    %v211 = vld [vmem:[#allocation7 + $0x1d8] sm:$0xff]
    %v212 = vld [vmem:[#allocation7 + $0x1e0] sm:$0xff]
    %v213 = vld [vmem:[#allocation7 + $0x1e8] sm:$0xff]
    %v214 = vld [vmem:[#allocation7 + $0x1f0] sm:$0xff]
    %v215 = vld [vmem:[#allocation7 + $0x1f8] sm:$0xff]
    %v216 = vld [vmem:[#allocation7 + $0x200] sm:$0xff]
    %v217 = vld [vmem:[#allocation7 + $0x208] sm:$0xff]
    %v218 = vld [vmem:[#allocation7 + $0x210] sm:$0xff]
    %v219 = vld [vmem:[#allocation7 + $0x218] sm:$0xff]
    %v220 = vld [vmem:[#allocation7 + $0x220] sm:$0xff]
    %v221 = vld [vmem:[#allocation7 + $0x228] sm:$0xff]
    %v222 = vld [vmem:[#allocation7 + $0x230] sm:$0xff]
    %v223 = vld [vmem:[#allocation7 + $0x238] sm:$0xff]
    %v224 = vld [vmem:[#allocation7 + $0x240] sm:$0xff]
    %v225 = vld [vmem:[#allocation7 + $0x248] sm:$0xff]
    %v226 = vld [vmem:[#allocation7 + $0x250] sm:$0xff]
    %v227 = vld [vmem:[#allocation7 + $0x258] sm:$0xff]
    %v228 = vld [vmem:[#allocation7 + $0x260] sm:$0xff]
    %v229 = vld [vmem:[#allocation7 + $0x268] sm:$0xff]
    %v230 = vld [vmem:[#allocation7 + $0x270] sm:$0xff]
    %v231 = vld [vmem:[#allocation7 + $0x278] sm:$0xff]
    %v232 = vld [vmem:[#allocation7 + $0x280] sm:$0xff]
    %v233 = vld [vmem:[#allocation7 + $0x288] sm:$0xff]
    %v234 = vld [vmem:[#allocation7 + $0x290] sm:$0xff]
    %v235 = vld [vmem:[#allocation7 + $0x298] sm:$0xff]
    %v236 = vld [vmem:[#allocation7 + $0x2a0] sm:$0xff]
    %v237 = vld [vmem:[#allocation7 + $0x2a8] sm:$0xff]
    %v238 = vld [vmem:[#allocation7 + $0x2b0] sm:$0xff]
    %v239 = vld [vmem:[#allocation7 + $0x2b8] sm:$0xff]
    %v240 = vld [vmem:[#allocation7 + $0x2c0] sm:$0xff]
    %v241 = vld [vmem:[#allocation7 + $0x2c8] sm:$0xff]
    %v242 = vld [vmem:[#allocation7 + $0x2d0] sm:$0xff]
    %v243 = vld [vmem:[#allocation7 + $0x2d8] sm:$0xff]
    %v244 = vld [vmem:[#allocation7 + $0x2e0] sm:$0xff]
    %v245 = vld [vmem:[#allocation7 + $0x2e8] sm:$0xff]
    %v246 = vld [vmem:[#allocation7 + $0x2f0] sm:$0xff]
    %v247 = vld [vmem:[#allocation7 + $0x2f8] sm:$0xff]
    %v250 = vunpack.c.l.b16 %v150
    %v251 = vunpack.c.l.b16 %v151
    %v252 = vpack.c.b16 %v251, %v250
    %v350 = vunpack.c.l.b16 %v152
    %v351 = vunpack.c.h.b16 %v152
    %v352 = vunpack.c.l.b16 %v153
    %v353 = vunpack.c.h.b16 %v153
    %v354 = vunpack.c.l.b16 %v154
    %v355 = vunpack.c.h.b16 %v154
    %v356 = vunpack.c.l.b16 %v155
    %v357 = vunpack.c.h.b16 %v155
    %v358 = vunpack.c.l.b16 %v156
    %v359 = vunpack.c.h.b16 %v156
    %v360 = vunpack.c.l.b16 %v157
    %v361 = vunpack.c.h.b16 %v157
    %v362 = vunpack.c.l.b16 %v158
    %v363 = vunpack.c.h.b16 %v158
    %v364 = vunpack.c.l.b16 %v159
    %v365 = vunpack.c.h.b16 %v159
    %v366 = vunpack.c.l.b16 %v160
    %v367 = vunpack.c.h.b16 %v160
    %v368 = vunpack.c.l.b16 %v161
    %v369 = vunpack.c.h.b16 %v161
    %v370 = vunpack.c.l.b16 %v162
    %v371 = vunpack.c.h.b16 %v162
    %v372 = vunpack.c.l.b16 %v163
    %v373 = vunpack.c.h.b16 %v163
    %v374 = vunpack.c.l.b16 %v164
    %v375 = vunpack.c.h.b16 %v164
    %v376 = vunpack.c.l.b16 %v165
    %v377 = vunpack.c.h.b16 %v165
    %v378 = vunpack.c.l.b16 %v166
    %v379 = vunpack.c.h.b16 %v166
    %v380 = vunpack.c.l.b16 %v167
    %v381 = vunpack.c.h.b16 %v167
    %v382 = vunpack.c.l.b16 %v168
    %v383 = vunpack.c.h.b16 %v168
    %v384 = vunpack.c.l.b16 %v169
    %v385 = vunpack.c.h.b16 %v169
    %v386 = vunpack.c.l.b16 %v170
    %v387 = vunpack.c.h.b16 %v170
    %v388 = vunpack.c.l.b16 %v171
    %v389 = vunpack.c.h.b16 %v171
    %v390 = vunpack.c.l.b16 %v172
    %v391 = vunpack.c.h.b16 %v172
    %v392 = vunpack.c.l.b16 %v173
    %v393 = vunpack.c.h.b16 %v173
    %v394 = vunpack.c.l.b16 %v174
    %v395 = vunpack.c.h.b16 %v174
    %v396 = vunpack.c.l.b16 %v175
    %v397 = vunpack.c.h.b16 %v175
    %v398 = vunpack.c.l.b16 %v176
    %v399 = vunpack.c.h.b16 %v176
    %v400 = vunpack.c.l.b16 %v177
    %v401 = vunpack.c.h.b16 %v177
    %v402 = vunpack.c.l.b16 %v178
    %v403 = vunpack.c.h.b16 %v178
    %v404 = vunpack.c.l.b16 %v179
    %v405 = vunpack.c.h.b16 %v179
    %v406 = vunpack.c.l.b16 %v180
    %v407 = vunpack.c.h.b16 %v180
    %v408 = vunpack.c.l.b16 %v181
    %v409 = vunpack.c.h.b16 %v181
    %v410 = vunpack.c.l.b16 %v182
    %v411 = vunpack.c.h.b16 %v182
    %v412 = vunpack.c.l.b16 %v183
    %v413 = vunpack.c.h.b16 %v183
    %v414 = vunpack.c.l.b16 %v184
    %v415 = vunpack.c.h.b16 %v184
    %v416 = vunpack.c.l.b16 %v185
    %v417 = vunpack.c.h.b16 %v185
    %v418 = vunpack.c.l.b16 %v186
    %v419 = vunpack.c.h.b16 %v186
    %v420 = vunpack.c.l.b16 %v187
    %v421 = vunpack.c.h.b16 %v187
    %v422 = vunpack.c.l.b16 %v188
    %v423 = vunpack.c.h.b16 %v188
    %v424 = vunpack.c.l.b16 %v189
    %v425 = vunpack.c.h.b16 %v189
    %v426 = vunpack.c.l.b16 %v190
    %v427 = vunpack.c.h.b16 %v190
    %v428 = vunpack.c.l.b16 %v191
    %v429 = vunpack.c.h.b16 %v191
    %v430 = vunpack.c.l.b16 %v192
    %v431 = vunpack.c.h.b16 %v192
    %v432 = vunpack.c.l.b16 %v193
    %v433 = vunpack.c.h.b16 %v193
    %v434 = vunpack.c.l.b16 %v194
    %v435 = vunpack.c.h.b16 %v194
    %v436 = vunpack.c.l.b16 %v195
    %v437 = vunpack.c.h.b16 %v195
    %v438 = vunpack.c.l.b16 %v196
    %v439 = vunpack.c.h.b16 %v196
    %v440 = vunpack.c.l.b16 %v197
    %v441 = vunpack.c.h.b16 %v197
    %v442 = vunpack.c.l.b16 %v198
    %v443 = vunpack.c.h.b16 %v198
    %v444 = vunpack.c.l.b16 %v199
    %v445 = vunpack.c.h.b16 %v199
    %v446 = vunpack.c.l.b16 %v200
    %v447 = vunpack.c.h.b16 %v200
    %v448 = vunpack.c.l.b16 %v201
    %v449 = vunpack.c.h.b16 %v201
    %v450 = vunpack.c.l.b16 %v202
    %v451 = vunpack.c.h.b16 %v202
    %v452 = vunpack.c.l.b16 %v203
    %v453 = vunpack.c.h.b16 %v203
    %v454 = vunpack.c.l.b16 %v204
    %v455 = vunpack.c.h.b16 %v204
    %v456 = vunpack.c.l.b16 %v205
    %v457 = vunpack.c.h.b16 %v205
    %v458 = vunpack.c.l.b16 %v206
    %v459 = vunpack.c.h.b16 %v206
    %v460 = vunpack.c.l.b16 %v207
    %v461 = vunpack.c.h.b16 %v207
    %v462 = vunpack.c.l.b16 %v208
    %v463 = vunpack.c.h.b16 %v208
    %v464 = vunpack.c.l.b16 %v209
    %v465 = vunpack.c.h.b16 %v209
    %v466 = vunpack.c.l.b16 %v210
    %v467 = vunpack.c.h.b16 %v210
    %v468 = vunpack.c.l.b16 %v211
    %v469 = vunpack.c.h.b16 %v211
    %v470 = vunpack.c.l.b16 %v212
    %v471 = vunpack.c.h.b16 %v212
    %v472 = vunpack.c.l.b16 %v213
    %v473 = vunpack.c.h.b16 %v213
    %v474 = vunpack.c.l.b16 %v214
    %v475 = vunpack.c.h.b16 %v214
    %v476 = vunpack.c.l.b16 %v215
    %v477 = vunpack.c.h.b16 %v215
    %v478 = vunpack.c.l.b16 %v216
    %v479 = vunpack.c.h.b16 %v216
    %v480 = vunpack.c.l.b16 %v217
    %v481 = vunpack.c.h.b16 %v217
    %v482 = vunpack.c.l.b16 %v218
    %v483 = vunpack.c.h.b16 %v218
    %v484 = vunpack.c.l.b16 %v219
    %v485 = vunpack.c.h.b16 %v219
    %v486 = vunpack.c.l.b16 %v220
    %v487 = vunpack.c.h.b16 %v220
    %v488 = vunpack.c.l.b16 %v221
    %v489 = vunpack.c.h.b16 %v221
    %v490 = vunpack.c.l.b16 %v222
    %v491 = vunpack.c.h.b16 %v222
    %v492 = vunpack.c.l.b16 %v223
    %v493 = vunpack.c.h.b16 %v223
    %v494 = vunpack.c.l.b16 %v224
    %v495 = vunpack.c.h.b16 %v224
    %v496 = vunpack.c.l.b16 %v225
    %v497 = vunpack.c.h.b16 %v225
    %v498 = vunpack.c.l.b16 %v226
    %v499 = vunpack.c.h.b16 %v226
    %v500 = vunpack.c.l.b16 %v227
    %v501 = vunpack.c.h.b16 %v227
    %v502 = vunpack.c.l.b16 %v228
    %v503 = vunpack.c.h.b16 %v228
    %v504 = vunpack.c.l.b16 %v229
    %v505 = vunpack.c.h.b16 %v229
    %v506 = vunpack.c.l.b16 %v230
    %v507 = vunpack.c.h.b16 %v230
    %v508 = vunpack.c.l.b16 %v231
    %v509 = vunpack.c.h.b16 %v231
    %v510 = vunpack.c.l.b16 %v232
    %v511 = vunpack.c.h.b16 %v232
    %v512 = vunpack.c.l.b16 %v233
    %v513 = vunpack.c.h.b16 %v233
    %v514 = vunpack.c.l.b16 %v234
    %v515 = vunpack.c.h.b16 %v234
    %v516 = vunpack.c.l.b16 %v235
    %v517 = vunpack.c.h.b16 %v235
    %v518 = vunpack.c.l.b16 %v236
    %v519 = vunpack.c.h.b16 %v236
    %v520 = vunpack.c.l.b16 %v237
    %v521 = vunpack.c.h.b16 %v237
    %v522 = vunpack.c.l.b16 %v238
    %v523 = vunpack.c.h.b16 %v238
    %v524 = vunpack.c.l.b16 %v239
    %v525 = vunpack.c.h.b16 %v239
    %v526 = vunpack.c.l.b16 %v240
    %v527 = vunpack.c.h.b16 %v240
    %v528 = vunpack.c.l.b16 %v241
    %v529 = vunpack.c.h.b16 %v241
    %v530 = vunpack.c.l.b16 %v242
    %v531 = vunpack.c.h.b16 %v242
    %v532 = vunpack.c.l.b16 %v243
    %v533 = vunpack.c.h.b16 %v243
    %v534 = vunpack.c.l.b16 %v244
    %v535 = vunpack.c.h.b16 %v244
    %v536 = vunpack.c.l.b16 %v245
    %v537 = vunpack.c.h.b16 %v245
    %v538 = vunpack.c.l.b16 %v246
    %v539 = vunpack.c.h.b16 %v246
    %v540 = vunpack.c.l.b16 %v247
    %v541 = vunpack.c.h.b16 %v247
    %v542 = vpack.c.b16 %v362, %v350
    %v543 = vpack.c.b16 %v363, %v351
    %v544 = vpack.c.b16 %v364, %v352
    %v545 = vpack.c.b16 %v365, %v353
    %v546 = vpack.c.b16 %v366, %v354
    %v547 = vpack.c.b16 %v367, %v355
    %v548 = vpack.c.b16 %v368, %v356
    %v549 = vpack.c.b16 %v369, %v357
    %v550 = vpack.c.b16 %v370, %v358
    %v551 = vpack.c.b16 %v371, %v359
    %v552 = vpack.c.b16 %v372, %v360
    %v553 = vpack.c.b16 %v373, %v361
    %v554 = vpack.c.b16 %v386, %v374
    %v555 = vpack.c.b16 %v387, %v375
    %v556 = vpack.c.b16 %v388, %v376
    %v557 = vpack.c.b16 %v389, %v377
    %v558 = vpack.c.b16 %v390, %v378
    %v559 = vpack.c.b16 %v391, %v379
    %v560 = vpack.c.b16 %v392, %v380
    %v561 = vpack.c.b16 %v393, %v381
    %v562 = vpack.c.b16 %v394, %v382
    %v563 = vpack.c.b16 %v395, %v383
    %v564 = vpack.c.b16 %v396, %v384
    %v565 = vpack.c.b16 %v397, %v385
    %v566 = vpack.c.b16 %v410, %v398
    %v567 = vpack.c.b16 %v411, %v399
    %v568 = vpack.c.b16 %v412, %v400
    %v569 = vpack.c.b16 %v413, %v401
    %v570 = vpack.c.b16 %v414, %v402
    %v571 = vpack.c.b16 %v415, %v403
    %v572 = vpack.c.b16 %v416, %v404
    %v573 = vpack.c.b16 %v417, %v405
    %v574 = vpack.c.b16 %v418, %v406
    %v575 = vpack.c.b16 %v419, %v407
    %v576 = vpack.c.b16 %v420, %v408
    %v577 = vpack.c.b16 %v421, %v409
    %v578 = vpack.c.b16 %v434, %v422
    %v579 = vpack.c.b16 %v435, %v423
    %v580 = vpack.c.b16 %v436, %v424
    %v581 = vpack.c.b16 %v437, %v425
    %v582 = vpack.c.b16 %v438, %v426
    %v583 = vpack.c.b16 %v439, %v427
    %v584 = vpack.c.b16 %v440, %v428
    %v585 = vpack.c.b16 %v441, %v429
    %v586 = vpack.c.b16 %v442, %v430
    %v587 = vpack.c.b16 %v443, %v431
    %v588 = vpack.c.b16 %v444, %v432
    %v589 = vpack.c.b16 %v445, %v433
    %v590 = vpack.c.b16 %v458, %v446
    %v591 = vpack.c.b16 %v459, %v447
    %v592 = vpack.c.b16 %v460, %v448
    %v593 = vpack.c.b16 %v461, %v449
    %v594 = vpack.c.b16 %v462, %v450
    %v595 = vpack.c.b16 %v463, %v451
    %v596 = vpack.c.b16 %v464, %v452
    %v597 = vpack.c.b16 %v465, %v453
    %v598 = vpack.c.b16 %v466, %v454
    %v599 = vpack.c.b16 %v467, %v455
    %v600 = vpack.c.b16 %v468, %v456
    %v601 = vpack.c.b16 %v469, %v457
    %v602 = vpack.c.b16 %v482, %v470
    %v603 = vpack.c.b16 %v483, %v471
    %v604 = vpack.c.b16 %v484, %v472
    %v605 = vpack.c.b16 %v485, %v473
    %v606 = vpack.c.b16 %v486, %v474
    %v607 = vpack.c.b16 %v487, %v475
    %v608 = vpack.c.b16 %v488, %v476
    %v609 = vpack.c.b16 %v489, %v477
    %v610 = vpack.c.b16 %v490, %v478
    %v611 = vpack.c.b16 %v491, %v479
    %v612 = vpack.c.b16 %v492, %v480
    %v613 = vpack.c.b16 %v493, %v481
    %v614 = vpack.c.b16 %v506, %v494
    %v615 = vpack.c.b16 %v507, %v495
    %v616 = vpack.c.b16 %v508, %v496
    %v617 = vpack.c.b16 %v509, %v497
    %v618 = vpack.c.b16 %v510, %v498
    %v619 = vpack.c.b16 %v511, %v499
    %v620 = vpack.c.b16 %v512, %v500
    %v621 = vpack.c.b16 %v513, %v501
    %v622 = vpack.c.b16 %v514, %v502
    %v623 = vpack.c.b16 %v515, %v503
    %v624 = vpack.c.b16 %v516, %v504
    %v625 = vpack.c.b16 %v517, %v505
    %v626 = vpack.c.b16 %v530, %v518
    %v627 = vpack.c.b16 %v531, %v519
    %v628 = vpack.c.b16 %v532, %v520
    %v629 = vpack.c.b16 %v533, %v521
    %v630 = vpack.c.b16 %v534, %v522
    %v631 = vpack.c.b16 %v535, %v523
    %v632 = vpack.c.b16 %v536, %v524
    %v633 = vpack.c.b16 %v537, %v525
    %v634 = vpack.c.b16 %v538, %v526
    %v635 = vpack.c.b16 %v539, %v527
    %v636 = vpack.c.b16 %v540, %v528
    %v637 = vpack.c.b16 %v541, %v529
    %734 = vmatprep.subr.bf16.mxu0 %v627
    %735 = vmatpush1.bf16.msra.mxu0 %v626
    %736 = vmatprep.subr.bf16.mxu0 %v615
    %737 = vmatpush1.bf16.msra.mxu0 %v614
    %738 = vmatprep.subr.bf16.mxu0 %v603
    %739 = vmatpush1.bf16.msra.mxu0 %v602
    %740 = vmatprep.subr.bf16.mxu0 %v591
    %741 = vmatpush1.bf16.msra.mxu0 %v590
    %742 = vmatprep.subr.bf16.mxu0 %v579
    %743 = vmatpush1.bf16.msra.mxu0 %v578
    %744 = vmatprep.subr.bf16.mxu0 %v567
    %745 = vmatpush1.bf16.msra.mxu0 %v566
    %746 = vmatprep.subr.bf16.mxu0 %v555
    %747 = vmatpush1.bf16.msra.mxu0 %v554
    %748 = vmatprep.subr.bf16.mxu0 %v543
    %749 = vmatpush1.bf16.msra.mxu0 %v542
    %750 = vmatprep.subr.bf16.mxu0 0
    %751 = vmatpush2.bf16.msra.mxu0 0
    %752 = vmatprep.subr.bf16.mxu0 0
    %753 = vmatpush2.bf16.msra.mxu0 0
    %754 = vmatprep.subr.bf16.mxu0 0
    %755 = vmatpush2.bf16.msra.mxu0 0
    %756 = vmatprep.subr.bf16.mxu0 0
    %757 = vmatpush2.bf16.msra.mxu0 0
    %758 = vmatprep.subr.bf16.mxu0 0
    %759 = vmatpush2.bf16.msra.mxu0 0
    %760 = vmatprep.subr.bf16.mxu0 0
    %761 = vmatpush2.bf16.msra.mxu0 0
    %762 = vmatprep.subr.bf16.mxu0 0
    %763 = vmatpush2.bf16.msra.mxu0 0
    %764 = vmatprep.subr.bf16.mxu0 0
    %765 = vmatpush2.bf16.msra.mxu0 0
    %766 = vmatprep.mubr.bf16.mxu0 0
    %767 = vmatmul.mubr.bf16.gmra.mxu0 %v252
    %v768 = vpop.f32.mrf.mxu0
    %v769 = vadd.f32 0.0, %v768
    %v770 = vpop.f32.mrf.mxu0
    %v771 = vadd.f32 0.0, %v770
    %v772 = vpop.f32.mrf.mxu0
    %v773 = vadd.f32 0.0, %v772
    %v774 = vpop.f32.mrf.mxu0
    %v775 = vadd.f32 0.0, %v774
    %776 = vdwg.mxu0
    %777 = vmatprep.subr.bf16.mxu0 %v629
    %778 = vmatpush1.bf16.msra.mxu0 %v628
    %779 = vmatprep.subr.bf16.mxu0 %v617
    %780 = vmatpush1.bf16.msra.mxu0 %v616
    %781 = vmatprep.subr.bf16.mxu0 %v605
    %782 = vmatpush1.bf16.msra.mxu0 %v604
    %783 = vmatprep.subr.bf16.mxu0 %v593
    %784 = vmatpush1.bf16.msra.mxu0 %v592
    %785 = vmatprep.subr.bf16.mxu0 %v581
    %786 = vmatpush1.bf16.msra.mxu0 %v580
    %787 = vmatprep.subr.bf16.mxu0 %v569
    %788 = vmatpush1.bf16.msra.mxu0 %v568
    %789 = vmatprep.subr.bf16.mxu0 %v557
    %790 = vmatpush1.bf16.msra.mxu0 %v556
    %791 = vmatprep.subr.bf16.mxu0 %v545
    %792 = vmatpush1.bf16.msra.mxu0 %v544
    %793 = vmatprep.subr.bf16.mxu0 0
    %794 = vmatpush2.bf16.msra.mxu0 0
    %795 = vmatprep.subr.bf16.mxu0 0
    %796 = vmatpush2.bf16.msra.mxu0 0
    %797 = vmatprep.subr.bf16.mxu0 0
    %798 = vmatpush2.bf16.msra.mxu0 0
    %799 = vmatprep.subr.bf16.mxu0 0
    %800 = vmatpush2.bf16.msra.mxu0 0
    %801 = vmatprep.subr.bf16.mxu0 0
    %802 = vmatpush2.bf16.msra.mxu0 0
    %803 = vmatprep.subr.bf16.mxu0 0
    %804 = vmatpush2.bf16.msra.mxu0 0
    %805 = vmatprep.subr.bf16.mxu0 0
    %806 = vmatpush2.bf16.msra.mxu0 0
    %807 = vmatprep.subr.bf16.mxu0 0
    %808 = vmatpush2.bf16.msra.mxu0 0
    %809 = vmatprep.mubr.bf16.mxu0 0
    %810 = vmatmul.mubr.bf16.gmra.mxu0 %v252
    %v811 = vpop.f32.mrf.mxu0
    %v812 = vadd.f32 0.0, %v811
    %v813 = vpop.f32.mrf.mxu0
    %v814 = vadd.f32 0.0, %v813
    %v815 = vpop.f32.mrf.mxu0
    %v816 = vadd.f32 0.0, %v815
    %v817 = vpop.f32.mrf.mxu0
    %v818 = vadd.f32 0.0, %v817
    %819 = vdwg.mxu0
    %820 = vmatprep.subr.bf16.mxu0 %v631
    %821 = vmatpush1.bf16.msra.mxu0 %v630
    %822 = vmatprep.subr.bf16.mxu0 %v619
    %823 = vmatpush1.bf16.msra.mxu0 %v618
    %824 = vmatprep.subr.bf16.mxu0 %v607
    %825 = vmatpush1.bf16.msra.mxu0 %v606
    %826 = vmatprep.subr.bf16.mxu0 %v595
    %827 = vmatpush1.bf16.msra.mxu0 %v594
    %828 = vmatprep.subr.bf16.mxu0 %v583
    %829 = vmatpush1.bf16.msra.mxu0 %v582
    %830 = vmatprep.subr.bf16.mxu0 %v571
    %831 = vmatpush1.bf16.msra.mxu0 %v570
    %832 = vmatprep.subr.bf16.mxu0 %v559
    %833 = vmatpush1.bf16.msra.mxu0 %v558
    %834 = vmatprep.subr.bf16.mxu0 %v547
    %835 = vmatpush1.bf16.msra.mxu0 %v546
    %836 = vmatprep.subr.bf16.mxu0 0
    %837 = vmatpush2.bf16.msra.mxu0 0
    %838 = vmatprep.subr.bf16.mxu0 0
    %839 = vmatpush2.bf16.msra.mxu0 0
    %840 = vmatprep.subr.bf16.mxu0 0
    %841 = vmatpush2.bf16.msra.mxu0 0
    %842 = vmatprep.subr.bf16.mxu0 0
    %843 = vmatpush2.bf16.msra.mxu0 0
    %844 = vmatprep.subr.bf16.mxu0 0
    %845 = vmatpush2.bf16.msra.mxu0 0
    %846 = vmatprep.subr.bf16.mxu0 0
    %847 = vmatpush2.bf16.msra.mxu0 0
    %848 = vmatprep.subr.bf16.mxu0 0
    %849 = vmatpush2.bf16.msra.mxu0 0
    %850 = vmatprep.subr.bf16.mxu0 0
    %851 = vmatpush2.bf16.msra.mxu0 0
    %852 = vmatprep.mubr.bf16.mxu0 0
    %853 = vmatmul.mubr.bf16.gmra.mxu0 %v252
    %v854 = vpop.f32.mrf.mxu0
    %v855 = vadd.f32 0.0, %v854
    %v856 = vpop.f32.mrf.mxu0
    %v857 = vadd.f32 0.0, %v856
    %v858 = vpop.f32.mrf.mxu0
    %v859 = vadd.f32 0.0, %v858
    %v860 = vpop.f32.mrf.mxu0
    %v861 = vadd.f32 0.0, %v860
    %862 = vdwg.mxu0
    %863 = vmatprep.subr.bf16.mxu0 %v633
    %864 = vmatpush1.bf16.msra.mxu0 %v632
    %865 = vmatprep.subr.bf16.mxu0 %v621
    %866 = vmatpush1.bf16.msra.mxu0 %v620
    %867 = vmatprep.subr.bf16.mxu0 %v609
    %868 = vmatpush1.bf16.msra.mxu0 %v608
    %869 = vmatprep.subr.bf16.mxu0 %v597
    %870 = vmatpush1.bf16.msra.mxu0 %v596
    %871 = vmatprep.subr.bf16.mxu0 %v585
    %872 = vmatpush1.bf16.msra.mxu0 %v584
    %873 = vmatprep.subr.bf16.mxu0 %v573
    %874 = vmatpush1.bf16.msra.mxu0 %v572
    %875 = vmatprep.subr.bf16.mxu0 %v561
    %876 = vmatpush1.bf16.msra.mxu0 %v560
    %877 = vmatprep.subr.bf16.mxu0 %v549
    %878 = vmatpush1.bf16.msra.mxu0 %v548
    %879 = vmatprep.subr.bf16.mxu0 0
    %880 = vmatpush2.bf16.msra.mxu0 0
    %881 = vmatprep.subr.bf16.mxu0 0
    %882 = vmatpush2.bf16.msra.mxu0 0
    %883 = vmatprep.subr.bf16.mxu0 0
    %884 = vmatpush2.bf16.msra.mxu0 0
    %885 = vmatprep.subr.bf16.mxu0 0
    %886 = vmatpush2.bf16.msra.mxu0 0
    %887 = vmatprep.subr.bf16.mxu0 0
    %888 = vmatpush2.bf16.msra.mxu0 0
    %889 = vmatprep.subr.bf16.mxu0 0
    %890 = vmatpush2.bf16.msra.mxu0 0
    %891 = vmatprep.subr.bf16.mxu0 0
    %892 = vmatpush2.bf16.msra.mxu0 0
    %893 = vmatprep.subr.bf16.mxu0 0
    %894 = vmatpush2.bf16.msra.mxu0 0
    %895 = vmatprep.mubr.bf16.mxu0 0
    %896 = vmatmul.mubr.bf16.gmra.mxu0 %v252
    %v897 = vpop.f32.mrf.mxu0
    %v898 = vadd.f32 0.0, %v897
    %v899 = vpop.f32.mrf.mxu0
    %v900 = vadd.f32 0.0, %v899
    %v901 = vpop.f32.mrf.mxu0
    %v902 = vadd.f32 0.0, %v901
    %v903 = vpop.f32.mrf.mxu0
    %v904 = vadd.f32 0.0, %v903
    %905 = vdwg.mxu0
    %906 = vmatprep.subr.bf16.mxu0 %v635
    %907 = vmatpush1.bf16.msra.mxu0 %v634
    %908 = vmatprep.subr.bf16.mxu0 %v623
    %909 = vmatpush1.bf16.msra.mxu0 %v622
    %910 = vmatprep.subr.bf16.mxu0 %v611
    %911 = vmatpush1.bf16.msra.mxu0 %v610
    %912 = vmatprep.subr.bf16.mxu0 %v599
    %913 = vmatpush1.bf16.msra.mxu0 %v598
    %914 = vmatprep.subr.bf16.mxu0 %v587
    %915 = vmatpush1.bf16.msra.mxu0 %v586
    %916 = vmatprep.subr.bf16.mxu0 %v575
    %917 = vmatpush1.bf16.msra.mxu0 %v574
    %918 = vmatprep.subr.bf16.mxu0 %v563
    %919 = vmatpush1.bf16.msra.mxu0 %v562
    %920 = vmatprep.subr.bf16.mxu0 %v551
    %921 = vmatpush1.bf16.msra.mxu0 %v550
    %922 = vmatprep.subr.bf16.mxu0 0
    %923 = vmatpush2.bf16.msra.mxu0 0
    %924 = vmatprep.subr.bf16.mxu0 0
    %925 = vmatpush2.bf16.msra.mxu0 0
    %926 = vmatprep.subr.bf16.mxu0 0
    %927 = vmatpush2.bf16.msra.mxu0 0
    %928 = vmatprep.subr.bf16.mxu0 0
    %929 = vmatpush2.bf16.msra.mxu0 0
    %930 = vmatprep.subr.bf16.mxu0 0
    %931 = vmatpush2.bf16.msra.mxu0 0
    %932 = vmatprep.subr.bf16.mxu0 0
    %933 = vmatpush2.bf16.msra.mxu0 0
    %934 = vmatprep.subr.bf16.mxu0 0
    %935 = vmatpush2.bf16.msra.mxu0 0
    %936 = vmatprep.subr.bf16.mxu0 0
    %937 = vmatpush2.bf16.msra.mxu0 0
    %938 = vmatprep.mubr.bf16.mxu0 0
    %939 = vmatmul.mubr.bf16.gmra.mxu0 %v252
    %v940 = vpop.f32.mrf.mxu0
    %v941 = vadd.f32 0.0, %v940
    %v942 = vpop.f32.mrf.mxu0
    %v943 = vadd.f32 0.0, %v942
    %v944 = vpop.f32.mrf.mxu0
    %v945 = vadd.f32 0.0, %v944
    %v946 = vpop.f32.mrf.mxu0
    %v947 = vadd.f32 0.0, %v946
    %948 = vdwg.mxu0
    %949 = vmatprep.subr.bf16.mxu0 %v637
    %950 = vmatpush1.bf16.msra.mxu0 %v636
    %951 = vmatprep.subr.bf16.mxu0 %v625
    %952 = vmatpush1.bf16.msra.mxu0 %v624
    %953 = vmatprep.subr.bf16.mxu0 %v613
    %954 = vmatpush1.bf16.msra.mxu0 %v612
    %955 = vmatprep.subr.bf16.mxu0 %v601
    %956 = vmatpush1.bf16.msra.mxu0 %v600
    %957 = vmatprep.subr.bf16.mxu0 %v589
    %958 = vmatpush1.bf16.msra.mxu0 %v588
    %959 = vmatprep.subr.bf16.mxu0 %v577
    %960 = vmatpush1.bf16.msra.mxu0 %v576
    %961 = vmatprep.subr.bf16.mxu0 %v565
    %962 = vmatpush1.bf16.msra.mxu0 %v564
    %963 = vmatprep.subr.bf16.mxu0 %v553
    %964 = vmatpush1.bf16.msra.mxu0 %v552
    %965 = vmatprep.subr.bf16.mxu0 0
    %966 = vmatpush2.bf16.msra.mxu0 0
    %967 = vmatprep.subr.bf16.mxu0 0
    %968 = vmatpush2.bf16.msra.mxu0 0
    %969 = vmatprep.subr.bf16.mxu0 0
    %970 = vmatpush2.bf16.msra.mxu0 0
    %971 = vmatprep.subr.bf16.mxu0 0
    %972 = vmatpush2.bf16.msra.mxu0 0
    %973 = vmatprep.subr.bf16.mxu0 0
    %974 = vmatpush2.bf16.msra.mxu0 0
    %975 = vmatprep.subr.bf16.mxu0 0
    %976 = vmatpush2.bf16.msra.mxu0 0
    %977 = vmatprep.subr.bf16.mxu0 0
    %978 = vmatpush2.bf16.msra.mxu0 0
    %979 = vmatprep.subr.bf16.mxu0 0
    %980 = vmatpush2.bf16.msra.mxu0 0
    %981 = vmatprep.mubr.bf16.mxu0 0
    %982 = vmatmul.mubr.bf16.gmra.mxu0 %v252
    %v983 = vpop.f32.mrf.mxu0
    %v984 = vadd.f32 0.0, %v983
    %v985 = vpop.f32.mrf.mxu0
    %v986 = vadd.f32 0.0, %v985
    %v987 = vpop.f32.mrf.mxu0
    %v988 = vadd.f32 0.0, %v987
    %v989 = vpop.f32.mrf.mxu0
    %v990 = vadd.f32 0.0, %v989
    %991 = vdwg.mxu0
    %v992 = vld [vmem:[#allocation8] sm:$0xff]
    %v993 = vld [vmem:[#allocation8 + $0x8] sm:$0xff]
    %v994 = vld [vmem:[#allocation8 + $0x10] sm:$0xff]
    %v995 = vld [vmem:[#allocation8 + $0x18] sm:$0xff]
    %v996 = vld [vmem:[#allocation8 + $0x20] sm:$0xff]
    %v997 = vld [vmem:[#allocation8 + $0x28] sm:$0xff]
    %v998 = vld [vmem:[#allocation8 + $0x30] sm:$0xff]
    %v999 = vld [vmem:[#allocation8 + $0x38] sm:$0xff]
    %v1000 = vld [vmem:[#allocation8 + $0x40] sm:$0xff]
    %v1001 = vld [vmem:[#allocation8 + $0x48] sm:$0xff]
    %v1002 = vld [vmem:[#allocation8 + $0x50] sm:$0xff]
    %v1003 = vld [vmem:[#allocation8 + $0x58] sm:$0xff]
    %v1004 = vld [vmem:[#allocation8 + $0x60] sm:$0xff]
    %v1005 = vld [vmem:[#allocation8 + $0x68] sm:$0xff]
    %v1006 = vld [vmem:[#allocation8 + $0x70] sm:$0xff]
    %v1007 = vld [vmem:[#allocation8 + $0x78] sm:$0xff]
    %v1008 = vld [vmem:[#allocation8 + $0x80] sm:$0xff]
    %v1009 = vld [vmem:[#allocation8 + $0x88] sm:$0xff]
    %v1010 = vld [vmem:[#allocation8 + $0x90] sm:$0xff]
    %v1011 = vld [vmem:[#allocation8 + $0x98] sm:$0xff]
    %v1012 = vld [vmem:[#allocation8 + $0xa0] sm:$0xff]
    %v1013 = vld [vmem:[#allocation8 + $0xa8] sm:$0xff]
    %v1014 = vld [vmem:[#allocation8 + $0xb0] sm:$0xff]
    %v1015 = vld [vmem:[#allocation8 + $0xb8] sm:$0xff]
    %v1016 = vld [vmem:[#allocation8 + $0xc0] sm:$0xff]
    %v1017 = vld [vmem:[#allocation8 + $0xc8] sm:$0xff]
    %v1018 = vld [vmem:[#allocation8 + $0xd0] sm:$0xff]
    %v1019 = vld [vmem:[#allocation8 + $0xd8] sm:$0xff]
    %v1020 = vld [vmem:[#allocation8 + $0xe0] sm:$0xff]
    %v1021 = vld [vmem:[#allocation8 + $0xe8] sm:$0xff]
    %v1022 = vld [vmem:[#allocation8 + $0xf0] sm:$0xff]
    %v1023 = vld [vmem:[#allocation8 + $0xf8] sm:$0xff]
    %v1024 = vld [vmem:[#allocation8 + $0x100] sm:$0xff]
    %v1025 = vld [vmem:[#allocation8 + $0x108] sm:$0xff]
    %v1026 = vld [vmem:[#allocation8 + $0x110] sm:$0xff]
    %v1027 = vld [vmem:[#allocation8 + $0x118] sm:$0xff]
    %v1028 = vld [vmem:[#allocation8 + $0x120] sm:$0xff]
    %v1029 = vld [vmem:[#allocation8 + $0x128] sm:$0xff]
    %v1030 = vld [vmem:[#allocation8 + $0x130] sm:$0xff]
    %v1031 = vld [vmem:[#allocation8 + $0x138] sm:$0xff]
    %v1032 = vld [vmem:[#allocation8 + $0x140] sm:$0xff]
    %v1033 = vld [vmem:[#allocation8 + $0x148] sm:$0xff]
    %v1034 = vld [vmem:[#allocation8 + $0x150] sm:$0xff]
    %v1035 = vld [vmem:[#allocation8 + $0x158] sm:$0xff]
    %v1036 = vld [vmem:[#allocation8 + $0x160] sm:$0xff]
    %v1037 = vld [vmem:[#allocation8 + $0x168] sm:$0xff]
    %v1038 = vld [vmem:[#allocation8 + $0x170] sm:$0xff]
    %v1039 = vld [vmem:[#allocation8 + $0x178] sm:$0xff]
    %v1040 = vld [vmem:[#allocation8 + $0x180] sm:$0xff]
    %v1041 = vld [vmem:[#allocation8 + $0x188] sm:$0xff]
    %v1042 = vld [vmem:[#allocation8 + $0x190] sm:$0xff]
    %v1043 = vld [vmem:[#allocation8 + $0x198] sm:$0xff]
    %v1044 = vld [vmem:[#allocation8 + $0x1a0] sm:$0xff]
    %v1045 = vld [vmem:[#allocation8 + $0x1a8] sm:$0xff]
    %v1046 = vld [vmem:[#allocation8 + $0x1b0] sm:$0xff]
    %v1047 = vld [vmem:[#allocation8 + $0x1b8] sm:$0xff]
    %v1048 = vld [vmem:[#allocation8 + $0x1c0] sm:$0xff]
    %v1049 = vld [vmem:[#allocation8 + $0x1c8] sm:$0xff]
    %v1050 = vld [vmem:[#allocation8 + $0x1d0] sm:$0xff]
    %v1051 = vld [vmem:[#allocation8 + $0x1d8] sm:$0xff]
    %v1052 = vld [vmem:[#allocation8 + $0x1e0] sm:$0xff]
    %v1053 = vld [vmem:[#allocation8 + $0x1e8] sm:$0xff]
    %v1054 = vld [vmem:[#allocation8 + $0x1f0] sm:$0xff]
    %v1055 = vld [vmem:[#allocation8 + $0x1f8] sm:$0xff]
    %v1056 = vld [vmem:[#allocation8 + $0x200] sm:$0xff]
    %v1057 = vld [vmem:[#allocation8 + $0x208] sm:$0xff]
    %v1058 = vld [vmem:[#allocation8 + $0x210] sm:$0xff]
    %v1059 = vld [vmem:[#allocation8 + $0x218] sm:$0xff]
    %v1060 = vld [vmem:[#allocation8 + $0x220] sm:$0xff]
    %v1061 = vld [vmem:[#allocation8 + $0x228] sm:$0xff]
    %v1062 = vld [vmem:[#allocation8 + $0x230] sm:$0xff]
    %v1063 = vld [vmem:[#allocation8 + $0x238] sm:$0xff]
    %v1064 = vld [vmem:[#allocation8 + $0x240] sm:$0xff]
    %v1065 = vld [vmem:[#allocation8 + $0x248] sm:$0xff]
    %v1066 = vld [vmem:[#allocation8 + $0x250] sm:$0xff]
    %v1067 = vld [vmem:[#allocation8 + $0x258] sm:$0xff]
    %v1068 = vld [vmem:[#allocation8 + $0x260] sm:$0xff]
    %v1069 = vld [vmem:[#allocation8 + $0x268] sm:$0xff]
    %v1070 = vld [vmem:[#allocation8 + $0x270] sm:$0xff]
    %v1071 = vld [vmem:[#allocation8 + $0x278] sm:$0xff]
    %v1072 = vld [vmem:[#allocation8 + $0x280] sm:$0xff]
    %v1073 = vld [vmem:[#allocation8 + $0x288] sm:$0xff]
    %v1074 = vld [vmem:[#allocation8 + $0x290] sm:$0xff]
    %v1075 = vld [vmem:[#allocation8 + $0x298] sm:$0xff]
    %v1076 = vld [vmem:[#allocation8 + $0x2a0] sm:$0xff]
    %v1077 = vld [vmem:[#allocation8 + $0x2a8] sm:$0xff]
    %v1078 = vld [vmem:[#allocation8 + $0x2b0] sm:$0xff]
    %v1079 = vld [vmem:[#allocation8 + $0x2b8] sm:$0xff]
    %v1080 = vld [vmem:[#allocation8 + $0x2c0] sm:$0xff]
    %v1081 = vld [vmem:[#allocation8 + $0x2c8] sm:$0xff]
    %v1082 = vld [vmem:[#allocation8 + $0x2d0] sm:$0xff]
    %v1083 = vld [vmem:[#allocation8 + $0x2d8] sm:$0xff]
    %v1084 = vld [vmem:[#allocation8 + $0x2e0] sm:$0xff]
    %v1085 = vld [vmem:[#allocation8 + $0x2e8] sm:$0xff]
    %v1086 = vld [vmem:[#allocation8 + $0x2f0] sm:$0xff]
    %v1087 = vld [vmem:[#allocation8 + $0x2f8] sm:$0xff]
    %v1088 = vld [vmem:[#allocation8 + $0x300] sm:$0xff]
    %v1089 = vld [vmem:[#allocation8 + $0x308] sm:$0xff]
    %v1090 = vld [vmem:[#allocation8 + $0x310] sm:$0xff]
    %v1091 = vld [vmem:[#allocation8 + $0x318] sm:$0xff]
    %v1092 = vld [vmem:[#allocation8 + $0x320] sm:$0xff]
    %v1093 = vld [vmem:[#allocation8 + $0x328] sm:$0xff]
    %v1094 = vld [vmem:[#allocation8 + $0x330] sm:$0xff]
    %v1095 = vld [vmem:[#allocation8 + $0x338] sm:$0xff]
    %v1096 = vld [vmem:[#allocation8 + $0x340] sm:$0xff]
    %v1097 = vld [vmem:[#allocation8 + $0x348] sm:$0xff]
    %v1098 = vld [vmem:[#allocation8 + $0x350] sm:$0xff]
    %v1099 = vld [vmem:[#allocation8 + $0x358] sm:$0xff]
    %v1100 = vld [vmem:[#allocation8 + $0x360] sm:$0xff]
    %v1101 = vld [vmem:[#allocation8 + $0x368] sm:$0xff]
    %v1102 = vld [vmem:[#allocation8 + $0x370] sm:$0xff]
    %v1103 = vld [vmem:[#allocation8 + $0x378] sm:$0xff]
    %v1104 = vld [vmem:[#allocation8 + $0x380] sm:$0xff]
    %v1105 = vld [vmem:[#allocation8 + $0x388] sm:$0xff]
    %v1106 = vld [vmem:[#allocation8 + $0x390] sm:$0xff]
    %v1107 = vld [vmem:[#allocation8 + $0x398] sm:$0xff]
    %v1108 = vld [vmem:[#allocation8 + $0x3a0] sm:$0xff]
    %v1109 = vld [vmem:[#allocation8 + $0x3a8] sm:$0xff]
    %v1110 = vld [vmem:[#allocation8 + $0x3b0] sm:$0xff]
    %v1111 = vld [vmem:[#allocation8 + $0x3b8] sm:$0xff]
    %v1112 = vld [vmem:[#allocation8 + $0x3c0] sm:$0xff]
    %v1113 = vld [vmem:[#allocation8 + $0x3c8] sm:$0xff]
    %v1114 = vld [vmem:[#allocation8 + $0x3d0] sm:$0xff]
    %v1115 = vld [vmem:[#allocation8 + $0x3d8] sm:$0xff]
    %v1116 = vld [vmem:[#allocation8 + $0x3e0] sm:$0xff]
    %v1117 = vld [vmem:[#allocation8 + $0x3e8] sm:$0xff]
    %v1118 = vld [vmem:[#allocation8 + $0x3f0] sm:$0xff]
    %v1119 = vld [vmem:[#allocation8 + $0x3f8] sm:$0xff]
    %v1120 = vld [vmem:[#allocation8 + $0x400] sm:$0xff]
    %v1121 = vld [vmem:[#allocation8 + $0x408] sm:$0xff]
    %v1122 = vld [vmem:[#allocation8 + $0x410] sm:$0xff]
    %v1123 = vld [vmem:[#allocation8 + $0x418] sm:$0xff]
    %v1124 = vld [vmem:[#allocation8 + $0x420] sm:$0xff]
    %v1125 = vld [vmem:[#allocation8 + $0x428] sm:$0xff]
    %v1126 = vld [vmem:[#allocation8 + $0x430] sm:$0xff]
    %v1127 = vld [vmem:[#allocation8 + $0x438] sm:$0xff]
    %v1128 = vld [vmem:[#allocation8 + $0x440] sm:$0xff]
    %v1129 = vld [vmem:[#allocation8 + $0x448] sm:$0xff]
    %v1130 = vld [vmem:[#allocation8 + $0x450] sm:$0xff]
    %v1131 = vld [vmem:[#allocation8 + $0x458] sm:$0xff]
    %v1132 = vld [vmem:[#allocation8 + $0x460] sm:$0xff]
    %v1133 = vld [vmem:[#allocation8 + $0x468] sm:$0xff]
    %v1134 = vld [vmem:[#allocation8 + $0x470] sm:$0xff]
    %v1135 = vld [vmem:[#allocation8 + $0x478] sm:$0xff]
    %v1136 = vld [vmem:[#allocation8 + $0x480] sm:$0xff]
    %v1137 = vld [vmem:[#allocation8 + $0x488] sm:$0xff]
    %v1138 = vld [vmem:[#allocation8 + $0x490] sm:$0xff]
    %v1139 = vld [vmem:[#allocation8 + $0x498] sm:$0xff]
    %v1140 = vld [vmem:[#allocation8 + $0x4a0] sm:$0xff]
    %v1141 = vld [vmem:[#allocation8 + $0x4a8] sm:$0xff]
    %v1142 = vld [vmem:[#allocation8 + $0x4b0] sm:$0xff]
    %v1143 = vld [vmem:[#allocation8 + $0x4b8] sm:$0xff]
    %v1144 = vld [vmem:[#allocation8 + $0x4c0] sm:$0xff]
    %v1145 = vld [vmem:[#allocation8 + $0x4c8] sm:$0xff]
    %v1146 = vld [vmem:[#allocation8 + $0x4d0] sm:$0xff]
    %v1147 = vld [vmem:[#allocation8 + $0x4d8] sm:$0xff]
    %v1148 = vld [vmem:[#allocation8 + $0x4e0] sm:$0xff]
    %v1149 = vld [vmem:[#allocation8 + $0x4e8] sm:$0xff]
    %v1150 = vld [vmem:[#allocation8 + $0x4f0] sm:$0xff]
    %v1151 = vld [vmem:[#allocation8 + $0x4f8] sm:$0xff]
    %v1152 = vld [vmem:[#allocation8 + $0x500] sm:$0xff]
    %v1153 = vld [vmem:[#allocation8 + $0x508] sm:$0xff]
    %v1154 = vld [vmem:[#allocation8 + $0x510] sm:$0xff]
    %v1155 = vld [vmem:[#allocation8 + $0x518] sm:$0xff]
    %v1156 = vld [vmem:[#allocation8 + $0x520] sm:$0xff]
    %v1157 = vld [vmem:[#allocation8 + $0x528] sm:$0xff]
    %v1158 = vld [vmem:[#allocation8 + $0x530] sm:$0xff]
    %v1159 = vld [vmem:[#allocation8 + $0x538] sm:$0xff]
    %v1160 = vld [vmem:[#allocation8 + $0x540] sm:$0xff]
    %v1161 = vld [vmem:[#allocation8 + $0x548] sm:$0xff]
    %v1162 = vld [vmem:[#allocation8 + $0x550] sm:$0xff]
    %v1163 = vld [vmem:[#allocation8 + $0x558] sm:$0xff]
    %v1164 = vld [vmem:[#allocation8 + $0x560] sm:$0xff]
    %v1165 = vld [vmem:[#allocation8 + $0x568] sm:$0xff]
    %v1166 = vld [vmem:[#allocation8 + $0x570] sm:$0xff]
    %v1167 = vld [vmem:[#allocation8 + $0x578] sm:$0xff]
    %v1168 = vld [vmem:[#allocation8 + $0x580] sm:$0xff]
    %v1169 = vld [vmem:[#allocation8 + $0x588] sm:$0xff]
    %v1170 = vld [vmem:[#allocation8 + $0x590] sm:$0xff]
    %v1171 = vld [vmem:[#allocation8 + $0x598] sm:$0xff]
    %v1172 = vld [vmem:[#allocation8 + $0x5a0] sm:$0xff]
    %v1173 = vld [vmem:[#allocation8 + $0x5a8] sm:$0xff]
    %v1174 = vld [vmem:[#allocation8 + $0x5b0] sm:$0xff]
    %v1175 = vld [vmem:[#allocation8 + $0x5b8] sm:$0xff]
    %v1176 = vld [vmem:[#allocation8 + $0x5c0] sm:$0xff]
    %v1177 = vld [vmem:[#allocation8 + $0x5c8] sm:$0xff]
    %v1178 = vld [vmem:[#allocation8 + $0x5d0] sm:$0xff]
    %v1179 = vld [vmem:[#allocation8 + $0x5d8] sm:$0xff]
    %v1180 = vld [vmem:[#allocation8 + $0x5e0] sm:$0xff]
    %v1181 = vld [vmem:[#allocation8 + $0x5e8] sm:$0xff]
    %v1182 = vld [vmem:[#allocation8 + $0x5f0] sm:$0xff]
    %v1183 = vld [vmem:[#allocation8 + $0x5f8] sm:$0xff]
    %v1184 = vld [vmem:[#allocation8 + $0x600] sm:$0xff]
    %v1185 = vld [vmem:[#allocation8 + $0x608] sm:$0xff]
    %v1186 = vld [vmem:[#allocation8 + $0x610] sm:$0xff]
    %v1187 = vld [vmem:[#allocation8 + $0x618] sm:$0xff]
    %v1188 = vld [vmem:[#allocation8 + $0x620] sm:$0xff]
    %v1189 = vld [vmem:[#allocation8 + $0x628] sm:$0xff]
    %v1190 = vld [vmem:[#allocation8 + $0x630] sm:$0xff]
    %v1191 = vld [vmem:[#allocation8 + $0x638] sm:$0xff]
    %v1192 = vld [vmem:[#allocation8 + $0x640] sm:$0xff]
    %v1193 = vld [vmem:[#allocation8 + $0x648] sm:$0xff]
    %v1194 = vld [vmem:[#allocation8 + $0x650] sm:$0xff]
    %v1195 = vld [vmem:[#allocation8 + $0x658] sm:$0xff]
    %v1196 = vld [vmem:[#allocation8 + $0x660] sm:$0xff]
    %v1197 = vld [vmem:[#allocation8 + $0x668] sm:$0xff]
    %v1198 = vld [vmem:[#allocation8 + $0x670] sm:$0xff]
    %v1199 = vld [vmem:[#allocation8 + $0x678] sm:$0xff]
    %v1200 = vld [vmem:[#allocation8 + $0x680] sm:$0xff]
    %v1201 = vld [vmem:[#allocation8 + $0x688] sm:$0xff]
    %v1202 = vld [vmem:[#allocation8 + $0x690] sm:$0xff]
    %v1203 = vld [vmem:[#allocation8 + $0x698] sm:$0xff]
    %v1204 = vld [vmem:[#allocation8 + $0x6a0] sm:$0xff]
    %v1205 = vld [vmem:[#allocation8 + $0x6a8] sm:$0xff]
    %v1206 = vld [vmem:[#allocation8 + $0x6b0] sm:$0xff]
    %v1207 = vld [vmem:[#allocation8 + $0x6b8] sm:$0xff]
    %v1208 = vld [vmem:[#allocation8 + $0x6c0] sm:$0xff]
    %v1209 = vld [vmem:[#allocation8 + $0x6c8] sm:$0xff]
    %v1210 = vld [vmem:[#allocation8 + $0x6d0] sm:$0xff]
    %v1211 = vld [vmem:[#allocation8 + $0x6d8] sm:$0xff]
    %v1212 = vld [vmem:[#allocation8 + $0x6e0] sm:$0xff]
    %v1213 = vld [vmem:[#allocation8 + $0x6e8] sm:$0xff]
    %v1214 = vld [vmem:[#allocation8 + $0x6f0] sm:$0xff]
    %v1215 = vld [vmem:[#allocation8 + $0x6f8] sm:$0xff]
    %v1216 = vld [vmem:[#allocation8 + $0x700] sm:$0xff]
    %v1217 = vld [vmem:[#allocation8 + $0x708] sm:$0xff]
    %v1218 = vld [vmem:[#allocation8 + $0x710] sm:$0xff]
    %v1219 = vld [vmem:[#allocation8 + $0x718] sm:$0xff]
    %v1220 = vld [vmem:[#allocation8 + $0x720] sm:$0xff]
    %v1221 = vld [vmem:[#allocation8 + $0x728] sm:$0xff]
    %v1222 = vld [vmem:[#allocation8 + $0x730] sm:$0xff]
    %v1223 = vld [vmem:[#allocation8 + $0x738] sm:$0xff]
    %v1224 = vld [vmem:[#allocation8 + $0x740] sm:$0xff]
    %v1225 = vld [vmem:[#allocation8 + $0x748] sm:$0xff]
    %v1226 = vld [vmem:[#allocation8 + $0x750] sm:$0xff]
    %v1227 = vld [vmem:[#allocation8 + $0x758] sm:$0xff]
    %v1228 = vld [vmem:[#allocation8 + $0x760] sm:$0xff]
    %v1229 = vld [vmem:[#allocation8 + $0x768] sm:$0xff]
    %v1230 = vld [vmem:[#allocation8 + $0x770] sm:$0xff]
    %v1231 = vld [vmem:[#allocation8 + $0x778] sm:$0xff]
    %v1232 = vld [vmem:[#allocation8 + $0x780] sm:$0xff]
    %v1233 = vld [vmem:[#allocation8 + $0x788] sm:$0xff]
    %v1234 = vld [vmem:[#allocation8 + $0x790] sm:$0xff]
    %v1235 = vld [vmem:[#allocation8 + $0x798] sm:$0xff]
    %v1236 = vld [vmem:[#allocation8 + $0x7a0] sm:$0xff]
    %v1237 = vld [vmem:[#allocation8 + $0x7a8] sm:$0xff]
    %v1238 = vld [vmem:[#allocation8 + $0x7b0] sm:$0xff]
    %v1239 = vld [vmem:[#allocation8 + $0x7b8] sm:$0xff]
    %v1240 = vld [vmem:[#allocation8 + $0x7c0] sm:$0xff]
    %v1241 = vld [vmem:[#allocation8 + $0x7c8] sm:$0xff]
    %v1242 = vld [vmem:[#allocation8 + $0x7d0] sm:$0xff]
    %v1243 = vld [vmem:[#allocation8 + $0x7d8] sm:$0xff]
    %v1244 = vld [vmem:[#allocation8 + $0x7e0] sm:$0xff]
    %v1245 = vld [vmem:[#allocation8 + $0x7e8] sm:$0xff]
    %v1246 = vld [vmem:[#allocation8 + $0x7f0] sm:$0xff]
    %v1247 = vld [vmem:[#allocation8 + $0x7f8] sm:$0xff]
    %v1248 = vld [vmem:[#allocation8 + $0x800] sm:$0xff]
    %v1249 = vld [vmem:[#allocation8 + $0x808] sm:$0xff]
    %v1250 = vld [vmem:[#allocation8 + $0x810] sm:$0xff]
    %v1251 = vld [vmem:[#allocation8 + $0x818] sm:$0xff]
    %v1252 = vld [vmem:[#allocation8 + $0x820] sm:$0xff]
    %v1253 = vld [vmem:[#allocation8 + $0x828] sm:$0xff]
    %v1254 = vld [vmem:[#allocation8 + $0x830] sm:$0xff]
    %v1255 = vld [vmem:[#allocation8 + $0x838] sm:$0xff]
    %v1256 = vld [vmem:[#allocation8 + $0x840] sm:$0xff]
    %v1257 = vld [vmem:[#allocation8 + $0x848] sm:$0xff]
    %v1258 = vld [vmem:[#allocation8 + $0x850] sm:$0xff]
    %v1259 = vld [vmem:[#allocation8 + $0x858] sm:$0xff]
    %v1260 = vld [vmem:[#allocation8 + $0x860] sm:$0xff]
    %v1261 = vld [vmem:[#allocation8 + $0x868] sm:$0xff]
    %v1262 = vld [vmem:[#allocation8 + $0x870] sm:$0xff]
    %v1263 = vld [vmem:[#allocation8 + $0x878] sm:$0xff]
    %v1264 = vld [vmem:[#allocation8 + $0x880] sm:$0xff]
    %v1265 = vld [vmem:[#allocation8 + $0x888] sm:$0xff]
    %v1266 = vld [vmem:[#allocation8 + $0x890] sm:$0xff]
    %v1267 = vld [vmem:[#allocation8 + $0x898] sm:$0xff]
    %v1268 = vld [vmem:[#allocation8 + $0x8a0] sm:$0xff]
    %v1269 = vld [vmem:[#allocation8 + $0x8a8] sm:$0xff]
    %v1270 = vld [vmem:[#allocation8 + $0x8b0] sm:$0xff]
    %v1271 = vld [vmem:[#allocation8 + $0x8b8] sm:$0xff]
    %v1272 = vld [vmem:[#allocation8 + $0x8c0] sm:$0xff]
    %v1273 = vld [vmem:[#allocation8 + $0x8c8] sm:$0xff]
    %v1274 = vld [vmem:[#allocation8 + $0x8d0] sm:$0xff]
    %v1275 = vld [vmem:[#allocation8 + $0x8d8] sm:$0xff]
    %v1276 = vld [vmem:[#allocation8 + $0x8e0] sm:$0xff]
    %v1277 = vld [vmem:[#allocation8 + $0x8e8] sm:$0xff]
    %v1278 = vld [vmem:[#allocation8 + $0x8f0] sm:$0xff]
    %v1279 = vld [vmem:[#allocation8 + $0x8f8] sm:$0xff]
    %v1568 = vunpack.c.l.b16 %v992
    %v1569 = vunpack.c.h.b16 %v992
    %v1570 = vunpack.c.l.b16 %v993
    %v1571 = vunpack.c.h.b16 %v993
    %v1572 = vunpack.c.l.b16 %v994
    %v1573 = vunpack.c.h.b16 %v994
    %v1574 = vunpack.c.l.b16 %v995
    %v1575 = vunpack.c.h.b16 %v995
    %v1576 = vunpack.c.l.b16 %v996
    %v1577 = vunpack.c.h.b16 %v996
    %v1578 = vunpack.c.l.b16 %v997
    %v1579 = vunpack.c.h.b16 %v997
    %v1580 = vunpack.c.l.b16 %v998
    %v1581 = vunpack.c.h.b16 %v998
    %v1582 = vunpack.c.l.b16 %v999
    %v1583 = vunpack.c.h.b16 %v999
    %v1584 = vunpack.c.l.b16 %v1000
    %v1585 = vunpack.c.h.b16 %v1000
    %v1586 = vunpack.c.l.b16 %v1001
    %v1587 = vunpack.c.h.b16 %v1001
    %v1588 = vunpack.c.l.b16 %v1002
    %v1589 = vunpack.c.h.b16 %v1002
    %v1590 = vunpack.c.l.b16 %v1003
    %v1591 = vunpack.c.h.b16 %v1003
    %v1592 = vunpack.c.l.b16 %v1004
    %v1593 = vunpack.c.h.b16 %v1004
    %v1594 = vunpack.c.l.b16 %v1005
    %v1595 = vunpack.c.h.b16 %v1005
    %v1596 = vunpack.c.l.b16 %v1006
    %v1597 = vunpack.c.h.b16 %v1006
    %v1598 = vunpack.c.l.b16 %v1007
    %v1599 = vunpack.c.h.b16 %v1007
    %v1600 = vunpack.c.l.b16 %v1008
    %v1601 = vunpack.c.h.b16 %v1008
    %v1602 = vunpack.c.l.b16 %v1009
    %v1603 = vunpack.c.h.b16 %v1009
    %v1604 = vunpack.c.l.b16 %v1010
    %v1605 = vunpack.c.h.b16 %v1010
    %v1606 = vunpack.c.l.b16 %v1011
    %v1607 = vunpack.c.h.b16 %v1011
    %v1608 = vunpack.c.l.b16 %v1012
    %v1609 = vunpack.c.h.b16 %v1012
    %v1610 = vunpack.c.l.b16 %v1013
    %v1611 = vunpack.c.h.b16 %v1013
    %v1612 = vunpack.c.l.b16 %v1014
    %v1613 = vunpack.c.h.b16 %v1014
    %v1614 = vunpack.c.l.b16 %v1015
    %v1615 = vunpack.c.h.b16 %v1015
    %v1616 = vunpack.c.l.b16 %v1016
    %v1617 = vunpack.c.h.b16 %v1016
    %v1618 = vunpack.c.l.b16 %v1017
    %v1619 = vunpack.c.h.b16 %v1017
    %v1620 = vunpack.c.l.b16 %v1018
    %v1621 = vunpack.c.h.b16 %v1018
    %v1622 = vunpack.c.l.b16 %v1019
    %v1623 = vunpack.c.h.b16 %v1019
    %v1624 = vunpack.c.l.b16 %v1020
    %v1625 = vunpack.c.h.b16 %v1020
    %v1626 = vunpack.c.l.b16 %v1021
    %v1627 = vunpack.c.h.b16 %v1021
    %v1628 = vunpack.c.l.b16 %v1022
    %v1629 = vunpack.c.h.b16 %v1022
    %v1630 = vunpack.c.l.b16 %v1023
    %v1631 = vunpack.c.h.b16 %v1023
    %v1632 = vunpack.c.l.b16 %v1024
    %v1633 = vunpack.c.h.b16 %v1024
    %v1634 = vunpack.c.l.b16 %v1025
    %v1635 = vunpack.c.h.b16 %v1025
    %v1636 = vunpack.c.l.b16 %v1026
    %v1637 = vunpack.c.h.b16 %v1026
    %v1638 = vunpack.c.l.b16 %v1027
    %v1639 = vunpack.c.h.b16 %v1027
    %v1640 = vunpack.c.l.b16 %v1028
    %v1641 = vunpack.c.h.b16 %v1028
    %v1642 = vunpack.c.l.b16 %v1029
    %v1643 = vunpack.c.h.b16 %v1029
    %v1644 = vunpack.c.l.b16 %v1030
    %v1645 = vunpack.c.h.b16 %v1030
    %v1646 = vunpack.c.l.b16 %v1031
    %v1647 = vunpack.c.h.b16 %v1031
    %v1648 = vunpack.c.l.b16 %v1032
    %v1649 = vunpack.c.h.b16 %v1032
    %v1650 = vunpack.c.l.b16 %v1033
    %v1651 = vunpack.c.h.b16 %v1033
    %v1652 = vunpack.c.l.b16 %v1034
    %v1653 = vunpack.c.h.b16 %v1034
    %v1654 = vunpack.c.l.b16 %v1035
    %v1655 = vunpack.c.h.b16 %v1035
    %v1656 = vunpack.c.l.b16 %v1036
    %v1657 = vunpack.c.h.b16 %v1036
    %v1658 = vunpack.c.l.b16 %v1037
    %v1659 = vunpack.c.h.b16 %v1037
    %v1660 = vunpack.c.l.b16 %v1038
    %v1661 = vunpack.c.h.b16 %v1038
    %v1662 = vunpack.c.l.b16 %v1039
    %v1663 = vunpack.c.h.b16 %v1039
    %v1664 = vunpack.c.l.b16 %v1040
    %v1665 = vunpack.c.h.b16 %v1040
    %v1666 = vunpack.c.l.b16 %v1041
    %v1667 = vunpack.c.h.b16 %v1041
    %v1668 = vunpack.c.l.b16 %v1042
    %v1669 = vunpack.c.h.b16 %v1042
    %v1670 = vunpack.c.l.b16 %v1043
    %v1671 = vunpack.c.h.b16 %v1043
    %v1672 = vunpack.c.l.b16 %v1044
    %v1673 = vunpack.c.h.b16 %v1044
    %v1674 = vunpack.c.l.b16 %v1045
    %v1675 = vunpack.c.h.b16 %v1045
    %v1676 = vunpack.c.l.b16 %v1046
    %v1677 = vunpack.c.h.b16 %v1046
    %v1678 = vunpack.c.l.b16 %v1047
    %v1679 = vunpack.c.h.b16 %v1047
    %v1680 = vunpack.c.l.b16 %v1048
    %v1681 = vunpack.c.h.b16 %v1048
    %v1682 = vunpack.c.l.b16 %v1049
    %v1683 = vunpack.c.h.b16 %v1049
    %v1684 = vunpack.c.l.b16 %v1050
    %v1685 = vunpack.c.h.b16 %v1050
    %v1686 = vunpack.c.l.b16 %v1051
    %v1687 = vunpack.c.h.b16 %v1051
    %v1688 = vunpack.c.l.b16 %v1052
    %v1689 = vunpack.c.h.b16 %v1052
    %v1690 = vunpack.c.l.b16 %v1053
    %v1691 = vunpack.c.h.b16 %v1053
    %v1692 = vunpack.c.l.b16 %v1054
    %v1693 = vunpack.c.h.b16 %v1054
    %v1694 = vunpack.c.l.b16 %v1055
    %v1695 = vunpack.c.h.b16 %v1055
    %v1696 = vunpack.c.l.b16 %v1056
    %v1697 = vunpack.c.h.b16 %v1056
    %v1698 = vunpack.c.l.b16 %v1057
    %v1699 = vunpack.c.h.b16 %v1057
    %v1700 = vunpack.c.l.b16 %v1058
    %v1701 = vunpack.c.h.b16 %v1058
    %v1702 = vunpack.c.l.b16 %v1059
    %v1703 = vunpack.c.h.b16 %v1059
    %v1704 = vunpack.c.l.b16 %v1060
    %v1705 = vunpack.c.h.b16 %v1060
    %v1706 = vunpack.c.l.b16 %v1061
    %v1707 = vunpack.c.h.b16 %v1061
    %v1708 = vunpack.c.l.b16 %v1062
    %v1709 = vunpack.c.h.b16 %v1062
    %v1710 = vunpack.c.l.b16 %v1063
    %v1711 = vunpack.c.h.b16 %v1063
    %v1712 = vunpack.c.l.b16 %v1064
    %v1713 = vunpack.c.h.b16 %v1064
    %v1714 = vunpack.c.l.b16 %v1065
    %v1715 = vunpack.c.h.b16 %v1065
    %v1716 = vunpack.c.l.b16 %v1066
    %v1717 = vunpack.c.h.b16 %v1066
    %v1718 = vunpack.c.l.b16 %v1067
    %v1719 = vunpack.c.h.b16 %v1067
    %v1720 = vunpack.c.l.b16 %v1068
    %v1721 = vunpack.c.h.b16 %v1068
    %v1722 = vunpack.c.l.b16 %v1069
    %v1723 = vunpack.c.h.b16 %v1069
    %v1724 = vunpack.c.l.b16 %v1070
    %v1725 = vunpack.c.h.b16 %v1070
    %v1726 = vunpack.c.l.b16 %v1071
    %v1727 = vunpack.c.h.b16 %v1071
    %v1728 = vunpack.c.l.b16 %v1072
    %v1729 = vunpack.c.h.b16 %v1072
    %v1730 = vunpack.c.l.b16 %v1073
    %v1731 = vunpack.c.h.b16 %v1073
    %v1732 = vunpack.c.l.b16 %v1074
    %v1733 = vunpack.c.h.b16 %v1074
    %v1734 = vunpack.c.l.b16 %v1075
    %v1735 = vunpack.c.h.b16 %v1075
    %v1736 = vunpack.c.l.b16 %v1076
    %v1737 = vunpack.c.h.b16 %v1076
    %v1738 = vunpack.c.l.b16 %v1077
    %v1739 = vunpack.c.h.b16 %v1077
    %v1740 = vunpack.c.l.b16 %v1078
    %v1741 = vunpack.c.h.b16 %v1078
    %v1742 = vunpack.c.l.b16 %v1079
    %v1743 = vunpack.c.h.b16 %v1079
    %v1744 = vunpack.c.l.b16 %v1080
    %v1745 = vunpack.c.h.b16 %v1080
    %v1746 = vunpack.c.l.b16 %v1081
    %v1747 = vunpack.c.h.b16 %v1081
    %v1748 = vunpack.c.l.b16 %v1082
    %v1749 = vunpack.c.h.b16 %v1082
    %v1750 = vunpack.c.l.b16 %v1083
    %v1751 = vunpack.c.h.b16 %v1083
    %v1752 = vunpack.c.l.b16 %v1084
    %v1753 = vunpack.c.h.b16 %v1084
    %v1754 = vunpack.c.l.b16 %v1085
    %v1755 = vunpack.c.h.b16 %v1085
    %v1756 = vunpack.c.l.b16 %v1086
    %v1757 = vunpack.c.h.b16 %v1086
    %v1758 = vunpack.c.l.b16 %v1087
    %v1759 = vunpack.c.h.b16 %v1087
    %v1760 = vunpack.c.l.b16 %v1088
    %v1761 = vunpack.c.h.b16 %v1088
    %v1762 = vunpack.c.l.b16 %v1089
    %v1763 = vunpack.c.h.b16 %v1089
    %v1764 = vunpack.c.l.b16 %v1090
    %v1765 = vunpack.c.h.b16 %v1090
    %v1766 = vunpack.c.l.b16 %v1091
    %v1767 = vunpack.c.h.b16 %v1091
    %v1768 = vunpack.c.l.b16 %v1092
    %v1769 = vunpack.c.h.b16 %v1092
    %v1770 = vunpack.c.l.b16 %v1093
    %v1771 = vunpack.c.h.b16 %v1093
    %v1772 = vunpack.c.l.b16 %v1094
    %v1773 = vunpack.c.h.b16 %v1094
    %v1774 = vunpack.c.l.b16 %v1095
    %v1775 = vunpack.c.h.b16 %v1095
    %v1776 = vunpack.c.l.b16 %v1096
    %v1777 = vunpack.c.h.b16 %v1096
    %v1778 = vunpack.c.l.b16 %v1097
    %v1779 = vunpack.c.h.b16 %v1097
    %v1780 = vunpack.c.l.b16 %v1098
    %v1781 = vunpack.c.h.b16 %v1098
    %v1782 = vunpack.c.l.b16 %v1099
    %v1783 = vunpack.c.h.b16 %v1099
    %v1784 = vunpack.c.l.b16 %v1100
    %v1785 = vunpack.c.h.b16 %v1100
    %v1786 = vunpack.c.l.b16 %v1101
    %v1787 = vunpack.c.h.b16 %v1101
    %v1788 = vunpack.c.l.b16 %v1102
    %v1789 = vunpack.c.h.b16 %v1102
    %v1790 = vunpack.c.l.b16 %v1103
    %v1791 = vunpack.c.h.b16 %v1103
    %v1792 = vunpack.c.l.b16 %v1104
    %v1793 = vunpack.c.h.b16 %v1104
    %v1794 = vunpack.c.l.b16 %v1105
    %v1795 = vunpack.c.h.b16 %v1105
    %v1796 = vunpack.c.l.b16 %v1106
    %v1797 = vunpack.c.h.b16 %v1106
    %v1798 = vunpack.c.l.b16 %v1107
    %v1799 = vunpack.c.h.b16 %v1107
    %v1800 = vunpack.c.l.b16 %v1108
    %v1801 = vunpack.c.h.b16 %v1108
    %v1802 = vunpack.c.l.b16 %v1109
    %v1803 = vunpack.c.h.b16 %v1109
    %v1804 = vunpack.c.l.b16 %v1110
    %v1805 = vunpack.c.h.b16 %v1110
    %v1806 = vunpack.c.l.b16 %v1111
    %v1807 = vunpack.c.h.b16 %v1111
    %v1808 = vunpack.c.l.b16 %v1112
    %v1809 = vunpack.c.h.b16 %v1112
    %v1810 = vunpack.c.l.b16 %v1113
    %v1811 = vunpack.c.h.b16 %v1113
    %v1812 = vunpack.c.l.b16 %v1114
    %v1813 = vunpack.c.h.b16 %v1114
    %v1814 = vunpack.c.l.b16 %v1115
    %v1815 = vunpack.c.h.b16 %v1115
    %v1816 = vunpack.c.l.b16 %v1116
    %v1817 = vunpack.c.h.b16 %v1116
    %v1818 = vunpack.c.l.b16 %v1117
    %v1819 = vunpack.c.h.b16 %v1117
    %v1820 = vunpack.c.l.b16 %v1118
    %v1821 = vunpack.c.h.b16 %v1118
    %v1822 = vunpack.c.l.b16 %v1119
    %v1823 = vunpack.c.h.b16 %v1119
    %v1824 = vunpack.c.l.b16 %v1120
    %v1825 = vunpack.c.h.b16 %v1120
    %v1826 = vunpack.c.l.b16 %v1121
    %v1827 = vunpack.c.h.b16 %v1121
    %v1828 = vunpack.c.l.b16 %v1122
    %v1829 = vunpack.c.h.b16 %v1122
    %v1830 = vunpack.c.l.b16 %v1123
    %v1831 = vunpack.c.h.b16 %v1123
    %v1832 = vunpack.c.l.b16 %v1124
    %v1833 = vunpack.c.h.b16 %v1124
    %v1834 = vunpack.c.l.b16 %v1125
    %v1835 = vunpack.c.h.b16 %v1125
    %v1836 = vunpack.c.l.b16 %v1126
    %v1837 = vunpack.c.h.b16 %v1126
    %v1838 = vunpack.c.l.b16 %v1127
    %v1839 = vunpack.c.h.b16 %v1127
    %v1840 = vunpack.c.l.b16 %v1128
    %v1841 = vunpack.c.h.b16 %v1128
    %v1842 = vunpack.c.l.b16 %v1129
    %v1843 = vunpack.c.h.b16 %v1129
    %v1844 = vunpack.c.l.b16 %v1130
    %v1845 = vunpack.c.h.b16 %v1130
    %v1846 = vunpack.c.l.b16 %v1131
    %v1847 = vunpack.c.h.b16 %v1131
    %v1848 = vunpack.c.l.b16 %v1132
    %v1849 = vunpack.c.h.b16 %v1132
    %v1850 = vunpack.c.l.b16 %v1133
    %v1851 = vunpack.c.h.b16 %v1133
    %v1852 = vunpack.c.l.b16 %v1134
    %v1853 = vunpack.c.h.b16 %v1134
    %v1854 = vunpack.c.l.b16 %v1135
    %v1855 = vunpack.c.h.b16 %v1135
    %v1856 = vunpack.c.l.b16 %v1136
    %v1857 = vunpack.c.h.b16 %v1136
    %v1858 = vunpack.c.l.b16 %v1137
    %v1859 = vunpack.c.h.b16 %v1137
    %v1860 = vunpack.c.l.b16 %v1138
    %v1861 = vunpack.c.h.b16 %v1138
    %v1862 = vunpack.c.l.b16 %v1139
    %v1863 = vunpack.c.h.b16 %v1139
    %v1864 = vunpack.c.l.b16 %v1140
    %v1865 = vunpack.c.h.b16 %v1140
    %v1866 = vunpack.c.l.b16 %v1141
    %v1867 = vunpack.c.h.b16 %v1141
    %v1868 = vunpack.c.l.b16 %v1142
    %v1869 = vunpack.c.h.b16 %v1142
    %v1870 = vunpack.c.l.b16 %v1143
    %v1871 = vunpack.c.h.b16 %v1143
    %v1872 = vunpack.c.l.b16 %v1144
    %v1873 = vunpack.c.h.b16 %v1144
    %v1874 = vunpack.c.l.b16 %v1145
    %v1875 = vunpack.c.h.b16 %v1145
    %v1876 = vunpack.c.l.b16 %v1146
    %v1877 = vunpack.c.h.b16 %v1146
    %v1878 = vunpack.c.l.b16 %v1147
    %v1879 = vunpack.c.h.b16 %v1147
    %v1880 = vunpack.c.l.b16 %v1148
    %v1881 = vunpack.c.h.b16 %v1148
    %v1882 = vunpack.c.l.b16 %v1149
    %v1883 = vunpack.c.h.b16 %v1149
    %v1884 = vunpack.c.l.b16 %v1150
    %v1885 = vunpack.c.h.b16 %v1150
    %v1886 = vunpack.c.l.b16 %v1151
    %v1887 = vunpack.c.h.b16 %v1151
    %v1888 = vunpack.c.l.b16 %v1152
    %v1889 = vunpack.c.h.b16 %v1152
    %v1890 = vunpack.c.l.b16 %v1153
    %v1891 = vunpack.c.h.b16 %v1153
    %v1892 = vunpack.c.l.b16 %v1154
    %v1893 = vunpack.c.h.b16 %v1154
    %v1894 = vunpack.c.l.b16 %v1155
    %v1895 = vunpack.c.h.b16 %v1155
    %v1896 = vunpack.c.l.b16 %v1156
    %v1897 = vunpack.c.h.b16 %v1156
    %v1898 = vunpack.c.l.b16 %v1157
    %v1899 = vunpack.c.h.b16 %v1157
    %v1900 = vunpack.c.l.b16 %v1158
    %v1901 = vunpack.c.h.b16 %v1158
    %v1902 = vunpack.c.l.b16 %v1159
    %v1903 = vunpack.c.h.b16 %v1159
    %v1904 = vunpack.c.l.b16 %v1160
    %v1905 = vunpack.c.h.b16 %v1160
    %v1906 = vunpack.c.l.b16 %v1161
    %v1907 = vunpack.c.h.b16 %v1161
    %v1908 = vunpack.c.l.b16 %v1162
    %v1909 = vunpack.c.h.b16 %v1162
    %v1910 = vunpack.c.l.b16 %v1163
    %v1911 = vunpack.c.h.b16 %v1163
    %v1912 = vunpack.c.l.b16 %v1164
    %v1913 = vunpack.c.h.b16 %v1164
    %v1914 = vunpack.c.l.b16 %v1165
    %v1915 = vunpack.c.h.b16 %v1165
    %v1916 = vunpack.c.l.b16 %v1166
    %v1917 = vunpack.c.h.b16 %v1166
    %v1918 = vunpack.c.l.b16 %v1167
    %v1919 = vunpack.c.h.b16 %v1167
    %v1920 = vunpack.c.l.b16 %v1168
    %v1921 = vunpack.c.h.b16 %v1168
    %v1922 = vunpack.c.l.b16 %v1169
    %v1923 = vunpack.c.h.b16 %v1169
    %v1924 = vunpack.c.l.b16 %v1170
    %v1925 = vunpack.c.h.b16 %v1170
    %v1926 = vunpack.c.l.b16 %v1171
    %v1927 = vunpack.c.h.b16 %v1171
    %v1928 = vunpack.c.l.b16 %v1172
    %v1929 = vunpack.c.h.b16 %v1172
    %v1930 = vunpack.c.l.b16 %v1173
    %v1931 = vunpack.c.h.b16 %v1173
    %v1932 = vunpack.c.l.b16 %v1174
    %v1933 = vunpack.c.h.b16 %v1174
    %v1934 = vunpack.c.l.b16 %v1175
    %v1935 = vunpack.c.h.b16 %v1175
    %v1936 = vunpack.c.l.b16 %v1176
    %v1937 = vunpack.c.h.b16 %v1176
    %v1938 = vunpack.c.l.b16 %v1177
    %v1939 = vunpack.c.h.b16 %v1177
    %v1940 = vunpack.c.l.b16 %v1178
    %v1941 = vunpack.c.h.b16 %v1178
    %v1942 = vunpack.c.l.b16 %v1179
    %v1943 = vunpack.c.h.b16 %v1179
    %v1944 = vunpack.c.l.b16 %v1180
    %v1945 = vunpack.c.h.b16 %v1180
    %v1946 = vunpack.c.l.b16 %v1181
    %v1947 = vunpack.c.h.b16 %v1181
    %v1948 = vunpack.c.l.b16 %v1182
    %v1949 = vunpack.c.h.b16 %v1182
    %v1950 = vunpack.c.l.b16 %v1183
    %v1951 = vunpack.c.h.b16 %v1183
    %v1952 = vunpack.c.l.b16 %v1184
    %v1953 = vunpack.c.h.b16 %v1184
    %v1954 = vunpack.c.l.b16 %v1185
    %v1955 = vunpack.c.h.b16 %v1185
    %v1956 = vunpack.c.l.b16 %v1186
    %v1957 = vunpack.c.h.b16 %v1186
    %v1958 = vunpack.c.l.b16 %v1187
    %v1959 = vunpack.c.h.b16 %v1187
    %v1960 = vunpack.c.l.b16 %v1188
    %v1961 = vunpack.c.h.b16 %v1188
    %v1962 = vunpack.c.l.b16 %v1189
    %v1963 = vunpack.c.h.b16 %v1189
    %v1964 = vunpack.c.l.b16 %v1190
    %v1965 = vunpack.c.h.b16 %v1190
    %v1966 = vunpack.c.l.b16 %v1191
    %v1967 = vunpack.c.h.b16 %v1191
    %v1968 = vunpack.c.l.b16 %v1192
    %v1969 = vunpack.c.h.b16 %v1192
    %v1970 = vunpack.c.l.b16 %v1193
    %v1971 = vunpack.c.h.b16 %v1193
    %v1972 = vunpack.c.l.b16 %v1194
    %v1973 = vunpack.c.h.b16 %v1194
    %v1974 = vunpack.c.l.b16 %v1195
    %v1975 = vunpack.c.h.b16 %v1195
    %v1976 = vunpack.c.l.b16 %v1196
    %v1977 = vunpack.c.h.b16 %v1196
    %v1978 = vunpack.c.l.b16 %v1197
    %v1979 = vunpack.c.h.b16 %v1197
    %v1980 = vunpack.c.l.b16 %v1198
    %v1981 = vunpack.c.h.b16 %v1198
    %v1982 = vunpack.c.l.b16 %v1199
    %v1983 = vunpack.c.h.b16 %v1199
    %v1984 = vunpack.c.l.b16 %v1200
    %v1985 = vunpack.c.h.b16 %v1200
    %v1986 = vunpack.c.l.b16 %v1201
    %v1987 = vunpack.c.h.b16 %v1201
    %v1988 = vunpack.c.l.b16 %v1202
    %v1989 = vunpack.c.h.b16 %v1202
    %v1990 = vunpack.c.l.b16 %v1203
    %v1991 = vunpack.c.h.b16 %v1203
    %v1992 = vunpack.c.l.b16 %v1204
    %v1993 = vunpack.c.h.b16 %v1204
    %v1994 = vunpack.c.l.b16 %v1205
    %v1995 = vunpack.c.h.b16 %v1205
    %v1996 = vunpack.c.l.b16 %v1206
    %v1997 = vunpack.c.h.b16 %v1206
    %v1998 = vunpack.c.l.b16 %v1207
    %v1999 = vunpack.c.h.b16 %v1207
    %v2000 = vunpack.c.l.b16 %v1208
    %v2001 = vunpack.c.h.b16 %v1208
    %v2002 = vunpack.c.l.b16 %v1209
    %v2003 = vunpack.c.h.b16 %v1209
    %v2004 = vunpack.c.l.b16 %v1210
    %v2005 = vunpack.c.h.b16 %v1210
    %v2006 = vunpack.c.l.b16 %v1211
    %v2007 = vunpack.c.h.b16 %v1211
    %v2008 = vunpack.c.l.b16 %v1212
    %v2009 = vunpack.c.h.b16 %v1212
    %v2010 = vunpack.c.l.b16 %v1213
    %v2011 = vunpack.c.h.b16 %v1213
    %v2012 = vunpack.c.l.b16 %v1214
    %v2013 = vunpack.c.h.b16 %v1214
    %v2014 = vunpack.c.l.b16 %v1215
    %v2015 = vunpack.c.h.b16 %v1215
    %v2016 = vunpack.c.l.b16 %v1216
    %v2017 = vunpack.c.h.b16 %v1216
    %v2018 = vunpack.c.l.b16 %v1217
    %v2019 = vunpack.c.h.b16 %v1217
    %v2020 = vunpack.c.l.b16 %v1218
    %v2021 = vunpack.c.h.b16 %v1218
    %v2022 = vunpack.c.l.b16 %v1219
    %v2023 = vunpack.c.h.b16 %v1219
    %v2024 = vunpack.c.l.b16 %v1220
    %v2025 = vunpack.c.h.b16 %v1220
    %v2026 = vunpack.c.l.b16 %v1221
    %v2027 = vunpack.c.h.b16 %v1221
    %v2028 = vunpack.c.l.b16 %v1222
    %v2029 = vunpack.c.h.b16 %v1222
    %v2030 = vunpack.c.l.b16 %v1223
    %v2031 = vunpack.c.h.b16 %v1223
    %v2032 = vunpack.c.l.b16 %v1224
    %v2033 = vunpack.c.h.b16 %v1224
    %v2034 = vunpack.c.l.b16 %v1225
    %v2035 = vunpack.c.h.b16 %v1225
    %v2036 = vunpack.c.l.b16 %v1226
    %v2037 = vunpack.c.h.b16 %v1226
    %v2038 = vunpack.c.l.b16 %v1227
    %v2039 = vunpack.c.h.b16 %v1227
    %v2040 = vunpack.c.l.b16 %v1228
    %v2041 = vunpack.c.h.b16 %v1228
    %v2042 = vunpack.c.l.b16 %v1229
    %v2043 = vunpack.c.h.b16 %v1229
    %v2044 = vunpack.c.l.b16 %v1230
    %v2045 = vunpack.c.h.b16 %v1230
    %v2046 = vunpack.c.l.b16 %v1231
    %v2047 = vunpack.c.h.b16 %v1231
    %v2048 = vunpack.c.l.b16 %v1232
    %v2049 = vunpack.c.h.b16 %v1232
    %v2050 = vunpack.c.l.b16 %v1233
    %v2051 = vunpack.c.h.b16 %v1233
    %v2052 = vunpack.c.l.b16 %v1234
    %v2053 = vunpack.c.h.b16 %v1234
    %v2054 = vunpack.c.l.b16 %v1235
    %v2055 = vunpack.c.h.b16 %v1235
    %v2056 = vunpack.c.l.b16 %v1236
    %v2057 = vunpack.c.h.b16 %v1236
    %v2058 = vunpack.c.l.b16 %v1237
    %v2059 = vunpack.c.h.b16 %v1237
    %v2060 = vunpack.c.l.b16 %v1238
    %v2061 = vunpack.c.h.b16 %v1238
    %v2062 = vunpack.c.l.b16 %v1239
    %v2063 = vunpack.c.h.b16 %v1239
    %v2064 = vunpack.c.l.b16 %v1240
    %v2065 = vunpack.c.h.b16 %v1240
    %v2066 = vunpack.c.l.b16 %v1241
    %v2067 = vunpack.c.h.b16 %v1241
    %v2068 = vunpack.c.l.b16 %v1242
    %v2069 = vunpack.c.h.b16 %v1242
    %v2070 = vunpack.c.l.b16 %v1243
    %v2071 = vunpack.c.h.b16 %v1243
    %v2072 = vunpack.c.l.b16 %v1244
    %v2073 = vunpack.c.h.b16 %v1244
    %v2074 = vunpack.c.l.b16 %v1245
    %v2075 = vunpack.c.h.b16 %v1245
    %v2076 = vunpack.c.l.b16 %v1246
    %v2077 = vunpack.c.h.b16 %v1246
    %v2078 = vunpack.c.l.b16 %v1247
    %v2079 = vunpack.c.h.b16 %v1247
    %v2080 = vunpack.c.l.b16 %v1248
    %v2081 = vunpack.c.h.b16 %v1248
    %v2082 = vunpack.c.l.b16 %v1249
    %v2083 = vunpack.c.h.b16 %v1249
    %v2084 = vunpack.c.l.b16 %v1250
    %v2085 = vunpack.c.h.b16 %v1250
    %v2086 = vunpack.c.l.b16 %v1251
    %v2087 = vunpack.c.h.b16 %v1251
    %v2088 = vunpack.c.l.b16 %v1252
    %v2089 = vunpack.c.h.b16 %v1252
    %v2090 = vunpack.c.l.b16 %v1253
    %v2091 = vunpack.c.h.b16 %v1253
    %v2092 = vunpack.c.l.b16 %v1254
    %v2093 = vunpack.c.h.b16 %v1254
    %v2094 = vunpack.c.l.b16 %v1255
    %v2095 = vunpack.c.h.b16 %v1255
    %v2096 = vunpack.c.l.b16 %v1256
    %v2097 = vunpack.c.h.b16 %v1256
    %v2098 = vunpack.c.l.b16 %v1257
    %v2099 = vunpack.c.h.b16 %v1257
    %v2100 = vunpack.c.l.b16 %v1258
    %v2101 = vunpack.c.h.b16 %v1258
    %v2102 = vunpack.c.l.b16 %v1259
    %v2103 = vunpack.c.h.b16 %v1259
    %v2104 = vunpack.c.l.b16 %v1260
    %v2105 = vunpack.c.h.b16 %v1260
    %v2106 = vunpack.c.l.b16 %v1261
    %v2107 = vunpack.c.h.b16 %v1261
    %v2108 = vunpack.c.l.b16 %v1262
    %v2109 = vunpack.c.h.b16 %v1262
    %v2110 = vunpack.c.l.b16 %v1263
    %v2111 = vunpack.c.h.b16 %v1263
    %v2112 = vunpack.c.l.b16 %v1264
    %v2113 = vunpack.c.h.b16 %v1264
    %v2114 = vunpack.c.l.b16 %v1265
    %v2115 = vunpack.c.h.b16 %v1265
    %v2116 = vunpack.c.l.b16 %v1266
    %v2117 = vunpack.c.h.b16 %v1266
    %v2118 = vunpack.c.l.b16 %v1267
    %v2119 = vunpack.c.h.b16 %v1267
    %v2120 = vunpack.c.l.b16 %v1268
    %v2121 = vunpack.c.h.b16 %v1268
    %v2122 = vunpack.c.l.b16 %v1269
    %v2123 = vunpack.c.h.b16 %v1269
    %v2124 = vunpack.c.l.b16 %v1270
    %v2125 = vunpack.c.h.b16 %v1270
    %v2126 = vunpack.c.l.b16 %v1271
    %v2127 = vunpack.c.h.b16 %v1271
    %v2128 = vunpack.c.l.b16 %v1272
    %v2129 = vunpack.c.h.b16 %v1272
    %v2130 = vunpack.c.l.b16 %v1273
    %v2131 = vunpack.c.h.b16 %v1273
    %v2132 = vunpack.c.l.b16 %v1274
    %v2133 = vunpack.c.h.b16 %v1274
    %v2134 = vunpack.c.l.b16 %v1275
    %v2135 = vunpack.c.h.b16 %v1275
    %v2136 = vunpack.c.l.b16 %v1276
    %v2137 = vunpack.c.h.b16 %v1276
    %v2138 = vunpack.c.l.b16 %v1277
    %v2139 = vunpack.c.h.b16 %v1277
    %v2140 = vunpack.c.l.b16 %v1278
    %v2141 = vunpack.c.h.b16 %v1278
    %v2142 = vunpack.c.l.b16 %v1279
    %v2143 = vunpack.c.h.b16 %v1279
    %v2144 = vpack.c.b16 %v1574, %v1568
    %v2145 = vpack.c.b16 %v1575, %v1569
    %v2146 = vpack.c.b16 %v1576, %v1570
    %v2147 = vpack.c.b16 %v1577, %v1571
    %v2148 = vpack.c.b16 %v1578, %v1572
    %v2149 = vpack.c.b16 %v1579, %v1573
    %v2150 = vpack.c.b16 %v1586, %v1580
    %v2151 = vpack.c.b16 %v1587, %v1581
    %v2152 = vpack.c.b16 %v1588, %v1582
    %v2153 = vpack.c.b16 %v1589, %v1583
    %v2154 = vpack.c.b16 %v1590, %v1584
    %v2155 = vpack.c.b16 %v1591, %v1585
    %v2156 = vpack.c.b16 %v1598, %v1592
    %v2157 = vpack.c.b16 %v1599, %v1593
    %v2158 = vpack.c.b16 %v1600, %v1594
    %v2159 = vpack.c.b16 %v1601, %v1595
    %v2160 = vpack.c.b16 %v1602, %v1596
    %v2161 = vpack.c.b16 %v1603, %v1597
    %v2162 = vpack.c.b16 %v1610, %v1604
    %v2163 = vpack.c.b16 %v1611, %v1605
    %v2164 = vpack.c.b16 %v1612, %v1606
    %v2165 = vpack.c.b16 %v1613, %v1607
    %v2166 = vpack.c.b16 %v1614, %v1608
    %v2167 = vpack.c.b16 %v1615, %v1609
    %v2168 = vpack.c.b16 %v1622, %v1616
    %v2169 = vpack.c.b16 %v1623, %v1617
    %v2170 = vpack.c.b16 %v1624, %v1618
    %v2171 = vpack.c.b16 %v1625, %v1619
    %v2172 = vpack.c.b16 %v1626, %v1620
    %v2173 = vpack.c.b16 %v1627, %v1621
    %v2174 = vpack.c.b16 %v1634, %v1628
    %v2175 = vpack.c.b16 %v1635, %v1629
    %v2176 = vpack.c.b16 %v1636, %v1630
    %v2177 = vpack.c.b16 %v1637, %v1631
    %v2178 = vpack.c.b16 %v1638, %v1632
    %v2179 = vpack.c.b16 %v1639, %v1633
    %v2180 = vpack.c.b16 %v1646, %v1640
    %v2181 = vpack.c.b16 %v1647, %v1641
    %v2182 = vpack.c.b16 %v1648, %v1642
    %v2183 = vpack.c.b16 %v1649, %v1643
    %v2184 = vpack.c.b16 %v1650, %v1644
    %v2185 = vpack.c.b16 %v1651, %v1645
    %v2186 = vpack.c.b16 %v1658, %v1652
    %v2187 = vpack.c.b16 %v1659, %v1653
    %v2188 = vpack.c.b16 %v1660, %v1654
    %v2189 = vpack.c.b16 %v1661, %v1655
    %v2190 = vpack.c.b16 %v1662, %v1656
    %v2191 = vpack.c.b16 %v1663, %v1657
    %v2192 = vpack.c.b16 %v1670, %v1664
    %v2193 = vpack.c.b16 %v1671, %v1665
    %v2194 = vpack.c.b16 %v1672, %v1666
    %v2195 = vpack.c.b16 %v1673, %v1667
    %v2196 = vpack.c.b16 %v1674, %v1668
    %v2197 = vpack.c.b16 %v1675, %v1669
    %v2198 = vpack.c.b16 %v1682, %v1676
    %v2199 = vpack.c.b16 %v1683, %v1677
    %v2200 = vpack.c.b16 %v1684, %v1678
    %v2201 = vpack.c.b16 %v1685, %v1679
    %v2202 = vpack.c.b16 %v1686, %v1680
    %v2203 = vpack.c.b16 %v1687, %v1681
    %v2204 = vpack.c.b16 %v1694, %v1688
    %v2205 = vpack.c.b16 %v1695, %v1689
    %v2206 = vpack.c.b16 %v1696, %v1690
    %v2207 = vpack.c.b16 %v1697, %v1691
    %v2208 = vpack.c.b16 %v1698, %v1692
    %v2209 = vpack.c.b16 %v1699, %v1693
    %v2210 = vpack.c.b16 %v1706, %v1700
    %v2211 = vpack.c.b16 %v1707, %v1701
    %v2212 = vpack.c.b16 %v1708, %v1702
    %v2213 = vpack.c.b16 %v1709, %v1703
    %v2214 = vpack.c.b16 %v1710, %v1704
    %v2215 = vpack.c.b16 %v1711, %v1705
    %v2216 = vpack.c.b16 %v1718, %v1712
    %v2217 = vpack.c.b16 %v1719, %v1713
    %v2218 = vpack.c.b16 %v1720, %v1714
    %v2219 = vpack.c.b16 %v1721, %v1715
    %v2220 = vpack.c.b16 %v1722, %v1716
    %v2221 = vpack.c.b16 %v1723, %v1717
    %v2222 = vpack.c.b16 %v1730, %v1724
    %v2223 = vpack.c.b16 %v1731, %v1725
    %v2224 = vpack.c.b16 %v1732, %v1726
    %v2225 = vpack.c.b16 %v1733, %v1727
    %v2226 = vpack.c.b16 %v1734, %v1728
    %v2227 = vpack.c.b16 %v1735, %v1729
    %v2228 = vpack.c.b16 %v1742, %v1736
    %v2229 = vpack.c.b16 %v1743, %v1737
    %v2230 = vpack.c.b16 %v1744, %v1738
    %v2231 = vpack.c.b16 %v1745, %v1739
    %v2232 = vpack.c.b16 %v1746, %v1740
    %v2233 = vpack.c.b16 %v1747, %v1741
    %v2234 = vpack.c.b16 %v1754, %v1748
    %v2235 = vpack.c.b16 %v1755, %v1749
    %v2236 = vpack.c.b16 %v1756, %v1750
    %v2237 = vpack.c.b16 %v1757, %v1751
    %v2238 = vpack.c.b16 %v1758, %v1752
    %v2239 = vpack.c.b16 %v1759, %v1753
    %v2240 = vpack.c.b16 %v1766, %v1760
    %v2241 = vpack.c.b16 %v1767, %v1761
    %v2242 = vpack.c.b16 %v1768, %v1762
    %v2243 = vpack.c.b16 %v1769, %v1763
    %v2244 = vpack.c.b16 %v1770, %v1764
    %v2245 = vpack.c.b16 %v1771, %v1765
    %v2246 = vpack.c.b16 %v1778, %v1772
    %v2247 = vpack.c.b16 %v1779, %v1773
    %v2248 = vpack.c.b16 %v1780, %v1774
    %v2249 = vpack.c.b16 %v1781, %v1775
    %v2250 = vpack.c.b16 %v1782, %v1776
    %v2251 = vpack.c.b16 %v1783, %v1777
    %v2252 = vpack.c.b16 %v1790, %v1784
    %v2253 = vpack.c.b16 %v1791, %v1785
    %v2254 = vpack.c.b16 %v1792, %v1786
    %v2255 = vpack.c.b16 %v1793, %v1787
    %v2256 = vpack.c.b16 %v1794, %v1788
    %v2257 = vpack.c.b16 %v1795, %v1789
    %v2258 = vpack.c.b16 %v1802, %v1796
    %v2259 = vpack.c.b16 %v1803, %v1797
    %v2260 = vpack.c.b16 %v1804, %v1798
    %v2261 = vpack.c.b16 %v1805, %v1799
    %v2262 = vpack.c.b16 %v1806, %v1800
    %v2263 = vpack.c.b16 %v1807, %v1801
    %v2264 = vpack.c.b16 %v1814, %v1808
    %v2265 = vpack.c.b16 %v1815, %v1809
    %v2266 = vpack.c.b16 %v1816, %v1810
    %v2267 = vpack.c.b16 %v1817, %v1811
    %v2268 = vpack.c.b16 %v1818, %v1812
    %v2269 = vpack.c.b16 %v1819, %v1813
    %v2270 = vpack.c.b16 %v1826, %v1820
    %v2271 = vpack.c.b16 %v1827, %v1821
    %v2272 = vpack.c.b16 %v1828, %v1822
    %v2273 = vpack.c.b16 %v1829, %v1823
    %v2274 = vpack.c.b16 %v1830, %v1824
    %v2275 = vpack.c.b16 %v1831, %v1825
    %v2276 = vpack.c.b16 %v1838, %v1832
    %v2277 = vpack.c.b16 %v1839, %v1833
    %v2278 = vpack.c.b16 %v1840, %v1834
    %v2279 = vpack.c.b16 %v1841, %v1835
    %v2280 = vpack.c.b16 %v1842, %v1836
    %v2281 = vpack.c.b16 %v1843, %v1837
    %v2282 = vpack.c.b16 %v1850, %v1844
    %v2283 = vpack.c.b16 %v1851, %v1845
    %v2284 = vpack.c.b16 %v1852, %v1846
    %v2285 = vpack.c.b16 %v1853, %v1847
    %v2286 = vpack.c.b16 %v1854, %v1848
    %v2287 = vpack.c.b16 %v1855, %v1849
    %v2288 = vpack.c.b16 %v1862, %v1856
    %v2289 = vpack.c.b16 %v1863, %v1857
    %v2290 = vpack.c.b16 %v1864, %v1858
    %v2291 = vpack.c.b16 %v1865, %v1859
    %v2292 = vpack.c.b16 %v1866, %v1860
    %v2293 = vpack.c.b16 %v1867, %v1861
    %v2294 = vpack.c.b16 %v1874, %v1868
    %v2295 = vpack.c.b16 %v1875, %v1869
    %v2296 = vpack.c.b16 %v1876, %v1870
    %v2297 = vpack.c.b16 %v1877, %v1871
    %v2298 = vpack.c.b16 %v1878, %v1872
    %v2299 = vpack.c.b16 %v1879, %v1873
    %v2300 = vpack.c.b16 %v1886, %v1880
    %v2301 = vpack.c.b16 %v1887, %v1881
    %v2302 = vpack.c.b16 %v1888, %v1882
    %v2303 = vpack.c.b16 %v1889, %v1883
    %v2304 = vpack.c.b16 %v1890, %v1884
    %v2305 = vpack.c.b16 %v1891, %v1885
    %v2306 = vpack.c.b16 %v1898, %v1892
    %v2307 = vpack.c.b16 %v1899, %v1893
    %v2308 = vpack.c.b16 %v1900, %v1894
    %v2309 = vpack.c.b16 %v1901, %v1895
    %v2310 = vpack.c.b16 %v1902, %v1896
    %v2311 = vpack.c.b16 %v1903, %v1897
    %v2312 = vpack.c.b16 %v1910, %v1904
    %v2313 = vpack.c.b16 %v1911, %v1905
    %v2314 = vpack.c.b16 %v1912, %v1906
    %v2315 = vpack.c.b16 %v1913, %v1907
    %v2316 = vpack.c.b16 %v1914, %v1908
    %v2317 = vpack.c.b16 %v1915, %v1909
    %v2318 = vpack.c.b16 %v1922, %v1916
    %v2319 = vpack.c.b16 %v1923, %v1917
    %v2320 = vpack.c.b16 %v1924, %v1918
    %v2321 = vpack.c.b16 %v1925, %v1919
    %v2322 = vpack.c.b16 %v1926, %v1920
    %v2323 = vpack.c.b16 %v1927, %v1921
    %v2324 = vpack.c.b16 %v1934, %v1928
    %v2325 = vpack.c.b16 %v1935, %v1929
    %v2326 = vpack.c.b16 %v1936, %v1930
    %v2327 = vpack.c.b16 %v1937, %v1931
    %v2328 = vpack.c.b16 %v1938, %v1932
    %v2329 = vpack.c.b16 %v1939, %v1933
    %v2330 = vpack.c.b16 %v1946, %v1940
    %v2331 = vpack.c.b16 %v1947, %v1941
    %v2332 = vpack.c.b16 %v1948, %v1942
    %v2333 = vpack.c.b16 %v1949, %v1943
    %v2334 = vpack.c.b16 %v1950, %v1944
    %v2335 = vpack.c.b16 %v1951, %v1945
    %v2336 = vpack.c.b16 %v1958, %v1952
    %v2337 = vpack.c.b16 %v1959, %v1953
    %v2338 = vpack.c.b16 %v1960, %v1954
    %v2339 = vpack.c.b16 %v1961, %v1955
    %v2340 = vpack.c.b16 %v1962, %v1956
    %v2341 = vpack.c.b16 %v1963, %v1957
    %v2342 = vpack.c.b16 %v1970, %v1964
    %v2343 = vpack.c.b16 %v1971, %v1965
    %v2344 = vpack.c.b16 %v1972, %v1966
    %v2345 = vpack.c.b16 %v1973, %v1967
    %v2346 = vpack.c.b16 %v1974, %v1968
    %v2347 = vpack.c.b16 %v1975, %v1969
    %v2348 = vpack.c.b16 %v1982, %v1976
    %v2349 = vpack.c.b16 %v1983, %v1977
    %v2350 = vpack.c.b16 %v1984, %v1978
    %v2351 = vpack.c.b16 %v1985, %v1979
    %v2352 = vpack.c.b16 %v1986, %v1980
    %v2353 = vpack.c.b16 %v1987, %v1981
    %v2354 = vpack.c.b16 %v1994, %v1988
    %v2355 = vpack.c.b16 %v1995, %v1989
    %v2356 = vpack.c.b16 %v1996, %v1990
    %v2357 = vpack.c.b16 %v1997, %v1991
    %v2358 = vpack.c.b16 %v1998, %v1992
    %v2359 = vpack.c.b16 %v1999, %v1993
    %v2360 = vpack.c.b16 %v2006, %v2000
    %v2361 = vpack.c.b16 %v2007, %v2001
    %v2362 = vpack.c.b16 %v2008, %v2002
    %v2363 = vpack.c.b16 %v2009, %v2003
    %v2364 = vpack.c.b16 %v2010, %v2004
    %v2365 = vpack.c.b16 %v2011, %v2005
    %v2366 = vpack.c.b16 %v2018, %v2012
    %v2367 = vpack.c.b16 %v2019, %v2013
    %v2368 = vpack.c.b16 %v2020, %v2014
    %v2369 = vpack.c.b16 %v2021, %v2015
    %v2370 = vpack.c.b16 %v2022, %v2016
    %v2371 = vpack.c.b16 %v2023, %v2017
    %v2372 = vpack.c.b16 %v2030, %v2024
    %v2373 = vpack.c.b16 %v2031, %v2025
    %v2374 = vpack.c.b16 %v2032, %v2026
    %v2375 = vpack.c.b16 %v2033, %v2027
    %v2376 = vpack.c.b16 %v2034, %v2028
    %v2377 = vpack.c.b16 %v2035, %v2029
    %v2378 = vpack.c.b16 %v2042, %v2036
    %v2379 = vpack.c.b16 %v2043, %v2037
    %v2380 = vpack.c.b16 %v2044, %v2038
    %v2381 = vpack.c.b16 %v2045, %v2039
    %v2382 = vpack.c.b16 %v2046, %v2040
    %v2383 = vpack.c.b16 %v2047, %v2041
    %v2384 = vpack.c.b16 %v2054, %v2048
    %v2385 = vpack.c.b16 %v2055, %v2049
    %v2386 = vpack.c.b16 %v2056, %v2050
    %v2387 = vpack.c.b16 %v2057, %v2051
    %v2388 = vpack.c.b16 %v2058, %v2052
    %v2389 = vpack.c.b16 %v2059, %v2053
    %v2390 = vpack.c.b16 %v2066, %v2060
    %v2391 = vpack.c.b16 %v2067, %v2061
    %v2392 = vpack.c.b16 %v2068, %v2062
    %v2393 = vpack.c.b16 %v2069, %v2063
    %v2394 = vpack.c.b16 %v2070, %v2064
    %v2395 = vpack.c.b16 %v2071, %v2065
    %v2396 = vpack.c.b16 %v2078, %v2072
    %v2397 = vpack.c.b16 %v2079, %v2073
    %v2398 = vpack.c.b16 %v2080, %v2074
    %v2399 = vpack.c.b16 %v2081, %v2075
    %v2400 = vpack.c.b16 %v2082, %v2076
    %v2401 = vpack.c.b16 %v2083, %v2077
    %v2402 = vpack.c.b16 %v2090, %v2084
    %v2403 = vpack.c.b16 %v2091, %v2085
    %v2404 = vpack.c.b16 %v2092, %v2086
    %v2405 = vpack.c.b16 %v2093, %v2087
    %v2406 = vpack.c.b16 %v2094, %v2088
    %v2407 = vpack.c.b16 %v2095, %v2089
    %v2408 = vpack.c.b16 %v2102, %v2096
    %v2409 = vpack.c.b16 %v2103, %v2097
    %v2410 = vpack.c.b16 %v2104, %v2098
    %v2411 = vpack.c.b16 %v2105, %v2099
    %v2412 = vpack.c.b16 %v2106, %v2100
    %v2413 = vpack.c.b16 %v2107, %v2101
    %v2414 = vpack.c.b16 %v2114, %v2108
    %v2415 = vpack.c.b16 %v2115, %v2109
    %v2416 = vpack.c.b16 %v2116, %v2110
    %v2417 = vpack.c.b16 %v2117, %v2111
    %v2418 = vpack.c.b16 %v2118, %v2112
    %v2419 = vpack.c.b16 %v2119, %v2113
    %v2420 = vpack.c.b16 %v2126, %v2120
    %v2421 = vpack.c.b16 %v2127, %v2121
    %v2422 = vpack.c.b16 %v2128, %v2122
    %v2423 = vpack.c.b16 %v2129, %v2123
    %v2424 = vpack.c.b16 %v2130, %v2124
    %v2425 = vpack.c.b16 %v2131, %v2125
    %v2426 = vpack.c.b16 %v2138, %v2132
    %v2427 = vpack.c.b16 %v2139, %v2133
    %v2428 = vpack.c.b16 %v2140, %v2134
    %v2429 = vpack.c.b16 %v2141, %v2135
    %v2430 = vpack.c.b16 %v2142, %v2136
    %v2431 = vpack.c.b16 %v2143, %v2137
    %2720 = vmatprep.subr.bf16.mxu0 %v2187
    %2721 = vmatpush1.bf16.msra.mxu0 %v2186
    %2722 = vmatprep.subr.bf16.mxu0 %v2181
    %2723 = vmatpush1.bf16.msra.mxu0 %v2180
    %2724 = vmatprep.subr.bf16.mxu0 %v2175
    %2725 = vmatpush1.bf16.msra.mxu0 %v2174
    %2726 = vmatprep.subr.bf16.mxu0 %v2169
    %2727 = vmatpush1.bf16.msra.mxu0 %v2168
    %2728 = vmatprep.subr.bf16.mxu0 %v2163
    %2729 = vmatpush1.bf16.msra.mxu0 %v2162
    %2730 = vmatprep.subr.bf16.mxu0 %v2157
    %2731 = vmatpush1.bf16.msra.mxu0 %v2156
    %2732 = vmatprep.subr.bf16.mxu0 %v2151
    %2733 = vmatpush1.bf16.msra.mxu0 %v2150
    %2734 = vmatprep.subr.bf16.mxu0 %v2145
    %2735 = vmatpush1.bf16.msra.mxu0 %v2144
    %2736 = vmatprep.subr.bf16.mxu0 %v2235
    %2737 = vmatpush2.bf16.msra.mxu0 %v2234
    %2738 = vmatprep.subr.bf16.mxu0 %v2229
    %2739 = vmatpush2.bf16.msra.mxu0 %v2228
    %2740 = vmatprep.subr.bf16.mxu0 %v2223
    %2741 = vmatpush2.bf16.msra.mxu0 %v2222
    %2742 = vmatprep.subr.bf16.mxu0 %v2217
    %2743 = vmatpush2.bf16.msra.mxu0 %v2216
    %2744 = vmatprep.subr.bf16.mxu0 %v2211
    %2745 = vmatpush2.bf16.msra.mxu0 %v2210
    %2746 = vmatprep.subr.bf16.mxu0 %v2205
    %2747 = vmatpush2.bf16.msra.mxu0 %v2204
    %2748 = vmatprep.subr.bf16.mxu0 %v2199
    %2749 = vmatpush2.bf16.msra.mxu0 %v2198
    %2750 = vmatprep.subr.bf16.mxu0 %v2193
    %2751 = vmatpush2.bf16.msra.mxu0 %v2192
    %2752 = vmatprep.mubr.bf16.mxu0 %v145
    %2753 = vmatmul.mubr.bf16.gmra.mxu0 %v144
    %v2754 = vpop.f32.mrf.mxu0
    %v2755 = vadd.f32 0.0, %v2754
    %v2756 = vpop.f32.mrf.mxu0
    %v2757 = vadd.f32 0.0, %v2756
    %v2758 = vpop.f32.mrf.mxu0
    %v2759 = vadd.f32 0.0, %v2758
    %v2760 = vpop.f32.mrf.mxu0
    %v2761 = vadd.f32 0.0, %v2760
    %2762 = vdwg.mxu0
    %2763 = vmatprep.subr.bf16.mxu0 %v2283
    %2764 = vmatpush1.bf16.msra.mxu0 %v2282
    %2765 = vmatprep.subr.bf16.mxu0 %v2277
    %2766 = vmatpush1.bf16.msra.mxu0 %v2276
    %2767 = vmatprep.subr.bf16.mxu0 %v2271
    %2768 = vmatpush1.bf16.msra.mxu0 %v2270
    %2769 = vmatprep.subr.bf16.mxu0 %v2265
    %2770 = vmatpush1.bf16.msra.mxu0 %v2264
    %2771 = vmatprep.subr.bf16.mxu0 %v2259
    %2772 = vmatpush1.bf16.msra.mxu0 %v2258
    %2773 = vmatprep.subr.bf16.mxu0 %v2253
    %2774 = vmatpush1.bf16.msra.mxu0 %v2252
    %2775 = vmatprep.subr.bf16.mxu0 %v2247
    %2776 = vmatpush1.bf16.msra.mxu0 %v2246
    %2777 = vmatprep.subr.bf16.mxu0 %v2241
    %2778 = vmatpush1.bf16.msra.mxu0 %v2240
    %2779 = vmatprep.subr.bf16.mxu0 %v2331
    %2780 = vmatpush2.bf16.msra.mxu0 %v2330
    %2781 = vmatprep.subr.bf16.mxu0 %v2325
    %2782 = vmatpush2.bf16.msra.mxu0 %v2324
    %2783 = vmatprep.subr.bf16.mxu0 %v2319
    %2784 = vmatpush2.bf16.msra.mxu0 %v2318
    %2785 = vmatprep.subr.bf16.mxu0 %v2313
    %2786 = vmatpush2.bf16.msra.mxu0 %v2312
    %2787 = vmatprep.subr.bf16.mxu0 %v2307
    %2788 = vmatpush2.bf16.msra.mxu0 %v2306
    %2789 = vmatprep.subr.bf16.mxu0 %v2301
    %2790 = vmatpush2.bf16.msra.mxu0 %v2300
    %2791 = vmatprep.subr.bf16.mxu0 %v2295
    %2792 = vmatpush2.bf16.msra.mxu0 %v2294
    %2793 = vmatprep.subr.bf16.mxu0 %v2289
    %2794 = vmatpush2.bf16.msra.mxu0 %v2288
    %2795 = vmatprep.mubr.bf16.mxu0 %v147
    %2796 = vmatmul.mubr.bf16.gmra.mxu0 %v146
    %v2797 = vpop.f32.mrf.mxu0
    %v2798 = vadd.f32 %v2755, %v2797
    %v2799 = vpop.f32.mrf.mxu0
    %v2800 = vadd.f32 %v2757, %v2799
    %v2801 = vpop.f32.mrf.mxu0
    %v2802 = vadd.f32 %v2759, %v2801
    %v2803 = vpop.f32.mrf.mxu0
    %v2804 = vadd.f32 %v2761, %v2803
    %2805 = vdwg.mxu0
    %2806 = vmatprep.subr.bf16.mxu0 %v2379
    %2807 = vmatpush1.bf16.msra.mxu0 %v2378
    %2808 = vmatprep.subr.bf16.mxu0 %v2373
    %2809 = vmatpush1.bf16.msra.mxu0 %v2372
    %2810 = vmatprep.subr.bf16.mxu0 %v2367
    %2811 = vmatpush1.bf16.msra.mxu0 %v2366
    %2812 = vmatprep.subr.bf16.mxu0 %v2361
    %2813 = vmatpush1.bf16.msra.mxu0 %v2360
    %2814 = vmatprep.subr.bf16.mxu0 %v2355
    %2815 = vmatpush1.bf16.msra.mxu0 %v2354
    %2816 = vmatprep.subr.bf16.mxu0 %v2349
    %2817 = vmatpush1.bf16.msra.mxu0 %v2348
    %2818 = vmatprep.subr.bf16.mxu0 %v2343
    %2819 = vmatpush1.bf16.msra.mxu0 %v2342
    %2820 = vmatprep.subr.bf16.mxu0 %v2337
    %2821 = vmatpush1.bf16.msra.mxu0 %v2336
    %2822 = vmatprep.subr.bf16.mxu0 %v2427
    %2823 = vmatpush2.bf16.msra.mxu0 %v2426
    %2824 = vmatprep.subr.bf16.mxu0 %v2421
    %2825 = vmatpush2.bf16.msra.mxu0 %v2420
    %2826 = vmatprep.subr.bf16.mxu0 %v2415
    %2827 = vmatpush2.bf16.msra.mxu0 %v2414
    %2828 = vmatprep.subr.bf16.mxu0 %v2409
    %2829 = vmatpush2.bf16.msra.mxu0 %v2408
    %2830 = vmatprep.subr.bf16.mxu0 %v2403
    %2831 = vmatpush2.bf16.msra.mxu0 %v2402
    %2832 = vmatprep.subr.bf16.mxu0 %v2397
    %2833 = vmatpush2.bf16.msra.mxu0 %v2396
    %2834 = vmatprep.subr.bf16.mxu0 %v2391
    %2835 = vmatpush2.bf16.msra.mxu0 %v2390
    %2836 = vmatprep.subr.bf16.mxu0 %v2385
    %2837 = vmatpush2.bf16.msra.mxu0 %v2384
    %2838 = vmatprep.mubr.bf16.mxu0 %v149
    %2839 = vmatmul.mubr.bf16.gmra.mxu0 %v148
    %v2840 = vpop.f32.mrf.mxu0
    %v2841 = vadd.f32 %v2798, %v2840
    %v2842 = vpop.f32.mrf.mxu0
    %v2843 = vadd.f32 %v2800, %v2842
    %v2844 = vpop.f32.mrf.mxu0
    %v2845 = vadd.f32 %v2802, %v2844
    %v2846 = vpop.f32.mrf.mxu0
    %v2847 = vadd.f32 %v2804, %v2846
    %2848 = vdwg.mxu0
    %2849 = vmatprep.subr.bf16.mxu0 %v2189
    %2850 = vmatpush1.bf16.msra.mxu0 %v2188
    %2851 = vmatprep.subr.bf16.mxu0 %v2183
    %2852 = vmatpush1.bf16.msra.mxu0 %v2182
    %2853 = vmatprep.subr.bf16.mxu0 %v2177
    %2854 = vmatpush1.bf16.msra.mxu0 %v2176
    %2855 = vmatprep.subr.bf16.mxu0 %v2171
    %2856 = vmatpush1.bf16.msra.mxu0 %v2170
    %2857 = vmatprep.subr.bf16.mxu0 %v2165
    %2858 = vmatpush1.bf16.msra.mxu0 %v2164
    %2859 = vmatprep.subr.bf16.mxu0 %v2159
    %2860 = vmatpush1.bf16.msra.mxu0 %v2158
    %2861 = vmatprep.subr.bf16.mxu0 %v2153
    %2862 = vmatpush1.bf16.msra.mxu0 %v2152
    %2863 = vmatprep.subr.bf16.mxu0 %v2147
    %2864 = vmatpush1.bf16.msra.mxu0 %v2146
    %2865 = vmatprep.subr.bf16.mxu0 %v2237
    %2866 = vmatpush2.bf16.msra.mxu0 %v2236
    %2867 = vmatprep.subr.bf16.mxu0 %v2231
    %2868 = vmatpush2.bf16.msra.mxu0 %v2230
    %2869 = vmatprep.subr.bf16.mxu0 %v2225
    %2870 = vmatpush2.bf16.msra.mxu0 %v2224
    %2871 = vmatprep.subr.bf16.mxu0 %v2219
    %2872 = vmatpush2.bf16.msra.mxu0 %v2218
    %2873 = vmatprep.subr.bf16.mxu0 %v2213
    %2874 = vmatpush2.bf16.msra.mxu0 %v2212
    %2875 = vmatprep.subr.bf16.mxu0 %v2207
    %2876 = vmatpush2.bf16.msra.mxu0 %v2206
    %2877 = vmatprep.subr.bf16.mxu0 %v2201
    %2878 = vmatpush2.bf16.msra.mxu0 %v2200
    %2879 = vmatprep.subr.bf16.mxu0 %v2195
    %2880 = vmatpush2.bf16.msra.mxu0 %v2194
    %2881 = vmatprep.mubr.bf16.mxu0 %v145
    %2882 = vmatmul.mubr.bf16.gmra.mxu0 %v144
    %v2883 = vpop.f32.mrf.mxu0
    %v2884 = vadd.f32 0.0, %v2883
    %v2885 = vpop.f32.mrf.mxu0
    %v2886 = vadd.f32 0.0, %v2885
    %v2887 = vpop.f32.mrf.mxu0
    %v2888 = vadd.f32 0.0, %v2887
    %v2889 = vpop.f32.mrf.mxu0
    %v2890 = vadd.f32 0.0, %v2889
    %2891 = vdwg.mxu0
    %2892 = vmatprep.subr.bf16.mxu0 %v2285
    %2893 = vmatpush1.bf16.msra.mxu0 %v2284
    %2894 = vmatprep.subr.bf16.mxu0 %v2279
    %2895 = vmatpush1.bf16.msra.mxu0 %v2278
    %2896 = vmatprep.subr.bf16.mxu0 %v2273
    %2897 = vmatpush1.bf16.msra.mxu0 %v2272
    %2898 = vmatprep.subr.bf16.mxu0 %v2267
    %2899 = vmatpush1.bf16.msra.mxu0 %v2266
    %2900 = vmatprep.subr.bf16.mxu0 %v2261
    %2901 = vmatpush1.bf16.msra.mxu0 %v2260
    %2902 = vmatprep.subr.bf16.mxu0 %v2255
    %2903 = vmatpush1.bf16.msra.mxu0 %v2254
    %2904 = vmatprep.subr.bf16.mxu0 %v2249
    %2905 = vmatpush1.bf16.msra.mxu0 %v2248
    %2906 = vmatprep.subr.bf16.mxu0 %v2243
    %2907 = vmatpush1.bf16.msra.mxu0 %v2242
    %2908 = vmatprep.subr.bf16.mxu0 %v2333
    %2909 = vmatpush2.bf16.msra.mxu0 %v2332
    %2910 = vmatprep.subr.bf16.mxu0 %v2327
    %2911 = vmatpush2.bf16.msra.mxu0 %v2326
    %2912 = vmatprep.subr.bf16.mxu0 %v2321
    %2913 = vmatpush2.bf16.msra.mxu0 %v2320
    %2914 = vmatprep.subr.bf16.mxu0 %v2315
    %2915 = vmatpush2.bf16.msra.mxu0 %v2314
    %2916 = vmatprep.subr.bf16.mxu0 %v2309
    %2917 = vmatpush2.bf16.msra.mxu0 %v2308
    %2918 = vmatprep.subr.bf16.mxu0 %v2303
    %2919 = vmatpush2.bf16.msra.mxu0 %v2302
    %2920 = vmatprep.subr.bf16.mxu0 %v2297
    %2921 = vmatpush2.bf16.msra.mxu0 %v2296
    %2922 = vmatprep.subr.bf16.mxu0 %v2291
    %2923 = vmatpush2.bf16.msra.mxu0 %v2290
    %2924 = vmatprep.mubr.bf16.mxu0 %v147
    %2925 = vmatmul.mubr.bf16.gmra.mxu0 %v146
    %v2926 = vpop.f32.mrf.mxu0
    %v2927 = vadd.f32 %v2884, %v2926
    %v2928 = vpop.f32.mrf.mxu0
    %v2929 = vadd.f32 %v2886, %v2928
    %v2930 = vpop.f32.mrf.mxu0
    %v2931 = vadd.f32 %v2888, %v2930
    %v2932 = vpop.f32.mrf.mxu0
    %v2933 = vadd.f32 %v2890, %v2932
    %2934 = vdwg.mxu0
    %2935 = vmatprep.subr.bf16.mxu0 %v2381
    %2936 = vmatpush1.bf16.msra.mxu0 %v2380
    %2937 = vmatprep.subr.bf16.mxu0 %v2375
    %2938 = vmatpush1.bf16.msra.mxu0 %v2374
    %2939 = vmatprep.subr.bf16.mxu0 %v2369
    %2940 = vmatpush1.bf16.msra.mxu0 %v2368
    %2941 = vmatprep.subr.bf16.mxu0 %v2363
    %2942 = vmatpush1.bf16.msra.mxu0 %v2362
    %2943 = vmatprep.subr.bf16.mxu0 %v2357
    %2944 = vmatpush1.bf16.msra.mxu0 %v2356
    %2945 = vmatprep.subr.bf16.mxu0 %v2351
    %2946 = vmatpush1.bf16.msra.mxu0 %v2350
    %2947 = vmatprep.subr.bf16.mxu0 %v2345
    %2948 = vmatpush1.bf16.msra.mxu0 %v2344
    %2949 = vmatprep.subr.bf16.mxu0 %v2339
    %2950 = vmatpush1.bf16.msra.mxu0 %v2338
    %2951 = vmatprep.subr.bf16.mxu0 %v2429
    %2952 = vmatpush2.bf16.msra.mxu0 %v2428
    %2953 = vmatprep.subr.bf16.mxu0 %v2423
    %2954 = vmatpush2.bf16.msra.mxu0 %v2422
    %2955 = vmatprep.subr.bf16.mxu0 %v2417
    %2956 = vmatpush2.bf16.msra.mxu0 %v2416
    %2957 = vmatprep.subr.bf16.mxu0 %v2411
    %2958 = vmatpush2.bf16.msra.mxu0 %v2410
    %2959 = vmatprep.subr.bf16.mxu0 %v2405
    %2960 = vmatpush2.bf16.msra.mxu0 %v2404
    %2961 = vmatprep.subr.bf16.mxu0 %v2399
    %2962 = vmatpush2.bf16.msra.mxu0 %v2398
    %2963 = vmatprep.subr.bf16.mxu0 %v2393
    %2964 = vmatpush2.bf16.msra.mxu0 %v2392
    %2965 = vmatprep.subr.bf16.mxu0 %v2387
    %2966 = vmatpush2.bf16.msra.mxu0 %v2386
    %2967 = vmatprep.mubr.bf16.mxu0 %v149
    %2968 = vmatmul.mubr.bf16.gmra.mxu0 %v148
    %v2969 = vpop.f32.mrf.mxu0
    %v2970 = vadd.f32 %v2927, %v2969
    %v2971 = vpop.f32.mrf.mxu0
    %v2972 = vadd.f32 %v2929, %v2971
    %v2973 = vpop.f32.mrf.mxu0
    %v2974 = vadd.f32 %v2931, %v2973
    %v2975 = vpop.f32.mrf.mxu0
    %v2976 = vadd.f32 %v2933, %v2975
    %2977 = vdwg.mxu0
    %2978 = vmatprep.subr.bf16.mxu0 %v2191
    %2979 = vmatpush1.bf16.msra.mxu0 %v2190
    %2980 = vmatprep.subr.bf16.mxu0 %v2185
    %2981 = vmatpush1.bf16.msra.mxu0 %v2184
    %2982 = vmatprep.subr.bf16.mxu0 %v2179
    %2983 = vmatpush1.bf16.msra.mxu0 %v2178
    %2984 = vmatprep.subr.bf16.mxu0 %v2173
    %2985 = vmatpush1.bf16.msra.mxu0 %v2172
    %2986 = vmatprep.subr.bf16.mxu0 %v2167
    %2987 = vmatpush1.bf16.msra.mxu0 %v2166
    %2988 = vmatprep.subr.bf16.mxu0 %v2161
    %2989 = vmatpush1.bf16.msra.mxu0 %v2160
    %2990 = vmatprep.subr.bf16.mxu0 %v2155
    %2991 = vmatpush1.bf16.msra.mxu0 %v2154
    %2992 = vmatprep.subr.bf16.mxu0 %v2149
    %2993 = vmatpush1.bf16.msra.mxu0 %v2148
    %2994 = vmatprep.subr.bf16.mxu0 %v2239
    %2995 = vmatpush2.bf16.msra.mxu0 %v2238
    %2996 = vmatprep.subr.bf16.mxu0 %v2233
    %2997 = vmatpush2.bf16.msra.mxu0 %v2232
    %2998 = vmatprep.subr.bf16.mxu0 %v2227
    %2999 = vmatpush2.bf16.msra.mxu0 %v2226
    %3000 = vmatprep.subr.bf16.mxu0 %v2221
    %3001 = vmatpush2.bf16.msra.mxu0 %v2220
    %3002 = vmatprep.subr.bf16.mxu0 %v2215
    %3003 = vmatpush2.bf16.msra.mxu0 %v2214
    %3004 = vmatprep.subr.bf16.mxu0 %v2209
    %3005 = vmatpush2.bf16.msra.mxu0 %v2208
    %3006 = vmatprep.subr.bf16.mxu0 %v2203
    %3007 = vmatpush2.bf16.msra.mxu0 %v2202
    %3008 = vmatprep.subr.bf16.mxu0 %v2197
    %3009 = vmatpush2.bf16.msra.mxu0 %v2196
    %3010 = vmatprep.mubr.bf16.mxu0 %v145
    %3011 = vmatmul.mubr.bf16.gmra.mxu0 %v144
    %v3012 = vpop.f32.mrf.mxu0
    %v3013 = vadd.f32 0.0, %v3012
    %v3014 = vpop.f32.mrf.mxu0
    %v3015 = vadd.f32 0.0, %v3014
    %v3016 = vpop.f32.mrf.mxu0
    %v3017 = vadd.f32 0.0, %v3016
    %v3018 = vpop.f32.mrf.mxu0
    %v3019 = vadd.f32 0.0, %v3018
    %3020 = vdwg.mxu0
    %3021 = vmatprep.subr.bf16.mxu0 %v2287
    %3022 = vmatpush1.bf16.msra.mxu0 %v2286
    %3023 = vmatprep.subr.bf16.mxu0 %v2281
    %3024 = vmatpush1.bf16.msra.mxu0 %v2280
    %3025 = vmatprep.subr.bf16.mxu0 %v2275
    %3026 = vmatpush1.bf16.msra.mxu0 %v2274
    %3027 = vmatprep.subr.bf16.mxu0 %v2269
    %3028 = vmatpush1.bf16.msra.mxu0 %v2268
    %3029 = vmatprep.subr.bf16.mxu0 %v2263
    %3030 = vmatpush1.bf16.msra.mxu0 %v2262
    %3031 = vmatprep.subr.bf16.mxu0 %v2257
    %3032 = vmatpush1.bf16.msra.mxu0 %v2256
    %3033 = vmatprep.subr.bf16.mxu0 %v2251
    %3034 = vmatpush1.bf16.msra.mxu0 %v2250
    %3035 = vmatprep.subr.bf16.mxu0 %v2245
    %3036 = vmatpush1.bf16.msra.mxu0 %v2244
    %3037 = vmatprep.subr.bf16.mxu0 %v2335
    %3038 = vmatpush2.bf16.msra.mxu0 %v2334
    %3039 = vmatprep.subr.bf16.mxu0 %v2329
    %3040 = vmatpush2.bf16.msra.mxu0 %v2328
    %3041 = vmatprep.subr.bf16.mxu0 %v2323
    %3042 = vmatpush2.bf16.msra.mxu0 %v2322
    %3043 = vmatprep.subr.bf16.mxu0 %v2317
    %3044 = vmatpush2.bf16.msra.mxu0 %v2316
    %3045 = vmatprep.subr.bf16.mxu0 %v2311
    %3046 = vmatpush2.bf16.msra.mxu0 %v2310
    %3047 = vmatprep.subr.bf16.mxu0 %v2305
    %3048 = vmatpush2.bf16.msra.mxu0 %v2304
    %3049 = vmatprep.subr.bf16.mxu0 %v2299
    %3050 = vmatpush2.bf16.msra.mxu0 %v2298
    %3051 = vmatprep.subr.bf16.mxu0 %v2293
    %3052 = vmatpush2.bf16.msra.mxu0 %v2292
    %3053 = vmatprep.mubr.bf16.mxu0 %v147
    %3054 = vmatmul.mubr.bf16.gmra.mxu0 %v146
    %v3055 = vpop.f32.mrf.mxu0
    %v3056 = vadd.f32 %v3013, %v3055
    %v3057 = vpop.f32.mrf.mxu0
    %v3058 = vadd.f32 %v3015, %v3057
    %v3059 = vpop.f32.mrf.mxu0
    %v3060 = vadd.f32 %v3017, %v3059
    %v3061 = vpop.f32.mrf.mxu0
    %v3062 = vadd.f32 %v3019, %v3061
    %3063 = vdwg.mxu0
    %3064 = vmatprep.subr.bf16.mxu0 %v2383
    %3065 = vmatpush1.bf16.msra.mxu0 %v2382
    %3066 = vmatprep.subr.bf16.mxu0 %v2377
    %3067 = vmatpush1.bf16.msra.mxu0 %v2376
    %3068 = vmatprep.subr.bf16.mxu0 %v2371
    %3069 = vmatpush1.bf16.msra.mxu0 %v2370
    %3070 = vmatprep.subr.bf16.mxu0 %v2365
    %3071 = vmatpush1.bf16.msra.mxu0 %v2364
    %3072 = vmatprep.subr.bf16.mxu0 %v2359
    %3073 = vmatpush1.bf16.msra.mxu0 %v2358
    %3074 = vmatprep.subr.bf16.mxu0 %v2353
    %3075 = vmatpush1.bf16.msra.mxu0 %v2352
    %3076 = vmatprep.subr.bf16.mxu0 %v2347
    %3077 = vmatpush1.bf16.msra.mxu0 %v2346
    %3078 = vmatprep.subr.bf16.mxu0 %v2341
    %3079 = vmatpush1.bf16.msra.mxu0 %v2340
    %3080 = vmatprep.subr.bf16.mxu0 %v2431
    %3081 = vmatpush2.bf16.msra.mxu0 %v2430
    %3082 = vmatprep.subr.bf16.mxu0 %v2425
    %3083 = vmatpush2.bf16.msra.mxu0 %v2424
    %3084 = vmatprep.subr.bf16.mxu0 %v2419
    %3085 = vmatpush2.bf16.msra.mxu0 %v2418
    %3086 = vmatprep.subr.bf16.mxu0 %v2413
    %3087 = vmatpush2.bf16.msra.mxu0 %v2412
    %3088 = vmatprep.subr.bf16.mxu0 %v2407
    %3089 = vmatpush2.bf16.msra.mxu0 %v2406
    %3090 = vmatprep.subr.bf16.mxu0 %v2401
    %3091 = vmatpush2.bf16.msra.mxu0 %v2400
    %3092 = vmatprep.subr.bf16.mxu0 %v2395
    %3093 = vmatpush2.bf16.msra.mxu0 %v2394
    %3094 = vmatprep.subr.bf16.mxu0 %v2389
    %3095 = vmatpush2.bf16.msra.mxu0 %v2388
    %3096 = vmatprep.mubr.bf16.mxu0 %v149
    %3097 = vmatmul.mubr.bf16.gmra.mxu0 %v148
    %v3098 = vpop.f32.mrf.mxu0
    %v3099 = vadd.f32 %v3056, %v3098
    %v3100 = vpop.f32.mrf.mxu0
    %v3101 = vadd.f32 %v3058, %v3100
    %v3102 = vpop.f32.mrf.mxu0
    %v3103 = vadd.f32 %v3060, %v3102
    %v3104 = vpop.f32.mrf.mxu0
    %v3105 = vadd.f32 %v3062, %v3104
    %3106 = vdwg.mxu0
    %v3107 = vadd.f32 %v769, %v2841
    %v3108 = vadd.f32 %v771, %v2843
    %v3109 = vadd.f32 %v812, %v2970
    %v3110 = vadd.f32 %v814, %v2972
    %v3111 = vadd.f32 %v855, %v3099
    %v3112 = vadd.f32 %v857, %v3101
    %v3113 = vadd.f32 %v773, %v2845
    %v3114 = vadd.f32 %v775, %v2847
    %v3115 = vadd.f32 %v816, %v2974
    %v3116 = vadd.f32 %v818, %v2976
    %v3117 = vadd.f32 %v859, %v3103
    %v3118 = vadd.f32 %v861, %v3105
    %v3119 = vld [vmem:[#allocation10] sm:$0x3f]
    %v3121 = vlaneseq
    %v3122 = vshrl.u32 %v3121, 7
    %v3123 = vsub.s32 0, %v3122
    %v3124 = vrot.slane %v3119, %v3123
    %v3125 = vlaneseq
    %v3126 = vshrl.u32 %v3125, 7
    %v3127 = vsub.s32 1, %v3126
    %v3128 = vrot.slane %v3119, %v3127
    %v3129 = vlaneseq
    %v3130 = vshrl.u32 %v3129, 7
    %v3131 = vsub.s32 2, %v3130
    %v3132 = vrot.slane %v3119, %v3131
    %v3133 = vlaneseq
    %v3134 = vshrl.u32 %v3133, 7
    %v3135 = vsub.s32 3, %v3134
    %v3136 = vrot.slane %v3119, %v3135
    %v3137 = vlaneseq
    %v3138 = vshrl.u32 %v3137, 7
    %v3139 = vsub.s32 4, %v3138
    %v3140 = vrot.slane %v3119, %v3139
    %v3141 = vlaneseq
    %v3142 = vshrl.u32 %v3141, 7
    %v3143 = vsub.s32 5, %v3142
    %v3144 = vrot.slane %v3119, %v3143
    %v3151 = vadd.f32 %v3107, %v3124
    %v3152 = vadd.f32 %v3108, %v3128
    %v3153 = vadd.f32 %v3109, %v3132
    %v3154 = vadd.f32 %v3110, %v3136
    %v3155 = vadd.f32 %v3111, %v3140
    %v3156 = vadd.f32 %v3112, %v3144
    %v3157 = vadd.f32 %v3113, %v3124
    %v3158 = vadd.f32 %v3114, %v3128
    %v3159 = vadd.f32 %v3115, %v3132
    %v3160 = vadd.f32 %v3116, %v3136
    %v3161 = vadd.f32 %v3117, %v3140
    %v3162 = vadd.f32 %v3118, %v3144
    %v3163 = vmax.f32 %v3151, 0.0
    %v3164 = vmax.f32 %v3152, 0.0
    %v3165 = vmax.f32 %v3153, 0.0
    %v3166 = vmax.f32 %v3154, 0.0
    %v3167 = vmax.f32 %v3155, 0.0
    %v3168 = vmax.f32 %v3156, 0.0
    %v3169 = vmax.f32 %v3157, 0.0
    %v3170 = vmax.f32 %v3158, 0.0
    %v3171 = vmax.f32 %v3159, 0.0
    %v3172 = vmax.f32 %v3160, 0.0
    %v3173 = vmax.f32 %v3161, 0.0
    %v3174 = vmax.f32 %v3162, 0.0
    %v3175 = vld [vmem:[#allocation11] sm:$0x3f]
    %v3177 = vlaneseq
    %v3178 = vshrl.u32 %v3177, 7
    %v3179 = vsub.s32 0, %v3178
    %v3180 = vrot.slane %v3175, %v3179
    %v3181 = vlaneseq
    %v3182 = vshrl.u32 %v3181, 7
    %v3183 = vsub.s32 1, %v3182
    %v3184 = vrot.slane %v3175, %v3183
    %v3185 = vlaneseq
    %v3186 = vshrl.u32 %v3185, 7
    %v3187 = vsub.s32 2, %v3186
    %v3188 = vrot.slane %v3175, %v3187
    %v3189 = vlaneseq
    %v3190 = vshrl.u32 %v3189, 7
    %v3191 = vsub.s32 3, %v3190
    %v3192 = vrot.slane %v3175, %v3191
    %v3193 = vlaneseq
    %v3194 = vshrl.u32 %v3193, 7
    %v3195 = vsub.s32 4, %v3194
    %v3196 = vrot.slane %v3175, %v3195
    %v3197 = vlaneseq
    %v3198 = vshrl.u32 %v3197, 7
    %v3199 = vsub.s32 5, %v3198
    %v3200 = vrot.slane %v3175, %v3199
    %v3207 = vadd.f32 %v898, %v3180
    %v3208 = vadd.f32 %v900, %v3184
    %v3209 = vadd.f32 %v941, %v3188
    %v3210 = vadd.f32 %v943, %v3192
    %v3211 = vadd.f32 %v984, %v3196
    %v3212 = vadd.f32 %v986, %v3200
    %v3213 = vadd.f32 %v902, %v3180
    %v3214 = vadd.f32 %v904, %v3184
    %v3215 = vadd.f32 %v945, %v3188
    %v3216 = vadd.f32 %v947, %v3192
    %v3217 = vadd.f32 %v988, %v3196
    %v3218 = vadd.f32 %v990, %v3200
    %v3219 = vmul.f32 %v3163, %v3207
    %v3220 = vmul.f32 %v3164, %v3208
    %v3221 = vmul.f32 %v3165, %v3209
    %v3222 = vmul.f32 %v3166, %v3210
    %v3223 = vmul.f32 %v3167, %v3211
    %v3224 = vmul.f32 %v3168, %v3212
    %v3225 = vmul.f32 %v3169, %v3213
    %v3226 = vmul.f32 %v3170, %v3214
    %v3227 = vmul.f32 %v3171, %v3215
    %v3228 = vmul.f32 %v3172, %v3216
    %v3229 = vmul.f32 %v3173, %v3217
    %v3230 = vmul.f32 %v3174, %v3218
    %v3231 = vmul.f32 %v132, %v132
    %v3232 = vmul.f32 %v133, %v133
    %v3233 = vmul.f32 %v134, %v134
    %v3234 = vmul.f32 %v135, %v135
    %v3235 = vmul.f32 %v136, %v136
    %v3236 = vmul.f32 %v137, %v137
    %v3237 = vmul.f32 %v138, %v138
    %v3238 = vmul.f32 %v139, %v139
    %v3239 = vmul.f32 %v140, %v140
    %v3240 = vmul.f32 %v141, %v141
    %v3241 = vmul.f32 %v142, %v142
    %v3242 = vmul.f32 %v143, %v143
    %v3243 = vadd.f32 %v3231, %v3232
    %v3244 = vadd.f32 %v3243, %v3233
    %v3245 = vadd.f32 %v3244, %v3234
    %v3246 = vadd.f32 %v3245, %v3235
    %v3247 = vadd.f32 %v3246, %v3236
    %3248 = vadd.xlane.f32.xlu0 %v3247
    %v3249 = vpop.xlane.xlu0 %3248
    %v3250 = vadd.f32 %v3237, %v3238
    %v3251 = vadd.f32 %v3250, %v3239
    %v3252 = vadd.f32 %v3251, %v3240
    %v3253 = vadd.f32 %v3252, %v3241
    %v3254 = vadd.f32 %v3253, %v3242
    %3255 = vadd.xlane.f32.xlu0 %v3254
    %v3256 = vpop.xlane.xlu0 %3255
    %v3257 = vmul.f32 %v3219, %v3219
    %v3258 = vmul.f32 %v3220, %v3220
    %v3259 = vmul.f32 %v3221, %v3221
    %v3260 = vmul.f32 %v3222, %v3222
    %v3261 = vmul.f32 %v3223, %v3223
    %v3262 = vmul.f32 %v3224, %v3224
    %v3263 = vmul.f32 %v3225, %v3225
    %v3264 = vmul.f32 %v3226, %v3226
    %v3265 = vmul.f32 %v3227, %v3227
    %v3266 = vmul.f32 %v3228, %v3228
    %v3267 = vmul.f32 %v3229, %v3229
    %v3268 = vmul.f32 %v3230, %v3230
    %v3269 = vadd.f32 %v3257, %v3258
    %v3270 = vadd.f32 %v3269, %v3259
    %v3271 = vadd.f32 %v3270, %v3260
    %v3272 = vadd.f32 %v3271, %v3261
    %v3273 = vadd.f32 %v3272, %v3262
    %3274 = vadd.xlane.f32.xlu0 %v3273
    %v3275 = vpop.xlane.xlu0 %3274
    %v3276 = vadd.f32 %v3263, %v3264
    %v3277 = vadd.f32 %v3276, %v3265
    %v3278 = vadd.f32 %v3277, %v3266
    %v3279 = vadd.f32 %v3278, %v3267
    %v3280 = vadd.f32 %v3279, %v3268
    %3281 = vadd.xlane.f32.xlu0 %v3280
    %v3282 = vpop.xlane.xlu0 %3281
    %v3283 = vrsqrt.pop %v3275
    %v3284 = vmul.f32 %v3275, %v3283
    %vm3285 = vcmp.eq.f32.partialorder %v3275, inf
    %v3286 = vsel %vm3285, %v3275, %v3284
    %vm3287 = vcmp.eq.f32.partialorder %v3275, 0.0
    %v3288 = vand.u32 %v3275, 2147483648
    %v3289 = vsel %vm3287, %v3288, %v3286
    %v3290 = vrsqrt.pop %v3282
    %v3291 = vmul.f32 %v3282, %v3290
    %vm3292 = vcmp.eq.f32.partialorder %v3282, inf
    %v3293 = vsel %vm3292, %v3282, %v3291
    %vm3294 = vcmp.eq.f32.partialorder %v3282, 0.0
    %v3295 = vand.u32 %v3282, 2147483648
    %v3296 = vsel %vm3294, %v3295, %v3293
    %vm3297 = vcmp.eq.f32.partialorder %v3275, 0.0
    %vm3298 = vcmp.eq.f32.partialorder %v3282, 0.0
    %v3299 = vsel %vm3297, 1.0, %v3289
    %v3300 = vsel %vm3298, 1.0, %v3296
    %v3301 = vadd.f32 %v3299, 1e-06
    %v3302 = vadd.f32 %v3300, 1e-06
    %v3303 = vrcp.pop %v3301
    %v3304 = vrcp.pop %v3302
    %v3305 = vrsqrt.pop %v3249
    %v3306 = vmul.f32 %v3249, %v3305
    %vm3307 = vcmp.eq.f32.partialorder %v3249, inf
    %v3308 = vsel %vm3307, %v3249, %v3306
    %vm3309 = vcmp.eq.f32.partialorder %v3249, 0.0
    %v3310 = vand.u32 %v3249, 2147483648
    %v3311 = vsel %vm3309, %v3310, %v3308
    %v3312 = vrsqrt.pop %v3256
    %v3313 = vmul.f32 %v3256, %v3312
    %vm3314 = vcmp.eq.f32.partialorder %v3256, inf
    %v3315 = vsel %vm3314, %v3256, %v3313
    %vm3316 = vcmp.eq.f32.partialorder %v3256, 0.0
    %v3317 = vand.u32 %v3256, 2147483648
    %v3318 = vsel %vm3316, %v3317, %v3315
    %v3319 = vmul.f32 %v3311, %v3303
    %v3320 = vmul.f32 %v3318, %v3304
    %v3321 = vmul.f32 %v3319, 0.5
    %v3322 = vmul.f32 %v3320, 0.5
    %v3323 = vmin.f32 %v3321, 1.0
    %v3324 = vmin.f32 %v3322, 1.0
    %v3325 = vmul.f32 %v3323, %v3219
    %v3326 = vmul.f32 %v3323, %v3220
    %v3327 = vmul.f32 %v3323, %v3221
    %v3328 = vmul.f32 %v3323, %v3222
    %v3329 = vmul.f32 %v3323, %v3223
    %v3330 = vmul.f32 %v3323, %v3224
    %v3331 = vmul.f32 %v3324, %v3225
    %v3332 = vmul.f32 %v3324, %v3226
    %v3333 = vmul.f32 %v3324, %v3227
    %v3334 = vmul.f32 %v3324, %v3228
    %v3335 = vmul.f32 %v3324, %v3229
    %v3336 = vmul.f32 %v3324, %v3230
    %v3337 = vadd.f32 %v3325, %v132
    %v3338 = vadd.f32 %v3326, %v133
    %v3339 = vadd.f32 %v3327, %v134
    %v3340 = vadd.f32 %v3328, %v135
    %v3341 = vadd.f32 %v3329, %v136
    %v3342 = vadd.f32 %v3330, %v137
    %v3343 = vadd.f32 %v3331, %v138
    %v3344 = vadd.f32 %v3332, %v139
    %v3345 = vadd.f32 %v3333, %v140
    %v3346 = vadd.f32 %v3334, %v141
    %v3347 = vadd.f32 %v3335, %v142
    %v3348 = vadd.f32 %v3336, %v143
    %v3349 = vadd.f32 %v3337, %v3338
    %v3350 = vadd.f32 %v3349, %v3339
    %v3351 = vadd.f32 %v3350, %v3340
    %v3352 = vadd.f32 %v3351, %v3341
    %v3353 = vadd.f32 %v3352, %v3342
    %3354 = vadd.xlane.f32.xlu0 %v3353
    %v3355 = vpop.xlane.xlu0 %3354
    %v3356 = vadd.f32 %v3343, %v3344
    %v3357 = vadd.f32 %v3356, %v3345
    %v3358 = vadd.f32 %v3357, %v3346
    %v3359 = vadd.f32 %v3358, %v3347
    %v3360 = vadd.f32 %v3359, %v3348
    %3361 = vadd.xlane.f32.xlu0 %v3360
    %v3362 = vpop.xlane.xlu0 %3361
    %v3363 = vmul.f32 %v3337, %v3337
    %v3364 = vmul.f32 %v3338, %v3338
    %v3365 = vmul.f32 %v3339, %v3339
    %v3366 = vmul.f32 %v3340, %v3340
    %v3367 = vmul.f32 %v3341, %v3341
    %v3368 = vmul.f32 %v3342, %v3342
    %v3369 = vmul.f32 %v3343, %v3343
    %v3370 = vmul.f32 %v3344, %v3344
    %v3371 = vmul.f32 %v3345, %v3345
    %v3372 = vmul.f32 %v3346, %v3346
    %v3373 = vmul.f32 %v3347, %v3347
    %v3374 = vmul.f32 %v3348, %v3348
    %v3375 = vadd.f32 %v3363, %v3364
    %v3376 = vadd.f32 %v3375, %v3365
    %v3377 = vadd.f32 %v3376, %v3366
    %v3378 = vadd.f32 %v3377, %v3367
    %v3379 = vadd.f32 %v3378, %v3368
    %3380 = vadd.xlane.f32.xlu0 %v3379
    %v3381 = vpop.xlane.xlu0 %3380
    %v3382 = vadd.f32 %v3369, %v3370
    %v3383 = vadd.f32 %v3382, %v3371
    %v3384 = vadd.f32 %v3383, %v3372
    %v3385 = vadd.f32 %v3384, %v3373
    %v3386 = vadd.f32 %v3385, %v3374
    %3387 = vadd.xlane.f32.xlu0 %v3386
    %v3388 = vpop.xlane.xlu0 %3387
    %v3389 = vmul.f32 %v3355, 0.0013020834
    %v3390 = vmul.f32 %v3362, 0.0013020834
    %v3391 = vmul.f32 %v3381, 0.0013020834
    %v3392 = vmul.f32 %v3388, 0.0013020834
    %v3393 = vmul.f32 %v3389, %v3389
    %v3394 = vmul.f32 %v3390, %v3390
    %v3395 = vsub.f32 %v3391, %v3393
    %v3396 = vsub.f32 %v3392, %v3394
    %v3397 = vsub.f32 %v3337, %v3389
    %v3398 = vsub.f32 %v3338, %v3389
    %v3399 = vsub.f32 %v3339, %v3389
    %v3400 = vsub.f32 %v3340, %v3389
    %v3401 = vsub.f32 %v3341, %v3389
    %v3402 = vsub.f32 %v3342, %v3389
    %v3403 = vsub.f32 %v3343, %v3390
    %v3404 = vsub.f32 %v3344, %v3390
    %v3405 = vsub.f32 %v3345, %v3390
    %v3406 = vsub.f32 %v3346, %v3390
    %v3407 = vsub.f32 %v3347, %v3390
    %v3408 = vsub.f32 %v3348, %v3390
    %v3409 = vadd.f32 %v3395, 1e-05
    %v3410 = vadd.f32 %v3396, 1e-05
    %v3411 = vrsqrt.pop %v3409
    %v3412 = vrsqrt.pop %v3410
    %v3413 = vmul.f32 %v3397, %v3411
    %v3414 = vmul.f32 %v3398, %v3411
    %v3415 = vmul.f32 %v3399, %v3411
    %v3416 = vmul.f32 %v3400, %v3411
    %v3417 = vmul.f32 %v3401, %v3411
    %v3418 = vmul.f32 %v3402, %v3411
    %v3419 = vmul.f32 %v3403, %v3412
    %v3420 = vmul.f32 %v3404, %v3412
    %v3421 = vmul.f32 %v3405, %v3412
    %v3422 = vmul.f32 %v3406, %v3412
    %v3423 = vmul.f32 %v3407, %v3412
    %v3424 = vmul.f32 %v3408, %v3412
    %v3425 = vld [vmem:[#allocation13] sm:$0x3f]
    %v3427 = vlaneseq
    %v3428 = vshrl.u32 %v3427, 7
    %v3429 = vsub.s32 0, %v3428
    %v3430 = vrot.slane %v3425, %v3429
    %v3431 = vlaneseq
    %v3432 = vshrl.u32 %v3431, 7
    %v3433 = vsub.s32 1, %v3432
    %v3434 = vrot.slane %v3425, %v3433
    %v3435 = vlaneseq
    %v3436 = vshrl.u32 %v3435, 7
    %v3437 = vsub.s32 2, %v3436
    %v3438 = vrot.slane %v3425, %v3437
    %v3439 = vlaneseq
    %v3440 = vshrl.u32 %v3439, 7
    %v3441 = vsub.s32 3, %v3440
    %v3442 = vrot.slane %v3425, %v3441
    %v3443 = vlaneseq
    %v3444 = vshrl.u32 %v3443, 7
    %v3445 = vsub.s32 4, %v3444
    %v3446 = vrot.slane %v3425, %v3445
    %v3447 = vlaneseq
    %v3448 = vshrl.u32 %v3447, 7
    %v3449 = vsub.s32 5, %v3448
    %v3450 = vrot.slane %v3425, %v3449
    %v3457 = vmul.f32 %v3413, %v3430
    %v3458 = vmul.f32 %v3414, %v3434
    %v3459 = vmul.f32 %v3415, %v3438
    %v3460 = vmul.f32 %v3416, %v3442
    %v3461 = vmul.f32 %v3417, %v3446
    %v3462 = vmul.f32 %v3418, %v3450
    %v3463 = vmul.f32 %v3419, %v3430
    %v3464 = vmul.f32 %v3420, %v3434
    %v3465 = vmul.f32 %v3421, %v3438
    %v3466 = vmul.f32 %v3422, %v3442
    %v3467 = vmul.f32 %v3423, %v3446
    %v3468 = vmul.f32 %v3424, %v3450
    %v3469 = vld [vmem:[#allocation14] sm:$0x3f]
    %v3471 = vlaneseq
    %v3472 = vshrl.u32 %v3471, 7
    %v3473 = vsub.s32 0, %v3472
    %v3474 = vrot.slane %v3469, %v3473
    %v3475 = vlaneseq
    %v3476 = vshrl.u32 %v3475, 7
    %v3477 = vsub.s32 1, %v3476
    %v3478 = vrot.slane %v3469, %v3477
    %v3479 = vlaneseq
    %v3480 = vshrl.u32 %v3479, 7
    %v3481 = vsub.s32 2, %v3480
    %v3482 = vrot.slane %v3469, %v3481
    %v3483 = vlaneseq
    %v3484 = vshrl.u32 %v3483, 7
    %v3485 = vsub.s32 3, %v3484
    %v3486 = vrot.slane %v3469, %v3485
    %v3487 = vlaneseq
    %v3488 = vshrl.u32 %v3487, 7
    %v3489 = vsub.s32 4, %v3488
    %v3490 = vrot.slane %v3469, %v3489
    %v3491 = vlaneseq
    %v3492 = vshrl.u32 %v3491, 7
    %v3493 = vsub.s32 5, %v3492
    %v3494 = vrot.slane %v3469, %v3493
    %v3501 = vadd.f32 %v3457, %v3474
    %v3502 = vadd.f32 %v3458, %v3478
    %v3503 = vadd.f32 %v3459, %v3482
    %v3504 = vadd.f32 %v3460, %v3486
    %v3505 = vadd.f32 %v3461, %v3490
    %v3506 = vadd.f32 %v3462, %v3494
    %v3507 = vadd.f32 %v3463, %v3474
    %v3508 = vadd.f32 %v3464, %v3478
    %v3509 = vadd.f32 %v3465, %v3482
    %v3510 = vadd.f32 %v3466, %v3486
    %v3511 = vadd.f32 %v3467, %v3490
    %v3512 = vadd.f32 %v3468, %v3494
    %3513 = vst [vmem:[#allocation16] sm:$0xff] %v3501
    %3514 = vst [vmem:[#allocation16 + $0x8] sm:$0xff] %v3502
    %3515 = vst [vmem:[#allocation16 + $0x10] sm:$0xff] %v3503
    %3516 = vst [vmem:[#allocation16 + $0x18] sm:$0xff] %v3504
    %3517 = vst [vmem:[#allocation16 + $0x20] sm:$0xff] %v3505
    %3518 = vst [vmem:[#allocation16 + $0x28] sm:$0xff] %v3506
    %3519 = vst [vmem:[#allocation16 + $0x30] sm:$0xff] %v3507
    %3520 = vst [vmem:[#allocation16 + $0x38] sm:$0xff] %v3508
    %3521 = vst [vmem:[#allocation16 + $0x40] sm:$0xff] %v3509
    %3522 = vst [vmem:[#allocation16 + $0x48] sm:$0xff] %v3510
    %3523 = vst [vmem:[#allocation16 + $0x50] sm:$0xff] %v3511
    %3524 = vst [vmem:[#allocation16 + $0x58] sm:$0xff] %v3512
    // Predicated region
    $region66: #{tpu_custom_call.1} parent=1 // pred_check
      _
    $region67: #{tpu_custom_call.1} parent=1 // pred_check_branch
      %3526 = sbr.rel (0) target = $region69
    $region68: #{tpu_custom_call.1} parent=1 // pred_region
      %s3528 = ssub.s32 1536, 1536
      %3529 = vsyncadd [#allocation4], %s3528
      %s3530 = sshll.u32 [#allocation16], 4
      %s3531 = int_to_ptr.vmem [resolvable:$true] %s3530
      %3536 = dma.vmem_to_hbm [thread:$0]  %s3531, 1536, %s8, [#allocation4], 768, 768, 48
    $region69: #{tpu_custom_call.1} parent=1 // pred_fallthru
      _
    // Predicated region
    $region70: #{tpu_custom_call.1} parent=1 // pred_check
      _
    $region71: #{tpu_custom_call.1} parent=1 // pred_check_branch
      %3538 = sbr.rel (0) target = $region73
    $region72: #{tpu_custom_call.1} parent=1 // pred_region
      %3539 = dma.done [#allocation4], 1536
    $region73: #{tpu_custom_call.1} parent=1 // pred_fallthru
      _
    %3540 = vsyncpa [#allocation3], 1
    %3541 = vsyncpa [#allocation6], 1
    %3542 = vsyncpa [#allocation9], 1
    %3543 = vsyncpa [#allocation12], 1
    %3544 = vsyncpa [#allocation15], 1
    %3545 = vsyncpa [#allocation4], 1

</llo_original>
